<compile_context>
chip_gen: v7x
topology: tpu7x:2x2x1
jax: 0.10.0
libtpu: 0.0.40
codegen_flags: <defaults>
</compile_context>

<pallas_src>
import jax
import jax.numpy as jnp
from jax.experimental import pallas as pl
from jax.experimental.pallas import tpu as pltpu

_LANE = 128
_VMEM_TILE_BUDGET = 40 * 1024 * 1024   # working-set target, safe on v7x (64 MiB VMEM)


def _round_up(a, b):
    return ((a + b - 1) // b) * b


def _sublane_min(dtype):
    # f32 -> 8, bf16 -> 16, int8/fp8 -> 32
    return max(8, 32 // jnp.dtype(dtype).itemsize)


def _tile_vmem_bytes(tm, tn, D, x_bytes, w_bytes, out_bytes):
    """Estimate of the double-buffered VMEM working set for one grid step."""
    return (2 * D * 2 * tn * w_bytes      # fused-weight block (double buffered)
            + 2 * tm * D * x_bytes        # x row tile
            + 2 * tm * tn * out_bytes     # output tile
            + 2 * 2 * tn * 4              # fused bias block (f32)
            + tm * 2 * tn * 4)            # f32 accumulator / y intermediate


def plan_tn(D, compute_dtype, out_dtype, *, tm_cap=256):
    """Pick the output-column tile: largest lane-aligned divisor of D whose
    double-buffered working set fits the VMEM budget (v5e/v6e/v7x safe)."""
    x_b = jnp.dtype(compute_dtype).itemsize
    w_b = x_b
    o_b = jnp.dtype(out_dtype).itemsize
    cands = []
    for c in (D, 512, 256, 128):
        if (c == D or (D % c == 0 and c % _LANE == 0)) and c not in cands:
            cands.append(c)
    fitting = [c for c in cands
               if _tile_vmem_bytes(tm_cap, c, D, x_b, w_b, o_b) <= _VMEM_TILE_BUDGET]
    return max(fitting) if fitting else min(cands)


def _choose_tm(M, sub):
    """Row tile: prefer a divisor of M (no padding); else minimal padding."""
    cap = 256
    start = min(cap, (M // sub) * sub)
    for cand in range(start, 0, -sub):
        if M % cand == 0:
            return cand, M
    tm = _round_up(M, sub) if M <= cap else cap
    return tm, _round_up(M, tm)


def fuse_swiglu_params(wg, bg, w, b, *, tn, compute_dtype=jnp.bfloat16):
    """Fuse Wg/W into one [D, 2D] weight (bg/b into [1, 2D]) interleaved at tn
    granularity, so output-column tile j maps to ONE contiguous (D, 2*tn) block:
      cols [j*2*tn,      j*2*tn+tn) = Wg[:, j*tn:(j+1)*tn]  (gate)
      cols [j*2*tn+tn, (j+1)*2*tn)  =  W[:, j*tn:(j+1)*tn]  (linear)
    Call ONCE at parameter-prep time (full pass over the weights)."""
    D = wg.shape[0]
    assert wg.shape == (D, D) and w.shape == (D, D)
    assert bg.shape == (D,) and b.shape == (D,)
    assert D % tn == 0, "tn must divide D"
    nj = D // tn
    wf = jnp.stack([wg.reshape(D, nj, tn), w.reshape(D, nj, tn)], axis=2)
    wf = wf.reshape(D, 2 * D)
    bf = jnp.stack([bg.reshape(nj, tn), b.reshape(nj, tn)], axis=1)
    bf = bf.reshape(1, 2 * D).astype(jnp.float32)   # added to the f32 accumulator
    if compute_dtype is not None:
        wf = wf.astype(compute_dtype)
    return wf, bf


def swiglu_kernel(x_ref, wf_ref, bf_ref, beta_ref, o_ref):
    # x_ref:  (tm, D)       row tile of the flattened input
    # wf_ref: (D, 2*tn)     fused weight block: [gate cols | lin cols]
    # bf_ref: (1, 2*tn)     fused bias block (f32)
    # beta_ref: (1, 1) SMEM scalar beta
    # o_ref:  (tm, tn)      output tile
    tn = o_ref.shape[-1]

    # One fused MXU matmul per grid step; accumulate in f32, add bias (broadcast).
    y = jnp.dot(x_ref[...], wf_ref[...], preferred_element_type=jnp.float32) + bf_ref[...]

    gate = y[:, :tn]          # lane-aligned split (tn is a multiple of 128 or == D)
    lin = y[:, tn:]
    beta = beta_ref[0, 0]

    # Elementwise epilogue: sigmoid on the EUP, muls on the VPU, under the MXU.
    swish = gate * jax.nn.sigmoid(beta * gate)
    o_ref[...] = (swish * lin).astype(o_ref.dtype)


def swiglu_fused(x, wf, bf, beta, *, tn, tm=None, out_dtype=None):
    """SwiGLU forward on pre-fused params (see fuse_swiglu_params).

    x: [B, S, D]; wf: [D, 2D] (compute dtype); bf: [1, 2D] f32; beta: scalar.
    """
    B, S, D = x.shape
    M = B * S
    out_dtype = out_dtype or x.dtype
    compute_dtype = wf.dtype
    assert wf.shape == (D, 2 * D) and bf.shape == (1, 2 * D)
    assert tn == D or (D % tn == 0 and tn % _LANE == 0), \
        "tn must be a lane-aligned (multiple of 128) divisor of D, or D itself"
    nj = D // tn

    sub = _sublane_min(compute_dtype)
    x2d = x.reshape(M, D)
    if x2d.dtype != compute_dtype:
        x2d = x2d.astype(compute_dtype)

    if tm is None:
        tm, Mp = _choose_tm(M, sub)
    else:
        assert tm % sub == 0, f"tm must be a multiple of {sub} for {compute_dtype}"
        Mp = _round_up(M, tm)
    if Mp != M:
        x2d = jnp.pad(x2d, ((0, Mp - M), (0, 0)))
    ni = Mp // tm

    # HBM-traffic estimates (bytes) for the two grid orderings.
    x_b = jnp.dtype(compute_dtype).itemsize
    w_b = jnp.dtype(wf.dtype).itemsize
    traffic_row_major = ni * 2 * D * D * w_b + Mp * D * x_b          # x stationary per i
    traffic_weight_stationary = 2 * D * D * w_b + nj * Mp * D * x_b  # weight streamed once

    beta2d = jnp.asarray(beta, jnp.float32).reshape(1, 1)

    if traffic_weight_stationary < traffic_row_major:
        # Large-M regime: weight block constant over inner (row) axis.
        grid = (nj, ni)
        x_spec = pl.BlockSpec((tm, D), lambda j, i: (i, 0))
        wf_spec = pl.BlockSpec((D, 2 * tn), lambda j, i: (0, j))
        bf_spec = pl.BlockSpec((1, 2 * tn), lambda j, i: (0, j))
        out_spec = pl.BlockSpec((tm, tn), lambda j, i: (i, j))
        dims = ("arbitrary", "parallel")     # megacore shards rows only
    else:
        # Small-M regime: x row tile constant over inner (column) axis.
        grid = (ni, nj)
        x_spec = pl.BlockSpec((tm, D), lambda i, j: (i, 0))
        wf_spec = pl.BlockSpec((D, 2 * tn), lambda i, j: (0, j))
        bf_spec = pl.BlockSpec((1, 2 * tn), lambda i, j: (0, j))
        out_spec = pl.BlockSpec((tm, tn), lambda i, j: (i, j))
        dims = ("parallel", "arbitrary")     # megacore shards rows only

    vmem_limit = min(
        64 * 1024 * 1024,
        max(32 * 1024 * 1024,
            _tile_vmem_bytes(tm, tn, D, x_b, w_b, jnp.dtype(out_dtype).itemsize)
            + 4 * 1024 * 1024),
    )

    out = pl.pallas_call(
        swiglu_kernel,
        out_shape=jax.ShapeDtypeStruct((Mp, D), out_dtype),
        grid_spec=pltpu.PrefetchScalarGridSpec(
            num_scalar_prefetch=0,
            grid=grid,
            in_specs=[
                x_spec,
                wf_spec,
                bf_spec,
                pl.BlockSpec(memory_space=pltpu.SMEM),   # beta scalar
            ],
            out_specs=out_spec,
        ),
        compiler_params=pltpu.CompilerParams(
            dimension_semantics=dims,
            vmem_limit_bytes=vmem_limit,
        ),
    )(x2d, wf, bf, beta2d)

    if Mp != M:
        out = out[:M]
    return out.reshape(B, S, D)


def swiglu(x, wg, bg, w, b, beta, *, compute_dtype=jnp.bfloat16, tm=None, tn=None):
    """Convenience one-shot wrapper (fuses weights per call — slow path).
    For repeated use, call fuse_swiglu_params once and reuse with swiglu_fused."""
    D = x.shape[-1]
    if tn is None:
        tn = plan_tn(D, compute_dtype if compute_dtype is not None else x.dtype, x.dtype)
    wf, bf = fuse_swiglu_params(wg, bg, w, b, tn=tn, compute_dtype=compute_dtype)
    return swiglu_fused(x, wf, bf, beta, tn=tn, tm=tm)


def swiglu_ref(x, wg, bg, w, b, beta):
    gate = x @ wg + bg
    lin = x @ w + b
    return gate * jax.nn.sigmoid(beta * gate) * lin


if __name__ == "__main__":
    # Shapes match the module's config: batch_size=10, context_window=16, d_model=512.
    # M = 160 rows -> tm is chosen as a divisor of M, so no padded rows.
    B, S, D = 10, 16, 512
    key = jax.random.PRNGKey(0)
    kx, kwg, kbg, kw, kb = jax.random.split(key, 5)

    x = jax.random.normal(kx, (B, S, D), dtype=jnp.float32)
    # Synthetic params mimicking nn.Linear init scale ~1/sqrt(D), stored [in, out].
    scale = 1.0 / jnp.sqrt(D)
    wg = jax.random.uniform(kwg, (D, D), jnp.float32, -scale, scale)
    bg = jax.random.uniform(kbg, (D,), jnp.float32, -scale, scale)
    w = jax.random.uniform(kw, (D, D), jnp.float32, -scale, scale)
    b = jax.random.uniform(kb, (D,), jnp.float32, -scale, scale)
    beta = jnp.ones((1,), jnp.float32)   # module sets beta = nn.Parameter(torch.ones(1))

    ref = swiglu_ref(x, wg, bg, w, b, beta[0])

    fwd = jax.jit(swiglu_fused, static_argnames=("tn", "tm", "out_dtype"))

    # f32 operand path (tight tolerance; only accumulation-order differences).
    tn_f32 = plan_tn(D, jnp.float32, x.dtype)
    wf32, bf32 = fuse_swiglu_params(wg, bg, w, b, tn=tn_f32, compute_dtype=jnp.float32)
    out_f32 = fwd(x, wf32, bf32, beta, tn=tn_f32)
    jax.block_until_ready(out_f32)
    assert jnp.allclose(out_f32, ref, atol=1e-3, rtol=1e-3), "f32 mismatch vs reference"

    # bf16 operand fast path (default on v6e/v7x; f32 accumulation). Fusion/cast
    # done once at param-prep time; the jitted apply reuses the fused weight.
    tn_bf16 = plan_tn(D, jnp.bfloat16, x.dtype)
    wf16, bf16b = fuse_swiglu_params(wg, bg, w, b, tn=tn_bf16, compute_dtype=jnp.bfloat16)
    out_bf16 = fwd(x, wf16, bf16b, beta, tn=tn_bf16)
    jax.block_until_ready(out_bf16)
    assert jnp.allclose(out_bf16, ref, atol=0.2, rtol=0.1), "bf16 mismatch vs reference"

    print("KERNEL_OK")
</pallas_src>

<mosaic_0001>
module attributes {stable_mosaic.version = 11 : i64} {
  func.func @swiglu_kernel(%arg0: i32, %arg1: i32, %arg2: memref<160x512xf32, #tpu.memory_space<vmem>>, %arg3: memref<512x1024xf32, #tpu.memory_space<vmem>>, %arg4: memref<1x1024xf32, #tpu.memory_space<vmem>>, %arg5: memref<1x1xf32, #tpu.memory_space<smem>>, %arg6: memref<160x512xf32, #tpu.memory_space<vmem>>) attributes {dimension_semantics = [#tpu.dimension_semantics<parallel>, #tpu.dimension_semantics<arbitrary>], iteration_bounds = array<i64: 1, 1>, scalar_prefetch = 0 : i64, scratch_operands = 0 : i64, tpu.core_type = #tpu.core_type<tc>, window_params = [{transform_indices = @transform_0, window_bounds = array<i64: 160, 512>}, {transform_indices = @transform_1, window_bounds = array<i64: 512, 1024>}, {transform_indices = @transform_2, window_bounds = array<i64: 1, 1024>}, {transform_indices = @transform_3, window_bounds = array<i64: 1, 1>}, {transform_indices = @transform_4, window_bounds = array<i64: 160, 512>}]} {
    %c0 = arith.constant 0 : index
    %c0_0 = arith.constant 0 : index
    %0 = vector.load %arg2[%c0, %c0_0] : memref<160x512xf32, #tpu.memory_space<vmem>>, vector<160x512xf32>
    %c0_1 = arith.constant 0 : index
    %c0_2 = arith.constant 0 : index
    %1 = vector.load %arg3[%c0_1, %c0_2] : memref<512x1024xf32, #tpu.memory_space<vmem>>, vector<512x1024xf32>
    %cst = arith.constant dense<0.000000e+00> : vector<160x1024xf32>
    %2 = tpu.matmul %0, %1, %cst {dimension_numbers = #tpu.dot_dimension_numbers<[1], [0], [0], [1], [0, 0, 1, 1], [], []>} : vector<160x512xf32>, vector<512x1024xf32>, vector<160x1024xf32> -> vector<160x1024xf32>
    %c0_3 = arith.constant 0 : index
    %c0_4 = arith.constant 0 : index
    %3 = vector.load %arg4[%c0_3, %c0_4] : memref<1x1024xf32, #tpu.memory_space<vmem>>, vector<1x1024xf32>
    %4 = vector.broadcast %3 : vector<1x1024xf32> to vector<160x1024xf32>
    %5 = arith.addf %2, %4 : vector<160x1024xf32>
    %6 = vector.extract_strided_slice %5 {offsets = [0, 0], sizes = [160, 512], strides = [1, 1]} : vector<160x1024xf32> to vector<160x512xf32>
    %7 = vector.extract_strided_slice %5 {offsets = [0, 512], sizes = [160, 512], strides = [1, 1]} : vector<160x1024xf32> to vector<160x512xf32>
    %c0_5 = arith.constant 0 : index
    %c0_6 = arith.constant 0 : index
    %8 = memref.load %arg5[%c0_5, %c0_6] : memref<1x1xf32, #tpu.memory_space<smem>>
    %9 = vector.broadcast %8 : f32 to vector<160x512xf32>
    %10 = arith.mulf %9, %6 : vector<160x512xf32>
    %11 = arith.negf %10 : vector<160x512xf32>
    %12 = math.exp %11 : vector<160x512xf32>
    %cst_7 = arith.constant 1.000000e+00 : f32
    %13 = vector.broadcast %cst_7 : f32 to vector<160x512xf32>
    %14 = arith.addf %13, %12 : vector<160x512xf32>
    %15 = arith.divf %13, %14 : vector<160x512xf32>
    %16 = arith.mulf %6, %15 : vector<160x512xf32>
    %17 = arith.mulf %16, %7 : vector<160x512xf32>
    %c0_8 = arith.constant 0 : index
    %c0_9 = arith.constant 0 : index
    %18 = vector.load %arg6[%c0_8, %c0_9] : memref<160x512xf32, #tpu.memory_space<vmem>>, vector<160x512xf32>
    tpu.vector_store %arg6[%c0_8, %c0_9], %17 {strides = array<i32>} : memref<160x512xf32, #tpu.memory_space<vmem>>, vector<160x512xf32>,
    return
  }
  func.func @transform_0(%arg0: i32, %arg1: i32) -> (i32, i32) {
    %c0_i32 = arith.constant 0 : i32
    %c0_i32_0 = arith.constant 0 : i32
    return %arg0, %c0_i32 : i32, i32
  }
  func.func @transform_1(%arg0: i32, %arg1: i32) -> (i32, i32) {
    %c0_i32 = arith.constant 0 : i32
    %c0_i32_0 = arith.constant 0 : i32
    return %c0_i32, %arg1 : i32, i32
  }
  func.func @transform_2(%arg0: i32, %arg1: i32) -> (i32, i32) {
    %c0_i32 = arith.constant 0 : i32
    %c0_i32_0 = arith.constant 0 : i32
    return %c0_i32, %arg1 : i32, i32
  }
  func.func @transform_3(%arg0: i32, %arg1: i32) -> (i32, i32) {
    %c0_i32 = arith.constant 0 : i32
    %c0_i32_0 = arith.constant 0 : i32
    %c0_i32_1 = arith.constant 0 : i32
    return %c0_i32, %c0_i32_0 : i32, i32
  }
  func.func @transform_4(%arg0: i32, %arg1: i32) -> (i32, i32) {
    %c0_i32 = arith.constant 0 : i32
    return %arg0, %arg1 : i32, i32
  }
}

</mosaic_0001>

<llo_original>
// kernel: swiglu_fused.1
$region0: #{swiglu_fused.1}
  #allocation0 [shape = 'u32[]', space=smem, size = 0x4, offset = 0x4, fixed_abs, tag = 'smem constant byte address 0x4 - core index']
  #allocation1 [shape = 'u32[144,128]{1,0:T(1,128)}', space=vmem, size = 0x12000, scoped, tag = 'internal scratch']
  #allocation2 [shape = 'f32[1,1]{1,0:T(1,128)S(6)}', space=smem, size = 0x200, scoped, tag = 'scoped memory for swiglu_fused.1']
  %s0 = inlined_call_operand.hbm [shape: f32[160,512], index: 0, kind: input, shape index: {}]
  %s1 = inlined_call_operand.hbm [shape: f32[512,1024], index: 1, kind: input, shape index: {}]
  %s2 = inlined_call_operand.hbm [shape: f32[1,1024], index: 2, kind: input, shape index: {}]
  %s3 = inlined_call_operand.<no memory space> [shape: f32[1,1], index: 3, kind: input, shape index: {}]
  %s4 = inlined_call_operand.hbm [shape: f32[160,512], index: 4, kind: output, shape index: {}]
  %s5 = sld [smem:[#allocation0]]
  $region38: #{swiglu_fused.1} parent=0
    _
  %s7 = ssub.s32 1, %s5
  %s8 = scalar_select 0, %s7, %s5
  %9 = sst [smem:[#allocation2]] %s3
  $region1: #{swiglu_fused.1} parent=0
    #allocation3 [shape = 'u8[327680]{0}', space=vmem, size = 0x50000, scoped, tag = 'input window, operand 0, single buffered']
    #allocation4 [shape = 's32[1]{0}', space=sflag, size = 0x4, scoped, tag = 'scoped memory for swiglu_fused.1']
    #allocation5 [shape = 's32[1]{0}', space=sflag, size = 0x4, scoped, tag = 'scoped memory for swiglu_fused.1']
    #allocation6 [shape = 'u8[2097152]{0}', space=vmem, size = 0x200000, scoped, tag = 'input window, operand 1, single buffered']
    #allocation7 [shape = 's32[1]{0}', space=sflag, size = 0x4, scoped, tag = 'scoped memory for swiglu_fused.1']
    #allocation8 [shape = 'u8[4096]{0}', space=vmem, size = 0x1000, scoped, tag = 'input window, operand 2, single buffered']
    #allocation9 [shape = 'u8[327680]{0}', space=vmem, size = 0x50000, scoped, tag = 'output window, operand 0, single buffered']
    %10 = vsyncpa [#allocation4], 0
    %11 = vsyncpa [#allocation7], 0
    %12 = vsyncpa [#allocation5], 0
    // Predicated region
    $region2: #{swiglu_fused.1} parent=1 // pred_check
      _
    $region3: #{swiglu_fused.1} parent=1 // pred_check_branch
      %14 = sbr.rel (0) target = $region5
    $region4: #{swiglu_fused.1} parent=1 // pred_region
      %s16 = ssub.s32 10240, 10240
      %17 = vsyncadd [#allocation4], %s16
      %s18 = sshll.u32 [#allocation3], 4
      %s19 = int_to_ptr.vmem [resolvable:$true] %s18
      %24 = dma.hbm_to_vmem [thread:$0]  %s0, 10240, %s19, [#allocation4], 512, 512, 32
    $region5: #{swiglu_fused.1} parent=1 // pred_fallthru
      _
    // Predicated region
    $region6: #{swiglu_fused.1} parent=1 // pred_check
      _
    $region7: #{swiglu_fused.1} parent=1 // pred_check_branch
      %26 = sbr.rel (0) target = $region9
    $region8: #{swiglu_fused.1} parent=1 // pred_region
      %s28 = ssub.s32 65536, 65536
      %29 = vsyncadd [#allocation7], %s28
      %s30 = sshll.u32 [#allocation6], 4
      %s31 = int_to_ptr.vmem [resolvable:$true] %s30
      %36 = dma.hbm_to_vmem [thread:$0]  %s1, 65536, %s31, [#allocation7], 1024, 1024, 64
    $region9: #{swiglu_fused.1} parent=1 // pred_fallthru
      _
    // Predicated region
    $region10: #{swiglu_fused.1} parent=1 // pred_check
      _
    $region11: #{swiglu_fused.1} parent=1 // pred_check_branch
      %38 = sbr.rel (0) target = $region13
    $region12: #{swiglu_fused.1} parent=1 // pred_region
      %s40 = ssub.s32 128, 128
      %41 = vsyncadd [#allocation7], %s40
      %s43 = sshll.u32 [#allocation8], 4
      %s44 = int_to_ptr.vmem [resolvable:$true] %s43
      %46 = dma.hbm_to_vmem [thread:$0]  %s2, 128, %s44, [#allocation7]
    $region13: #{swiglu_fused.1} parent=1 // pred_fallthru
      _
    // Predicated region
    $region14: #{swiglu_fused.1} parent=1 // pred_check
      _
    $region15: #{swiglu_fused.1} parent=1 // pred_check_branch
      %48 = sbr.rel (0) target = $region17
    $region16: #{swiglu_fused.1} parent=1 // pred_region
      _
    $region17: #{swiglu_fused.1} parent=1 // pred_fallthru
      _
    // Predicated region
    $region18: #{swiglu_fused.1} parent=1 // pred_check
      _
    $region19: #{swiglu_fused.1} parent=1 // pred_check_branch
      %50 = sbr.rel (0) target = $region21
    $region20: #{swiglu_fused.1} parent=1 // pred_region
      %51 = dma.done [#allocation4], 10240
    $region21: #{swiglu_fused.1} parent=1 // pred_fallthru
      _
    // Predicated region
    $region22: #{swiglu_fused.1} parent=1 // pred_check
      _
    $region23: #{swiglu_fused.1} parent=1 // pred_check_branch
      %53 = sbr.rel (0) target = $region25
    $region24: #{swiglu_fused.1} parent=1 // pred_region
      %54 = dma.done [#allocation7], 65536
    $region25: #{swiglu_fused.1} parent=1 // pred_fallthru
      _
    // Predicated region
    $region26: #{swiglu_fused.1} parent=1 // pred_check
      _
    $region27: #{swiglu_fused.1} parent=1 // pred_check_branch
      %56 = sbr.rel (0) target = $region29
    $region28: #{swiglu_fused.1} parent=1 // pred_region
      %57 = dma.done [#allocation7], 128
    $region29: #{swiglu_fused.1} parent=1 // pred_fallthru
      _
    %v58 = vld [vmem:[#allocation3] sm:$0xff]
    %v59 = vld [vmem:[#allocation3 + $0x8] sm:$0xff]
    %v60 = vld [vmem:[#allocation3 + $0x10] sm:$0xff]
    %v61 = vld [vmem:[#allocation3 + $0x18] sm:$0xff]
    %v62 = vld [vmem:[#allocation3 + $0x20] sm:$0xff]
    %v63 = vld [vmem:[#allocation3 + $0x28] sm:$0xff]
    %v64 = vld [vmem:[#allocation3 + $0x30] sm:$0xff]
    %v65 = vld [vmem:[#allocation3 + $0x38] sm:$0xff]
    %v66 = vld [vmem:[#allocation3 + $0x40] sm:$0xff]
    %v67 = vld [vmem:[#allocation3 + $0x48] sm:$0xff]
    %v68 = vld [vmem:[#allocation3 + $0x50] sm:$0xff]
    %v69 = vld [vmem:[#allocation3 + $0x58] sm:$0xff]
    %v70 = vld [vmem:[#allocation3 + $0x60] sm:$0xff]
    %v71 = vld [vmem:[#allocation3 + $0x68] sm:$0xff]
    %v72 = vld [vmem:[#allocation3 + $0x70] sm:$0xff]
    %v73 = vld [vmem:[#allocation3 + $0x78] sm:$0xff]
    %v74 = vld [vmem:[#allocation3 + $0x80] sm:$0xff]
    %v75 = vld [vmem:[#allocation3 + $0x88] sm:$0xff]
    %v76 = vld [vmem:[#allocation3 + $0x90] sm:$0xff]
    %v77 = vld [vmem:[#allocation3 + $0x98] sm:$0xff]
    %v78 = vld [vmem:[#allocation3 + $0xa0] sm:$0xff]
    %v79 = vld [vmem:[#allocation3 + $0xa8] sm:$0xff]
    %v80 = vld [vmem:[#allocation3 + $0xb0] sm:$0xff]
    %v81 = vld [vmem:[#allocation3 + $0xb8] sm:$0xff]
    %v82 = vld [vmem:[#allocation3 + $0xc0] sm:$0xff]
    %v83 = vld [vmem:[#allocation3 + $0xc8] sm:$0xff]
    %v84 = vld [vmem:[#allocation3 + $0xd0] sm:$0xff]
    %v85 = vld [vmem:[#allocation3 + $0xd8] sm:$0xff]
    %v86 = vld [vmem:[#allocation3 + $0xe0] sm:$0xff]
    %v87 = vld [vmem:[#allocation3 + $0xe8] sm:$0xff]
    %v88 = vld [vmem:[#allocation3 + $0xf0] sm:$0xff]
    %v89 = vld [vmem:[#allocation3 + $0xf8] sm:$0xff]
    %v90 = vld [vmem:[#allocation3 + $0x100] sm:$0xff]
    %v91 = vld [vmem:[#allocation3 + $0x108] sm:$0xff]
    %v92 = vld [vmem:[#allocation3 + $0x110] sm:$0xff]
    %v93 = vld [vmem:[#allocation3 + $0x118] sm:$0xff]
    %v94 = vld [vmem:[#allocation3 + $0x120] sm:$0xff]
    %v95 = vld [vmem:[#allocation3 + $0x128] sm:$0xff]
    %v96 = vld [vmem:[#allocation3 + $0x130] sm:$0xff]
    %v97 = vld [vmem:[#allocation3 + $0x138] sm:$0xff]
    %v98 = vld [vmem:[#allocation3 + $0x140] sm:$0xff]
    %v99 = vld [vmem:[#allocation3 + $0x148] sm:$0xff]
    %v100 = vld [vmem:[#allocation3 + $0x150] sm:$0xff]
    %v101 = vld [vmem:[#allocation3 + $0x158] sm:$0xff]
    %v102 = vld [vmem:[#allocation3 + $0x160] sm:$0xff]
    %v103 = vld [vmem:[#allocation3 + $0x168] sm:$0xff]
    %v104 = vld [vmem:[#allocation3 + $0x170] sm:$0xff]
    %v105 = vld [vmem:[#allocation3 + $0x178] sm:$0xff]
    %v106 = vld [vmem:[#allocation3 + $0x180] sm:$0xff]
    %v107 = vld [vmem:[#allocation3 + $0x188] sm:$0xff]
    %v108 = vld [vmem:[#allocation3 + $0x190] sm:$0xff]
    %v109 = vld [vmem:[#allocation3 + $0x198] sm:$0xff]
    %v110 = vld [vmem:[#allocation3 + $0x1a0] sm:$0xff]
    %v111 = vld [vmem:[#allocation3 + $0x1a8] sm:$0xff]
    %v112 = vld [vmem:[#allocation3 + $0x1b0] sm:$0xff]
    %v113 = vld [vmem:[#allocation3 + $0x1b8] sm:$0xff]
    %v114 = vld [vmem:[#allocation3 + $0x1c0] sm:$0xff]
    %v115 = vld [vmem:[#allocation3 + $0x1c8] sm:$0xff]
    %v116 = vld [vmem:[#allocation3 + $0x1d0] sm:$0xff]
    %v117 = vld [vmem:[#allocation3 + $0x1d8] sm:$0xff]
    %v118 = vld [vmem:[#allocation3 + $0x1e0] sm:$0xff]
    %v119 = vld [vmem:[#allocation3 + $0x1e8] sm:$0xff]
    %v120 = vld [vmem:[#allocation3 + $0x1f0] sm:$0xff]
    %v121 = vld [vmem:[#allocation3 + $0x1f8] sm:$0xff]
    %v122 = vld [vmem:[#allocation3 + $0x200] sm:$0xff]
    %v123 = vld [vmem:[#allocation3 + $0x208] sm:$0xff]
    %v124 = vld [vmem:[#allocation3 + $0x210] sm:$0xff]
    %v125 = vld [vmem:[#allocation3 + $0x218] sm:$0xff]
    %v126 = vld [vmem:[#allocation3 + $0x220] sm:$0xff]
    %v127 = vld [vmem:[#allocation3 + $0x228] sm:$0xff]
    %v128 = vld [vmem:[#allocation3 + $0x230] sm:$0xff]
    %v129 = vld [vmem:[#allocation3 + $0x238] sm:$0xff]
    %v130 = vld [vmem:[#allocation3 + $0x240] sm:$0xff]
    %v131 = vld [vmem:[#allocation3 + $0x248] sm:$0xff]
    %v132 = vld [vmem:[#allocation3 + $0x250] sm:$0xff]
    %v133 = vld [vmem:[#allocation3 + $0x258] sm:$0xff]
    %v134 = vld [vmem:[#allocation3 + $0x260] sm:$0xff]
    %v135 = vld [vmem:[#allocation3 + $0x268] sm:$0xff]
    %v136 = vld [vmem:[#allocation3 + $0x270] sm:$0xff]
    %v137 = vld [vmem:[#allocation3 + $0x278] sm:$0xff]
    %v138 = vld [vmem:[#allocation6] sm:$0xff]
    %v139 = vld [vmem:[#allocation6 + $0x8] sm:$0xff]
    %v140 = vld [vmem:[#allocation6 + $0x10] sm:$0xff]
    %v141 = vld [vmem:[#allocation6 + $0x18] sm:$0xff]
    %v142 = vld [vmem:[#allocation6 + $0x20] sm:$0xff]
    %v143 = vld [vmem:[#allocation6 + $0x28] sm:$0xff]
    %v144 = vld [vmem:[#allocation6 + $0x30] sm:$0xff]
    %v145 = vld [vmem:[#allocation6 + $0x38] sm:$0xff]
    %v146 = vld [vmem:[#allocation6 + $0x40] sm:$0xff]
    %v147 = vld [vmem:[#allocation6 + $0x48] sm:$0xff]
    %v148 = vld [vmem:[#allocation6 + $0x50] sm:$0xff]
    %v149 = vld [vmem:[#allocation6 + $0x58] sm:$0xff]
    %v150 = vld [vmem:[#allocation6 + $0x60] sm:$0xff]
    %v151 = vld [vmem:[#allocation6 + $0x68] sm:$0xff]
    %v152 = vld [vmem:[#allocation6 + $0x70] sm:$0xff]
    %v153 = vld [vmem:[#allocation6 + $0x78] sm:$0xff]
    %v154 = vld [vmem:[#allocation6 + $0x80] sm:$0xff]
    %v155 = vld [vmem:[#allocation6 + $0x88] sm:$0xff]
    %v156 = vld [vmem:[#allocation6 + $0x90] sm:$0xff]
    %v157 = vld [vmem:[#allocation6 + $0x98] sm:$0xff]
    %v158 = vld [vmem:[#allocation6 + $0xa0] sm:$0xff]
    %v159 = vld [vmem:[#allocation6 + $0xa8] sm:$0xff]
    %v160 = vld [vmem:[#allocation6 + $0xb0] sm:$0xff]
    %v161 = vld [vmem:[#allocation6 + $0xb8] sm:$0xff]
    %v162 = vld [vmem:[#allocation6 + $0xc0] sm:$0xff]
    %v163 = vld [vmem:[#allocation6 + $0xc8] sm:$0xff]
    %v164 = vld [vmem:[#allocation6 + $0xd0] sm:$0xff]
    %v165 = vld [vmem:[#allocation6 + $0xd8] sm:$0xff]
    %v166 = vld [vmem:[#allocation6 + $0xe0] sm:$0xff]
    %v167 = vld [vmem:[#allocation6 + $0xe8] sm:$0xff]
    %v168 = vld [vmem:[#allocation6 + $0xf0] sm:$0xff]
    %v169 = vld [vmem:[#allocation6 + $0xf8] sm:$0xff]
    %v170 = vld [vmem:[#allocation6 + $0x100] sm:$0xff]
    %v171 = vld [vmem:[#allocation6 + $0x108] sm:$0xff]
    %v172 = vld [vmem:[#allocation6 + $0x110] sm:$0xff]
    %v173 = vld [vmem:[#allocation6 + $0x118] sm:$0xff]
    %v174 = vld [vmem:[#allocation6 + $0x120] sm:$0xff]
    %v175 = vld [vmem:[#allocation6 + $0x128] sm:$0xff]
    %v176 = vld [vmem:[#allocation6 + $0x130] sm:$0xff]
    %v177 = vld [vmem:[#allocation6 + $0x138] sm:$0xff]
    %v178 = vld [vmem:[#allocation6 + $0x140] sm:$0xff]
    %v179 = vld [vmem:[#allocation6 + $0x148] sm:$0xff]
    %v180 = vld [vmem:[#allocation6 + $0x150] sm:$0xff]
    %v181 = vld [vmem:[#allocation6 + $0x158] sm:$0xff]
    %v182 = vld [vmem:[#allocation6 + $0x160] sm:$0xff]
    %v183 = vld [vmem:[#allocation6 + $0x168] sm:$0xff]
    %v184 = vld [vmem:[#allocation6 + $0x170] sm:$0xff]
    %v185 = vld [vmem:[#allocation6 + $0x178] sm:$0xff]
    %v186 = vld [vmem:[#allocation6 + $0x180] sm:$0xff]
    %v187 = vld [vmem:[#allocation6 + $0x188] sm:$0xff]
    %v188 = vld [vmem:[#allocation6 + $0x190] sm:$0xff]
    %v189 = vld [vmem:[#allocation6 + $0x198] sm:$0xff]
    %v190 = vld [vmem:[#allocation6 + $0x1a0] sm:$0xff]
    %v191 = vld [vmem:[#allocation6 + $0x1a8] sm:$0xff]
    %v192 = vld [vmem:[#allocation6 + $0x1b0] sm:$0xff]
    %v193 = vld [vmem:[#allocation6 + $0x1b8] sm:$0xff]
    %v194 = vld [vmem:[#allocation6 + $0x1c0] sm:$0xff]
    %v195 = vld [vmem:[#allocation6 + $0x1c8] sm:$0xff]
    %v196 = vld [vmem:[#allocation6 + $0x1d0] sm:$0xff]
    %v197 = vld [vmem:[#allocation6 + $0x1d8] sm:$0xff]
    %v198 = vld [vmem:[#allocation6 + $0x1e0] sm:$0xff]
    %v199 = vld [vmem:[#allocation6 + $0x1e8] sm:$0xff]
    %v200 = vld [vmem:[#allocation6 + $0x1f0] sm:$0xff]
    %v201 = vld [vmem:[#allocation6 + $0x1f8] sm:$0xff]
    %v202 = vld [vmem:[#allocation6 + $0x200] sm:$0xff]
    %v203 = vld [vmem:[#allocation6 + $0x208] sm:$0xff]
    %v204 = vld [vmem:[#allocation6 + $0x210] sm:$0xff]
    %v205 = vld [vmem:[#allocation6 + $0x218] sm:$0xff]
    %v206 = vld [vmem:[#allocation6 + $0x220] sm:$0xff]
    %v207 = vld [vmem:[#allocation6 + $0x228] sm:$0xff]
    %v208 = vld [vmem:[#allocation6 + $0x230] sm:$0xff]
    %v209 = vld [vmem:[#allocation6 + $0x238] sm:$0xff]
    %v210 = vld [vmem:[#allocation6 + $0x240] sm:$0xff]
    %v211 = vld [vmem:[#allocation6 + $0x248] sm:$0xff]
    %v212 = vld [vmem:[#allocation6 + $0x250] sm:$0xff]
    %v213 = vld [vmem:[#allocation6 + $0x258] sm:$0xff]
    %v214 = vld [vmem:[#allocation6 + $0x260] sm:$0xff]
    %v215 = vld [vmem:[#allocation6 + $0x268] sm:$0xff]
    %v216 = vld [vmem:[#allocation6 + $0x270] sm:$0xff]
    %v217 = vld [vmem:[#allocation6 + $0x278] sm:$0xff]
    %v218 = vld [vmem:[#allocation6 + $0x280] sm:$0xff]
    %v219 = vld [vmem:[#allocation6 + $0x288] sm:$0xff]
    %v220 = vld [vmem:[#allocation6 + $0x290] sm:$0xff]
    %v221 = vld [vmem:[#allocation6 + $0x298] sm:$0xff]
    %v222 = vld [vmem:[#allocation6 + $0x2a0] sm:$0xff]
    %v223 = vld [vmem:[#allocation6 + $0x2a8] sm:$0xff]
    %v224 = vld [vmem:[#allocation6 + $0x2b0] sm:$0xff]
    %v225 = vld [vmem:[#allocation6 + $0x2b8] sm:$0xff]
    %v226 = vld [vmem:[#allocation6 + $0x2c0] sm:$0xff]
    %v227 = vld [vmem:[#allocation6 + $0x2c8] sm:$0xff]
    %v228 = vld [vmem:[#allocation6 + $0x2d0] sm:$0xff]
    %v229 = vld [vmem:[#allocation6 + $0x2d8] sm:$0xff]
    %v230 = vld [vmem:[#allocation6 + $0x2e0] sm:$0xff]
    %v231 = vld [vmem:[#allocation6 + $0x2e8] sm:$0xff]
    %v232 = vld [vmem:[#allocation6 + $0x2f0] sm:$0xff]
    %v233 = vld [vmem:[#allocation6 + $0x2f8] sm:$0xff]
    %v234 = vld [vmem:[#allocation6 + $0x300] sm:$0xff]
    %v235 = vld [vmem:[#allocation6 + $0x308] sm:$0xff]
    %v236 = vld [vmem:[#allocation6 + $0x310] sm:$0xff]
    %v237 = vld [vmem:[#allocation6 + $0x318] sm:$0xff]
    %v238 = vld [vmem:[#allocation6 + $0x320] sm:$0xff]
    %v239 = vld [vmem:[#allocation6 + $0x328] sm:$0xff]
    %v240 = vld [vmem:[#allocation6 + $0x330] sm:$0xff]
    %v241 = vld [vmem:[#allocation6 + $0x338] sm:$0xff]
    %v242 = vld [vmem:[#allocation6 + $0x340] sm:$0xff]
    %v243 = vld [vmem:[#allocation6 + $0x348] sm:$0xff]
    %v244 = vld [vmem:[#allocation6 + $0x350] sm:$0xff]
    %v245 = vld [vmem:[#allocation6 + $0x358] sm:$0xff]
    %v246 = vld [vmem:[#allocation6 + $0x360] sm:$0xff]
    %v247 = vld [vmem:[#allocation6 + $0x368] sm:$0xff]
    %v248 = vld [vmem:[#allocation6 + $0x370] sm:$0xff]
    %v249 = vld [vmem:[#allocation6 + $0x378] sm:$0xff]
    %v250 = vld [vmem:[#allocation6 + $0x380] sm:$0xff]
    %v251 = vld [vmem:[#allocation6 + $0x388] sm:$0xff]
    %v252 = vld [vmem:[#allocation6 + $0x390] sm:$0xff]
    %v253 = vld [vmem:[#allocation6 + $0x398] sm:$0xff]
    %v254 = vld [vmem:[#allocation6 + $0x3a0] sm:$0xff]
    %v255 = vld [vmem:[#allocation6 + $0x3a8] sm:$0xff]
    %v256 = vld [vmem:[#allocation6 + $0x3b0] sm:$0xff]
    %v257 = vld [vmem:[#allocation6 + $0x3b8] sm:$0xff]
    %v258 = vld [vmem:[#allocation6 + $0x3c0] sm:$0xff]
    %v259 = vld [vmem:[#allocation6 + $0x3c8] sm:$0xff]
    %v260 = vld [vmem:[#allocation6 + $0x3d0] sm:$0xff]
    %v261 = vld [vmem:[#allocation6 + $0x3d8] sm:$0xff]
    %v262 = vld [vmem:[#allocation6 + $0x3e0] sm:$0xff]
    %v263 = vld [vmem:[#allocation6 + $0x3e8] sm:$0xff]
    %v264 = vld [vmem:[#allocation6 + $0x3f0] sm:$0xff]
    %v265 = vld [vmem:[#allocation6 + $0x3f8] sm:$0xff]
    %v266 = vld [vmem:[#allocation6 + $0x400] sm:$0xff]
    %v267 = vld [vmem:[#allocation6 + $0x408] sm:$0xff]
    %v268 = vld [vmem:[#allocation6 + $0x410] sm:$0xff]
    %v269 = vld [vmem:[#allocation6 + $0x418] sm:$0xff]
    %v270 = vld [vmem:[#allocation6 + $0x420] sm:$0xff]
    %v271 = vld [vmem:[#allocation6 + $0x428] sm:$0xff]
    %v272 = vld [vmem:[#allocation6 + $0x430] sm:$0xff]
    %v273 = vld [vmem:[#allocation6 + $0x438] sm:$0xff]
    %v274 = vld [vmem:[#allocation6 + $0x440] sm:$0xff]
    %v275 = vld [vmem:[#allocation6 + $0x448] sm:$0xff]
    %v276 = vld [vmem:[#allocation6 + $0x450] sm:$0xff]
    %v277 = vld [vmem:[#allocation6 + $0x458] sm:$0xff]
    %v278 = vld [vmem:[#allocation6 + $0x460] sm:$0xff]
    %v279 = vld [vmem:[#allocation6 + $0x468] sm:$0xff]
    %v280 = vld [vmem:[#allocation6 + $0x470] sm:$0xff]
    %v281 = vld [vmem:[#allocation6 + $0x478] sm:$0xff]
    %v282 = vld [vmem:[#allocation6 + $0x480] sm:$0xff]
    %v283 = vld [vmem:[#allocation6 + $0x488] sm:$0xff]
    %v284 = vld [vmem:[#allocation6 + $0x490] sm:$0xff]
    %v285 = vld [vmem:[#allocation6 + $0x498] sm:$0xff]
    %v286 = vld [vmem:[#allocation6 + $0x4a0] sm:$0xff]
    %v287 = vld [vmem:[#allocation6 + $0x4a8] sm:$0xff]
    %v288 = vld [vmem:[#allocation6 + $0x4b0] sm:$0xff]
    %v289 = vld [vmem:[#allocation6 + $0x4b8] sm:$0xff]
    %v290 = vld [vmem:[#allocation6 + $0x4c0] sm:$0xff]
    %v291 = vld [vmem:[#allocation6 + $0x4c8] sm:$0xff]
    %v292 = vld [vmem:[#allocation6 + $0x4d0] sm:$0xff]
    %v293 = vld [vmem:[#allocation6 + $0x4d8] sm:$0xff]
    %v294 = vld [vmem:[#allocation6 + $0x4e0] sm:$0xff]
    %v295 = vld [vmem:[#allocation6 + $0x4e8] sm:$0xff]
    %v296 = vld [vmem:[#allocation6 + $0x4f0] sm:$0xff]
    %v297 = vld [vmem:[#allocation6 + $0x4f8] sm:$0xff]
    %v298 = vld [vmem:[#allocation6 + $0x500] sm:$0xff]
    %v299 = vld [vmem:[#allocation6 + $0x508] sm:$0xff]
    %v300 = vld [vmem:[#allocation6 + $0x510] sm:$0xff]
    %v301 = vld [vmem:[#allocation6 + $0x518] sm:$0xff]
    %v302 = vld [vmem:[#allocation6 + $0x520] sm:$0xff]
    %v303 = vld [vmem:[#allocation6 + $0x528] sm:$0xff]
    %v304 = vld [vmem:[#allocation6 + $0x530] sm:$0xff]
    %v305 = vld [vmem:[#allocation6 + $0x538] sm:$0xff]
    %v306 = vld [vmem:[#allocation6 + $0x540] sm:$0xff]
    %v307 = vld [vmem:[#allocation6 + $0x548] sm:$0xff]
    %v308 = vld [vmem:[#allocation6 + $0x550] sm:$0xff]
    %v309 = vld [vmem:[#allocation6 + $0x558] sm:$0xff]
    %v310 = vld [vmem:[#allocation6 + $0x560] sm:$0xff]
    %v311 = vld [vmem:[#allocation6 + $0x568] sm:$0xff]
    %v312 = vld [vmem:[#allocation6 + $0x570] sm:$0xff]
    %v313 = vld [vmem:[#allocation6 + $0x578] sm:$0xff]
    %v314 = vld [vmem:[#allocation6 + $0x580] sm:$0xff]
    %v315 = vld [vmem:[#allocation6 + $0x588] sm:$0xff]
    %v316 = vld [vmem:[#allocation6 + $0x590] sm:$0xff]
    %v317 = vld [vmem:[#allocation6 + $0x598] sm:$0xff]
    %v318 = vld [vmem:[#allocation6 + $0x5a0] sm:$0xff]
    %v319 = vld [vmem:[#allocation6 + $0x5a8] sm:$0xff]
    %v320 = vld [vmem:[#allocation6 + $0x5b0] sm:$0xff]
    %v321 = vld [vmem:[#allocation6 + $0x5b8] sm:$0xff]
    %v322 = vld [vmem:[#allocation6 + $0x5c0] sm:$0xff]
    %v323 = vld [vmem:[#allocation6 + $0x5c8] sm:$0xff]
    %v324 = vld [vmem:[#allocation6 + $0x5d0] sm:$0xff]
    %v325 = vld [vmem:[#allocation6 + $0x5d8] sm:$0xff]
    %v326 = vld [vmem:[#allocation6 + $0x5e0] sm:$0xff]
    %v327 = vld [vmem:[#allocation6 + $0x5e8] sm:$0xff]
    %v328 = vld [vmem:[#allocation6 + $0x5f0] sm:$0xff]
    %v329 = vld [vmem:[#allocation6 + $0x5f8] sm:$0xff]
    %v330 = vld [vmem:[#allocation6 + $0x600] sm:$0xff]
    %v331 = vld [vmem:[#allocation6 + $0x608] sm:$0xff]
    %v332 = vld [vmem:[#allocation6 + $0x610] sm:$0xff]
    %v333 = vld [vmem:[#allocation6 + $0x618] sm:$0xff]
    %v334 = vld [vmem:[#allocation6 + $0x620] sm:$0xff]
    %v335 = vld [vmem:[#allocation6 + $0x628] sm:$0xff]
    %v336 = vld [vmem:[#allocation6 + $0x630] sm:$0xff]
    %v337 = vld [vmem:[#allocation6 + $0x638] sm:$0xff]
    %v338 = vld [vmem:[#allocation6 + $0x640] sm:$0xff]
    %v339 = vld [vmem:[#allocation6 + $0x648] sm:$0xff]
    %v340 = vld [vmem:[#allocation6 + $0x650] sm:$0xff]
    %v341 = vld [vmem:[#allocation6 + $0x658] sm:$0xff]
    %v342 = vld [vmem:[#allocation6 + $0x660] sm:$0xff]
    %v343 = vld [vmem:[#allocation6 + $0x668] sm:$0xff]
    %v344 = vld [vmem:[#allocation6 + $0x670] sm:$0xff]
    %v345 = vld [vmem:[#allocation6 + $0x678] sm:$0xff]
    %v346 = vld [vmem:[#allocation6 + $0x680] sm:$0xff]
    %v347 = vld [vmem:[#allocation6 + $0x688] sm:$0xff]
    %v348 = vld [vmem:[#allocation6 + $0x690] sm:$0xff]
    %v349 = vld [vmem:[#allocation6 + $0x698] sm:$0xff]
    %v350 = vld [vmem:[#allocation6 + $0x6a0] sm:$0xff]
    %v351 = vld [vmem:[#allocation6 + $0x6a8] sm:$0xff]
    %v352 = vld [vmem:[#allocation6 + $0x6b0] sm:$0xff]
    %v353 = vld [vmem:[#allocation6 + $0x6b8] sm:$0xff]
    %v354 = vld [vmem:[#allocation6 + $0x6c0] sm:$0xff]
    %v355 = vld [vmem:[#allocation6 + $0x6c8] sm:$0xff]
    %v356 = vld [vmem:[#allocation6 + $0x6d0] sm:$0xff]
    %v357 = vld [vmem:[#allocation6 + $0x6d8] sm:$0xff]
    %v358 = vld [vmem:[#allocation6 + $0x6e0] sm:$0xff]
    %v359 = vld [vmem:[#allocation6 + $0x6e8] sm:$0xff]
    %v360 = vld [vmem:[#allocation6 + $0x6f0] sm:$0xff]
    %v361 = vld [vmem:[#allocation6 + $0x6f8] sm:$0xff]
    %v362 = vld [vmem:[#allocation6 + $0x700] sm:$0xff]
    %v363 = vld [vmem:[#allocation6 + $0x708] sm:$0xff]
    %v364 = vld [vmem:[#allocation6 + $0x710] sm:$0xff]
    %v365 = vld [vmem:[#allocation6 + $0x718] sm:$0xff]
    %v366 = vld [vmem:[#allocation6 + $0x720] sm:$0xff]
    %v367 = vld [vmem:[#allocation6 + $0x728] sm:$0xff]
    %v368 = vld [vmem:[#allocation6 + $0x730] sm:$0xff]
    %v369 = vld [vmem:[#allocation6 + $0x738] sm:$0xff]
    %v370 = vld [vmem:[#allocation6 + $0x740] sm:$0xff]
    %v371 = vld [vmem:[#allocation6 + $0x748] sm:$0xff]
    %v372 = vld [vmem:[#allocation6 + $0x750] sm:$0xff]
    %v373 = vld [vmem:[#allocation6 + $0x758] sm:$0xff]
    %v374 = vld [vmem:[#allocation6 + $0x760] sm:$0xff]
    %v375 = vld [vmem:[#allocation6 + $0x768] sm:$0xff]
    %v376 = vld [vmem:[#allocation6 + $0x770] sm:$0xff]
    %v377 = vld [vmem:[#allocation6 + $0x778] sm:$0xff]
    %v378 = vld [vmem:[#allocation6 + $0x780] sm:$0xff]
    %v379 = vld [vmem:[#allocation6 + $0x788] sm:$0xff]
    %v380 = vld [vmem:[#allocation6 + $0x790] sm:$0xff]
    %v381 = vld [vmem:[#allocation6 + $0x798] sm:$0xff]
    %v382 = vld [vmem:[#allocation6 + $0x7a0] sm:$0xff]
    %v383 = vld [vmem:[#allocation6 + $0x7a8] sm:$0xff]
    %v384 = vld [vmem:[#allocation6 + $0x7b0] sm:$0xff]
    %v385 = vld [vmem:[#allocation6 + $0x7b8] sm:$0xff]
    %v386 = vld [vmem:[#allocation6 + $0x7c0] sm:$0xff]
    %v387 = vld [vmem:[#allocation6 + $0x7c8] sm:$0xff]
    %v388 = vld [vmem:[#allocation6 + $0x7d0] sm:$0xff]
    %v389 = vld [vmem:[#allocation6 + $0x7d8] sm:$0xff]
    %v390 = vld [vmem:[#allocation6 + $0x7e0] sm:$0xff]
    %v391 = vld [vmem:[#allocation6 + $0x7e8] sm:$0xff]
    %v392 = vld [vmem:[#allocation6 + $0x7f0] sm:$0xff]
    %v393 = vld [vmem:[#allocation6 + $0x7f8] sm:$0xff]
    %v394 = vld [vmem:[#allocation6 + $0x800] sm:$0xff]
    %v395 = vld [vmem:[#allocation6 + $0x808] sm:$0xff]
    %v396 = vld [vmem:[#allocation6 + $0x810] sm:$0xff]
    %v397 = vld [vmem:[#allocation6 + $0x818] sm:$0xff]
    %v398 = vld [vmem:[#allocation6 + $0x820] sm:$0xff]
    %v399 = vld [vmem:[#allocation6 + $0x828] sm:$0xff]
    %v400 = vld [vmem:[#allocation6 + $0x830] sm:$0xff]
    %v401 = vld [vmem:[#allocation6 + $0x838] sm:$0xff]
    %v402 = vld [vmem:[#allocation6 + $0x840] sm:$0xff]
    %v403 = vld [vmem:[#allocation6 + $0x848] sm:$0xff]
    %v404 = vld [vmem:[#allocation6 + $0x850] sm:$0xff]
    %v405 = vld [vmem:[#allocation6 + $0x858] sm:$0xff]
    %v406 = vld [vmem:[#allocation6 + $0x860] sm:$0xff]
    %v407 = vld [vmem:[#allocation6 + $0x868] sm:$0xff]
    %v408 = vld [vmem:[#allocation6 + $0x870] sm:$0xff]
    %v409 = vld [vmem:[#allocation6 + $0x878] sm:$0xff]
    %v410 = vld [vmem:[#allocation6 + $0x880] sm:$0xff]
    %v411 = vld [vmem:[#allocation6 + $0x888] sm:$0xff]
    %v412 = vld [vmem:[#allocation6 + $0x890] sm:$0xff]
    %v413 = vld [vmem:[#allocation6 + $0x898] sm:$0xff]
    %v414 = vld [vmem:[#allocation6 + $0x8a0] sm:$0xff]
    %v415 = vld [vmem:[#allocation6 + $0x8a8] sm:$0xff]
    %v416 = vld [vmem:[#allocation6 + $0x8b0] sm:$0xff]
    %v417 = vld [vmem:[#allocation6 + $0x8b8] sm:$0xff]
    %v418 = vld [vmem:[#allocation6 + $0x8c0] sm:$0xff]
    %v419 = vld [vmem:[#allocation6 + $0x8c8] sm:$0xff]
    %v420 = vld [vmem:[#allocation6 + $0x8d0] sm:$0xff]
    %v421 = vld [vmem:[#allocation6 + $0x8d8] sm:$0xff]
    %v422 = vld [vmem:[#allocation6 + $0x8e0] sm:$0xff]
    %v423 = vld [vmem:[#allocation6 + $0x8e8] sm:$0xff]
    %v424 = vld [vmem:[#allocation6 + $0x8f0] sm:$0xff]
    %v425 = vld [vmem:[#allocation6 + $0x8f8] sm:$0xff]
    %v426 = vld [vmem:[#allocation6 + $0x900] sm:$0xff]
    %v427 = vld [vmem:[#allocation6 + $0x908] sm:$0xff]
    %v428 = vld [vmem:[#allocation6 + $0x910] sm:$0xff]
    %v429 = vld [vmem:[#allocation6 + $0x918] sm:$0xff]
    %v430 = vld [vmem:[#allocation6 + $0x920] sm:$0xff]
    %v431 = vld [vmem:[#allocation6 + $0x928] sm:$0xff]
    %v432 = vld [vmem:[#allocation6 + $0x930] sm:$0xff]
    %v433 = vld [vmem:[#allocation6 + $0x938] sm:$0xff]
    %v434 = vld [vmem:[#allocation6 + $0x940] sm:$0xff]
    %v435 = vld [vmem:[#allocation6 + $0x948] sm:$0xff]
    %v436 = vld [vmem:[#allocation6 + $0x950] sm:$0xff]
    %v437 = vld [vmem:[#allocation6 + $0x958] sm:$0xff]
    %v438 = vld [vmem:[#allocation6 + $0x960] sm:$0xff]
    %v439 = vld [vmem:[#allocation6 + $0x968] sm:$0xff]
    %v440 = vld [vmem:[#allocation6 + $0x970] sm:$0xff]
    %v441 = vld [vmem:[#allocation6 + $0x978] sm:$0xff]
    %v442 = vld [vmem:[#allocation6 + $0x980] sm:$0xff]
    %v443 = vld [vmem:[#allocation6 + $0x988] sm:$0xff]
    %v444 = vld [vmem:[#allocation6 + $0x990] sm:$0xff]
    %v445 = vld [vmem:[#allocation6 + $0x998] sm:$0xff]
    %v446 = vld [vmem:[#allocation6 + $0x9a0] sm:$0xff]
    %v447 = vld [vmem:[#allocation6 + $0x9a8] sm:$0xff]
    %v448 = vld [vmem:[#allocation6 + $0x9b0] sm:$0xff]
    %v449 = vld [vmem:[#allocation6 + $0x9b8] sm:$0xff]
    %v450 = vld [vmem:[#allocation6 + $0x9c0] sm:$0xff]
    %v451 = vld [vmem:[#allocation6 + $0x9c8] sm:$0xff]
    %v452 = vld [vmem:[#allocation6 + $0x9d0] sm:$0xff]
    %v453 = vld [vmem:[#allocation6 + $0x9d8] sm:$0xff]
    %v454 = vld [vmem:[#allocation6 + $0x9e0] sm:$0xff]
    %v455 = vld [vmem:[#allocation6 + $0x9e8] sm:$0xff]
    %v456 = vld [vmem:[#allocation6 + $0x9f0] sm:$0xff]
    %v457 = vld [vmem:[#allocation6 + $0x9f8] sm:$0xff]
    %v458 = vld [vmem:[#allocation6 + $0xa00] sm:$0xff]
    %v459 = vld [vmem:[#allocation6 + $0xa08] sm:$0xff]
    %v460 = vld [vmem:[#allocation6 + $0xa10] sm:$0xff]
    %v461 = vld [vmem:[#allocation6 + $0xa18] sm:$0xff]
    %v462 = vld [vmem:[#allocation6 + $0xa20] sm:$0xff]
    %v463 = vld [vmem:[#allocation6 + $0xa28] sm:$0xff]
    %v464 = vld [vmem:[#allocation6 + $0xa30] sm:$0xff]
    %v465 = vld [vmem:[#allocation6 + $0xa38] sm:$0xff]
    %v466 = vld [vmem:[#allocation6 + $0xa40] sm:$0xff]
    %v467 = vld [vmem:[#allocation6 + $0xa48] sm:$0xff]
    %v468 = vld [vmem:[#allocation6 + $0xa50] sm:$0xff]
    %v469 = vld [vmem:[#allocation6 + $0xa58] sm:$0xff]
    %v470 = vld [vmem:[#allocation6 + $0xa60] sm:$0xff]
    %v471 = vld [vmem:[#allocation6 + $0xa68] sm:$0xff]
    %v472 = vld [vmem:[#allocation6 + $0xa70] sm:$0xff]
    %v473 = vld [vmem:[#allocation6 + $0xa78] sm:$0xff]
    %v474 = vld [vmem:[#allocation6 + $0xa80] sm:$0xff]
    %v475 = vld [vmem:[#allocation6 + $0xa88] sm:$0xff]
    %v476 = vld [vmem:[#allocation6 + $0xa90] sm:$0xff]
    %v477 = vld [vmem:[#allocation6 + $0xa98] sm:$0xff]
    %v478 = vld [vmem:[#allocation6 + $0xaa0] sm:$0xff]
    %v479 = vld [vmem:[#allocation6 + $0xaa8] sm:$0xff]
    %v480 = vld [vmem:[#allocation6 + $0xab0] sm:$0xff]
    %v481 = vld [vmem:[#allocation6 + $0xab8] sm:$0xff]
    %v482 = vld [vmem:[#allocation6 + $0xac0] sm:$0xff]
    %v483 = vld [vmem:[#allocation6 + $0xac8] sm:$0xff]
    %v484 = vld [vmem:[#allocation6 + $0xad0] sm:$0xff]
    %v485 = vld [vmem:[#allocation6 + $0xad8] sm:$0xff]
    %v486 = vld [vmem:[#allocation6 + $0xae0] sm:$0xff]
    %v487 = vld [vmem:[#allocation6 + $0xae8] sm:$0xff]
    %v488 = vld [vmem:[#allocation6 + $0xaf0] sm:$0xff]
    %v489 = vld [vmem:[#allocation6 + $0xaf8] sm:$0xff]
    %v490 = vld [vmem:[#allocation6 + $0xb00] sm:$0xff]
    %v491 = vld [vmem:[#allocation6 + $0xb08] sm:$0xff]
    %v492 = vld [vmem:[#allocation6 + $0xb10] sm:$0xff]
    %v493 = vld [vmem:[#allocation6 + $0xb18] sm:$0xff]
    %v494 = vld [vmem:[#allocation6 + $0xb20] sm:$0xff]
    %v495 = vld [vmem:[#allocation6 + $0xb28] sm:$0xff]
    %v496 = vld [vmem:[#allocation6 + $0xb30] sm:$0xff]
    %v497 = vld [vmem:[#allocation6 + $0xb38] sm:$0xff]
    %v498 = vld [vmem:[#allocation6 + $0xb40] sm:$0xff]
    %v499 = vld [vmem:[#allocation6 + $0xb48] sm:$0xff]
    %v500 = vld [vmem:[#allocation6 + $0xb50] sm:$0xff]
    %v501 = vld [vmem:[#allocation6 + $0xb58] sm:$0xff]
    %v502 = vld [vmem:[#allocation6 + $0xb60] sm:$0xff]
    %v503 = vld [vmem:[#allocation6 + $0xb68] sm:$0xff]
    %v504 = vld [vmem:[#allocation6 + $0xb70] sm:$0xff]
    %v505 = vld [vmem:[#allocation6 + $0xb78] sm:$0xff]
    %v506 = vld [vmem:[#allocation6 + $0xb80] sm:$0xff]
    %v507 = vld [vmem:[#allocation6 + $0xb88] sm:$0xff]
    %v508 = vld [vmem:[#allocation6 + $0xb90] sm:$0xff]
    %v509 = vld [vmem:[#allocation6 + $0xb98] sm:$0xff]
    %v510 = vld [vmem:[#allocation6 + $0xba0] sm:$0xff]
    %v511 = vld [vmem:[#allocation6 + $0xba8] sm:$0xff]
    %v512 = vld [vmem:[#allocation6 + $0xbb0] sm:$0xff]
    %v513 = vld [vmem:[#allocation6 + $0xbb8] sm:$0xff]
    %v514 = vld [vmem:[#allocation6 + $0xbc0] sm:$0xff]
    %v515 = vld [vmem:[#allocation6 + $0xbc8] sm:$0xff]
    %v516 = vld [vmem:[#allocation6 + $0xbd0] sm:$0xff]
    %v517 = vld [vmem:[#allocation6 + $0xbd8] sm:$0xff]
    %v518 = vld [vmem:[#allocation6 + $0xbe0] sm:$0xff]
    %v519 = vld [vmem:[#allocation6 + $0xbe8] sm:$0xff]
    %v520 = vld [vmem:[#allocation6 + $0xbf0] sm:$0xff]
    %v521 = vld [vmem:[#allocation6 + $0xbf8] sm:$0xff]
    %v522 = vld [vmem:[#allocation6 + $0xc00] sm:$0xff]
    %v523 = vld [vmem:[#allocation6 + $0xc08] sm:$0xff]
    %v524 = vld [vmem:[#allocation6 + $0xc10] sm:$0xff]
    %v525 = vld [vmem:[#allocation6 + $0xc18] sm:$0xff]
    %v526 = vld [vmem:[#allocation6 + $0xc20] sm:$0xff]
    %v527 = vld [vmem:[#allocation6 + $0xc28] sm:$0xff]
    %v528 = vld [vmem:[#allocation6 + $0xc30] sm:$0xff]
    %v529 = vld [vmem:[#allocation6 + $0xc38] sm:$0xff]
    %v530 = vld [vmem:[#allocation6 + $0xc40] sm:$0xff]
    %v531 = vld [vmem:[#allocation6 + $0xc48] sm:$0xff]
    %v532 = vld [vmem:[#allocation6 + $0xc50] sm:$0xff]
    %v533 = vld [vmem:[#allocation6 + $0xc58] sm:$0xff]
    %v534 = vld [vmem:[#allocation6 + $0xc60] sm:$0xff]
    %v535 = vld [vmem:[#allocation6 + $0xc68] sm:$0xff]
    %v536 = vld [vmem:[#allocation6 + $0xc70] sm:$0xff]
    %v537 = vld [vmem:[#allocation6 + $0xc78] sm:$0xff]
    %v538 = vld [vmem:[#allocation6 + $0xc80] sm:$0xff]
    %v539 = vld [vmem:[#allocation6 + $0xc88] sm:$0xff]
    %v540 = vld [vmem:[#allocation6 + $0xc90] sm:$0xff]
    %v541 = vld [vmem:[#allocation6 + $0xc98] sm:$0xff]
    %v542 = vld [vmem:[#allocation6 + $0xca0] sm:$0xff]
    %v543 = vld [vmem:[#allocation6 + $0xca8] sm:$0xff]
    %v544 = vld [vmem:[#allocation6 + $0xcb0] sm:$0xff]
    %v545 = vld [vmem:[#allocation6 + $0xcb8] sm:$0xff]
    %v546 = vld [vmem:[#allocation6 + $0xcc0] sm:$0xff]
    %v547 = vld [vmem:[#allocation6 + $0xcc8] sm:$0xff]
    %v548 = vld [vmem:[#allocation6 + $0xcd0] sm:$0xff]
    %v549 = vld [vmem:[#allocation6 + $0xcd8] sm:$0xff]
    %v550 = vld [vmem:[#allocation6 + $0xce0] sm:$0xff]
    %v551 = vld [vmem:[#allocation6 + $0xce8] sm:$0xff]
    %v552 = vld [vmem:[#allocation6 + $0xcf0] sm:$0xff]
    %v553 = vld [vmem:[#allocation6 + $0xcf8] sm:$0xff]
    %v554 = vld [vmem:[#allocation6 + $0xd00] sm:$0xff]
    %v555 = vld [vmem:[#allocation6 + $0xd08] sm:$0xff]
    %v556 = vld [vmem:[#allocation6 + $0xd10] sm:$0xff]
    %v557 = vld [vmem:[#allocation6 + $0xd18] sm:$0xff]
    %v558 = vld [vmem:[#allocation6 + $0xd20] sm:$0xff]
    %v559 = vld [vmem:[#allocation6 + $0xd28] sm:$0xff]
    %v560 = vld [vmem:[#allocation6 + $0xd30] sm:$0xff]
    %v561 = vld [vmem:[#allocation6 + $0xd38] sm:$0xff]
    %v562 = vld [vmem:[#allocation6 + $0xd40] sm:$0xff]
    %v563 = vld [vmem:[#allocation6 + $0xd48] sm:$0xff]
    %v564 = vld [vmem:[#allocation6 + $0xd50] sm:$0xff]
    %v565 = vld [vmem:[#allocation6 + $0xd58] sm:$0xff]
    %v566 = vld [vmem:[#allocation6 + $0xd60] sm:$0xff]
    %v567 = vld [vmem:[#allocation6 + $0xd68] sm:$0xff]
    %v568 = vld [vmem:[#allocation6 + $0xd70] sm:$0xff]
    %v569 = vld [vmem:[#allocation6 + $0xd78] sm:$0xff]
    %v570 = vld [vmem:[#allocation6 + $0xd80] sm:$0xff]
    %v571 = vld [vmem:[#allocation6 + $0xd88] sm:$0xff]
    %v572 = vld [vmem:[#allocation6 + $0xd90] sm:$0xff]
    %v573 = vld [vmem:[#allocation6 + $0xd98] sm:$0xff]
    %v574 = vld [vmem:[#allocation6 + $0xda0] sm:$0xff]
    %v575 = vld [vmem:[#allocation6 + $0xda8] sm:$0xff]
    %v576 = vld [vmem:[#allocation6 + $0xdb0] sm:$0xff]
    %v577 = vld [vmem:[#allocation6 + $0xdb8] sm:$0xff]
    %v578 = vld [vmem:[#allocation6 + $0xdc0] sm:$0xff]
    %v579 = vld [vmem:[#allocation6 + $0xdc8] sm:$0xff]
    %v580 = vld [vmem:[#allocation6 + $0xdd0] sm:$0xff]
    %v581 = vld [vmem:[#allocation6 + $0xdd8] sm:$0xff]
    %v582 = vld [vmem:[#allocation6 + $0xde0] sm:$0xff]
    %v583 = vld [vmem:[#allocation6 + $0xde8] sm:$0xff]
    %v584 = vld [vmem:[#allocation6 + $0xdf0] sm:$0xff]
    %v585 = vld [vmem:[#allocation6 + $0xdf8] sm:$0xff]
    %v586 = vld [vmem:[#allocation6 + $0xe00] sm:$0xff]
    %v587 = vld [vmem:[#allocation6 + $0xe08] sm:$0xff]
    %v588 = vld [vmem:[#allocation6 + $0xe10] sm:$0xff]
    %v589 = vld [vmem:[#allocation6 + $0xe18] sm:$0xff]
    %v590 = vld [vmem:[#allocation6 + $0xe20] sm:$0xff]
    %v591 = vld [vmem:[#allocation6 + $0xe28] sm:$0xff]
    %v592 = vld [vmem:[#allocation6 + $0xe30] sm:$0xff]
    %v593 = vld [vmem:[#allocation6 + $0xe38] sm:$0xff]
    %v594 = vld [vmem:[#allocation6 + $0xe40] sm:$0xff]
    %v595 = vld [vmem:[#allocation6 + $0xe48] sm:$0xff]
    %v596 = vld [vmem:[#allocation6 + $0xe50] sm:$0xff]
    %v597 = vld [vmem:[#allocation6 + $0xe58] sm:$0xff]
    %v598 = vld [vmem:[#allocation6 + $0xe60] sm:$0xff]
    %v599 = vld [vmem:[#allocation6 + $0xe68] sm:$0xff]
    %v600 = vld [vmem:[#allocation6 + $0xe70] sm:$0xff]
    %v601 = vld [vmem:[#allocation6 + $0xe78] sm:$0xff]
    %v602 = vld [vmem:[#allocation6 + $0xe80] sm:$0xff]
    %v603 = vld [vmem:[#allocation6 + $0xe88] sm:$0xff]
    %v604 = vld [vmem:[#allocation6 + $0xe90] sm:$0xff]
    %v605 = vld [vmem:[#allocation6 + $0xe98] sm:$0xff]
    %v606 = vld [vmem:[#allocation6 + $0xea0] sm:$0xff]
    %v607 = vld [vmem:[#allocation6 + $0xea8] sm:$0xff]
    %v608 = vld [vmem:[#allocation6 + $0xeb0] sm:$0xff]
    %v609 = vld [vmem:[#allocation6 + $0xeb8] sm:$0xff]
    %v610 = vld [vmem:[#allocation6 + $0xec0] sm:$0xff]
    %v611 = vld [vmem:[#allocation6 + $0xec8] sm:$0xff]
    %v612 = vld [vmem:[#allocation6 + $0xed0] sm:$0xff]
    %v613 = vld [vmem:[#allocation6 + $0xed8] sm:$0xff]
    %v614 = vld [vmem:[#allocation6 + $0xee0] sm:$0xff]
    %v615 = vld [vmem:[#allocation6 + $0xee8] sm:$0xff]
    %v616 = vld [vmem:[#allocation6 + $0xef0] sm:$0xff]
    %v617 = vld [vmem:[#allocation6 + $0xef8] sm:$0xff]
    %v618 = vld [vmem:[#allocation6 + $0xf00] sm:$0xff]
    %v619 = vld [vmem:[#allocation6 + $0xf08] sm:$0xff]
    %v620 = vld [vmem:[#allocation6 + $0xf10] sm:$0xff]
    %v621 = vld [vmem:[#allocation6 + $0xf18] sm:$0xff]
    %v622 = vld [vmem:[#allocation6 + $0xf20] sm:$0xff]
    %v623 = vld [vmem:[#allocation6 + $0xf28] sm:$0xff]
    %v624 = vld [vmem:[#allocation6 + $0xf30] sm:$0xff]
    %v625 = vld [vmem:[#allocation6 + $0xf38] sm:$0xff]
    %v626 = vld [vmem:[#allocation6 + $0xf40] sm:$0xff]
    %v627 = vld [vmem:[#allocation6 + $0xf48] sm:$0xff]
    %v628 = vld [vmem:[#allocation6 + $0xf50] sm:$0xff]
    %v629 = vld [vmem:[#allocation6 + $0xf58] sm:$0xff]
    %v630 = vld [vmem:[#allocation6 + $0xf60] sm:$0xff]
    %v631 = vld [vmem:[#allocation6 + $0xf68] sm:$0xff]
    %v632 = vld [vmem:[#allocation6 + $0xf70] sm:$0xff]
    %v633 = vld [vmem:[#allocation6 + $0xf78] sm:$0xff]
    %v634 = vld [vmem:[#allocation6 + $0xf80] sm:$0xff]
    %v635 = vld [vmem:[#allocation6 + $0xf88] sm:$0xff]
    %v636 = vld [vmem:[#allocation6 + $0xf90] sm:$0xff]
    %v637 = vld [vmem:[#allocation6 + $0xf98] sm:$0xff]
    %v638 = vld [vmem:[#allocation6 + $0xfa0] sm:$0xff]
    %v639 = vld [vmem:[#allocation6 + $0xfa8] sm:$0xff]
    %v640 = vld [vmem:[#allocation6 + $0xfb0] sm:$0xff]
    %v641 = vld [vmem:[#allocation6 + $0xfb8] sm:$0xff]
    %v642 = vld [vmem:[#allocation6 + $0xfc0] sm:$0xff]
    %v643 = vld [vmem:[#allocation6 + $0xfc8] sm:$0xff]
    %v644 = vld [vmem:[#allocation6 + $0xfd0] sm:$0xff]
    %v645 = vld [vmem:[#allocation6 + $0xfd8] sm:$0xff]
    %v646 = vld [vmem:[#allocation6 + $0xfe0] sm:$0xff]
    %v647 = vld [vmem:[#allocation6 + $0xfe8] sm:$0xff]
    %v648 = vld [vmem:[#allocation6 + $0xff0] sm:$0xff]
    %v649 = vld [vmem:[#allocation6 + $0xff8] sm:$0xff]
    %v650 = vld [vmem:[#allocation8] sm:$0xff]
    %v652 = vlaneseq
    %v653 = vshrl.u32 %v652, 7
    %v654 = vsub.s32 0, %v653
    %v655 = vrot.slane %v650, %v654
    %v656 = vlaneseq
    %v657 = vshrl.u32 %v656, 7
    %v658 = vsub.s32 1, %v657
    %v659 = vrot.slane %v650, %v658
    %v660 = vlaneseq
    %v661 = vshrl.u32 %v660, 7
    %v662 = vsub.s32 2, %v661
    %v663 = vrot.slane %v650, %v662
    %v664 = vlaneseq
    %v665 = vshrl.u32 %v664, 7
    %v666 = vsub.s32 3, %v665
    %v667 = vrot.slane %v650, %v666
    %v668 = vlaneseq
    %v669 = vshrl.u32 %v668, 7
    %v670 = vsub.s32 4, %v669
    %v671 = vrot.slane %v650, %v670
    %v672 = vlaneseq
    %v673 = vshrl.u32 %v672, 7
    %v674 = vsub.s32 5, %v673
    %v675 = vrot.slane %v650, %v674
    %v676 = vlaneseq
    %v677 = vshrl.u32 %v676, 7
    %v678 = vsub.s32 6, %v677
    %v679 = vrot.slane %v650, %v678
    %v680 = vlaneseq
    %v681 = vshrl.u32 %v680, 7
    %v682 = vsub.s32 7, %v681
    %v683 = vrot.slane %v650, %v682
    %692 = vmatprep.subr.mxu0 %v139
    %693 = vmatpush1.msra.mxu0 %v138
    %694 = vmatprep.subr.mxu0 %v147
    %695 = vmatpush1.msra.mxu0 %v146
    %696 = vmatprep.subr.mxu0 %v155
    %697 = vmatpush1.msra.mxu0 %v154
    %698 = vmatprep.subr.mxu0 %v163
    %699 = vmatpush1.msra.mxu0 %v162
    %700 = vmatprep.subr.mxu0 %v171
    %701 = vmatpush1.msra.mxu0 %v170
    %702 = vmatprep.subr.mxu0 %v179
    %703 = vmatpush1.msra.mxu0 %v178
    %704 = vmatprep.subr.mxu0 %v187
    %705 = vmatpush1.msra.mxu0 %v186
    %706 = vmatprep.subr.mxu0 %v195
    %707 = vmatpush1.msra.mxu0 %v194
    %708 = vmatprep.subr.mxu0 %v203
    %709 = vmatpush1.msra.mxu0 %v202
    %710 = vmatprep.subr.mxu0 %v211
    %711 = vmatpush1.msra.mxu0 %v210
    %712 = vmatprep.subr.mxu0 %v219
    %713 = vmatpush1.msra.mxu0 %v218
    %714 = vmatprep.subr.mxu0 %v227
    %715 = vmatpush1.msra.mxu0 %v226
    %716 = vmatprep.subr.mxu0 %v235
    %717 = vmatpush1.msra.mxu0 %v234
    %718 = vmatprep.subr.mxu0 %v243
    %719 = vmatpush1.msra.mxu0 %v242
    %720 = vmatprep.subr.mxu0 %v251
    %721 = vmatpush1.msra.mxu0 %v250
    %722 = vmatprep.subr.mxu0 %v259
    %723 = vmatpush1.msra.mxu0 %v258
    %724 = vmatprep.subr.mxu0 %v267
    %725 = vmatpush1.msra.mxu0 %v266
    %726 = vmatprep.subr.mxu0 %v275
    %727 = vmatpush1.msra.mxu0 %v274
    %728 = vmatprep.subr.mxu0 %v283
    %729 = vmatpush1.msra.mxu0 %v282
    %730 = vmatprep.subr.mxu0 %v291
    %731 = vmatpush1.msra.mxu0 %v290
    %732 = vmatprep.subr.mxu0 %v299
    %733 = vmatpush1.msra.mxu0 %v298
    %734 = vmatprep.subr.mxu0 %v307
    %735 = vmatpush1.msra.mxu0 %v306
    %736 = vmatprep.subr.mxu0 %v315
    %737 = vmatpush1.msra.mxu0 %v314
    %738 = vmatprep.subr.mxu0 %v323
    %739 = vmatpush1.msra.mxu0 %v322
    %740 = vmatprep.subr.mxu0 %v331
    %741 = vmatpush1.msra.mxu0 %v330
    %742 = vmatprep.subr.mxu0 %v339
    %743 = vmatpush1.msra.mxu0 %v338
    %744 = vmatprep.subr.mxu0 %v347
    %745 = vmatpush1.msra.mxu0 %v346
    %746 = vmatprep.subr.mxu0 %v355
    %747 = vmatpush1.msra.mxu0 %v354
    %748 = vmatprep.subr.mxu0 %v363
    %749 = vmatpush1.msra.mxu0 %v362
    %750 = vmatprep.subr.mxu0 %v371
    %751 = vmatpush1.msra.mxu0 %v370
    %752 = vmatprep.subr.mxu0 %v379
    %753 = vmatpush1.msra.mxu0 %v378
    %754 = vmatprep.subr.mxu0 %v387
    %755 = vmatpush1.msra.mxu0 %v386
    %756 = vmatprep.mubr.f32.mxu0 %v59
    %757 = vmatmul.mubr.f32.gmra.mrb[0].mxu0 %v58
    %v758 = vpop.f32.mrb[0].mxu0
    %v759 = vadd.f32 %v655, %v758
    %v760 = vpop.f32.mrb[0].mxu0
    %v761 = vadd.f32 %v659, %v760
    %762 = vmatprep.mubr.f32.mxu0 %v63
    %763 = vmatmul.mubr.f32.gmra.mrb[0].mxu0 %v62
    %v764 = vpop.f32.mrb[0].mxu0
    %v765 = vadd.f32 %v655, %v764
    %v766 = vpop.f32.mrb[0].mxu0
    %v767 = vadd.f32 %v659, %v766
    %768 = vmatprep.mubr.f32.mxu0 %v67
    %769 = vmatmul.mubr.f32.gmra.mrb[0].mxu0 %v66
    %v770 = vpop.f32.mrb[0].mxu0
    %v771 = vadd.f32 %v655, %v770
    %v772 = vpop.f32.mrb[0].mxu0
    %v773 = vadd.f32 %v659, %v772
    %774 = vmatprep.mubr.f32.mxu0 %v71
    %775 = vmatmul.mubr.f32.gmra.mrb[0].mxu0 %v70
    %v776 = vpop.f32.mrb[0].mxu0
    %v777 = vadd.f32 %v655, %v776
    %v778 = vpop.f32.mrb[0].mxu0
    %v779 = vadd.f32 %v659, %v778
    %780 = vmatprep.mubr.f32.mxu0 %v75
    %781 = vmatmul.mubr.f32.gmra.mrb[0].mxu0 %v74
    %v782 = vpop.f32.mrb[0].mxu0
    %v783 = vadd.f32 %v655, %v782
    %v784 = vpop.f32.mrb[0].mxu0
    %v785 = vadd.f32 %v659, %v784
    %786 = vmatprep.mubr.f32.mxu0 %v79
    %787 = vmatmul.mubr.f32.gmra.mrb[0].mxu0 %v78
    %v788 = vpop.f32.mrb[0].mxu0
    %v789 = vadd.f32 %v655, %v788
    %v790 = vpop.f32.mrb[0].mxu0
    %v791 = vadd.f32 %v659, %v790
    %792 = vmatprep.mubr.f32.mxu0 %v83
    %793 = vmatmul.mubr.f32.gmra.mrb[0].mxu0 %v82
    %v794 = vpop.f32.mrb[0].mxu0
    %v795 = vadd.f32 %v655, %v794
    %v796 = vpop.f32.mrb[0].mxu0
    %v797 = vadd.f32 %v659, %v796
    %798 = vmatprep.mubr.f32.mxu0 %v87
    %799 = vmatmul.mubr.f32.gmra.mrb[0].mxu0 %v86
    %v800 = vpop.f32.mrb[0].mxu0
    %v801 = vadd.f32 %v655, %v800
    %v802 = vpop.f32.mrb[0].mxu0
    %v803 = vadd.f32 %v659, %v802
    %804 = vmatprep.mubr.f32.mxu0 %v91
    %805 = vmatmul.mubr.f32.gmra.mrb[0].mxu0 %v90
    %v806 = vpop.f32.mrb[0].mxu0
    %v807 = vadd.f32 %v655, %v806
    %v808 = vpop.f32.mrb[0].mxu0
    %v809 = vadd.f32 %v659, %v808
    %810 = vmatprep.mubr.f32.mxu0 %v95
    %811 = vmatmul.mubr.f32.gmra.mrb[0].mxu0 %v94
    %v812 = vpop.f32.mrb[0].mxu0
    %v813 = vadd.f32 %v655, %v812
    %v814 = vpop.f32.mrb[0].mxu0
    %v815 = vadd.f32 %v659, %v814
    %816 = vmatprep.mubr.f32.mxu0 %v99
    %817 = vmatmul.mubr.f32.gmra.mrb[0].mxu0 %v98
    %v818 = vpop.f32.mrb[0].mxu0
    %v819 = vadd.f32 %v655, %v818
    %v820 = vpop.f32.mrb[0].mxu0
    %v821 = vadd.f32 %v659, %v820
    %822 = vmatprep.mubr.f32.mxu0 %v103
    %823 = vmatmul.mubr.f32.gmra.mrb[0].mxu0 %v102
    %v824 = vpop.f32.mrb[0].mxu0
    %v825 = vadd.f32 %v655, %v824
    %v826 = vpop.f32.mrb[0].mxu0
    %v827 = vadd.f32 %v659, %v826
    %828 = vmatprep.mubr.f32.mxu0 %v107
    %829 = vmatmul.mubr.f32.gmra.mrb[0].mxu0 %v106
    %v830 = vpop.f32.mrb[0].mxu0
    %v831 = vadd.f32 %v655, %v830
    %v832 = vpop.f32.mrb[0].mxu0
    %v833 = vadd.f32 %v659, %v832
    %834 = vmatprep.mubr.f32.mxu0 %v111
    %835 = vmatmul.mubr.f32.gmra.mrb[0].mxu0 %v110
    %v836 = vpop.f32.mrb[0].mxu0
    %v837 = vadd.f32 %v655, %v836
    %v838 = vpop.f32.mrb[0].mxu0
    %v839 = vadd.f32 %v659, %v838
    %840 = vmatprep.mubr.f32.mxu0 %v115
    %841 = vmatmul.mubr.f32.gmra.mrb[0].mxu0 %v114
    %v842 = vpop.f32.mrb[0].mxu0
    %v843 = vadd.f32 %v655, %v842
    %v844 = vpop.f32.mrb[0].mxu0
    %v845 = vadd.f32 %v659, %v844
    %846 = vmatprep.mubr.f32.mxu0 %v119
    %847 = vmatmul.mubr.f32.gmra.mrb[0].mxu0 %v118
    %v848 = vpop.f32.mrb[0].mxu0
    %v849 = vadd.f32 %v655, %v848
    %v850 = vpop.f32.mrb[0].mxu0
    %v851 = vadd.f32 %v659, %v850
    %852 = vmatprep.mubr.f32.mxu0 %v123
    %853 = vmatmul.mubr.f32.gmra.mrb[0].mxu0 %v122
    %v854 = vpop.f32.mrb[0].mxu0
    %v855 = vadd.f32 %v655, %v854
    %v856 = vpop.f32.mrb[0].mxu0
    %v857 = vadd.f32 %v659, %v856
    %858 = vmatprep.mubr.f32.mxu0 %v127
    %859 = vmatmul.mubr.f32.gmra.mrb[0].mxu0 %v126
    %v860 = vpop.f32.mrb[0].mxu0
    %v861 = vadd.f32 %v655, %v860
    %v862 = vpop.f32.mrb[0].mxu0
    %v863 = vadd.f32 %v659, %v862
    %864 = vmatprep.mubr.f32.mxu0 %v131
    %865 = vmatmul.mubr.f32.gmra.mrb[0].mxu0 %v130
    %v866 = vpop.f32.mrb[0].mxu0
    %v867 = vadd.f32 %v655, %v866
    %v868 = vpop.f32.mrb[0].mxu0
    %v869 = vadd.f32 %v659, %v868
    %870 = vmatprep.mubr.f32.mxu0 %v135
    %871 = vmatmul.mubr.f32.gmra.mrb[0].mxu0 %v134
    %v872 = vpop.f32.mrb[0].mxu0
    %v873 = vadd.f32 %v655, %v872
    %v874 = vpop.f32.mrb[0].mxu0
    %v875 = vadd.f32 %v659, %v874
    %876 = vdwg.mxu0
    %877 = vmatprep.subr.mxu0 %v395
    %878 = vmatpush1.msra.mxu0 %v394
    %879 = vmatprep.subr.mxu0 %v403
    %880 = vmatpush1.msra.mxu0 %v402
    %881 = vmatprep.subr.mxu0 %v411
    %882 = vmatpush1.msra.mxu0 %v410
    %883 = vmatprep.subr.mxu0 %v419
    %884 = vmatpush1.msra.mxu0 %v418
    %885 = vmatprep.subr.mxu0 %v427
    %886 = vmatpush1.msra.mxu0 %v426
    %887 = vmatprep.subr.mxu0 %v435
    %888 = vmatpush1.msra.mxu0 %v434
    %889 = vmatprep.subr.mxu0 %v443
    %890 = vmatpush1.msra.mxu0 %v442
    %891 = vmatprep.subr.mxu0 %v451
    %892 = vmatpush1.msra.mxu0 %v450
    %893 = vmatprep.subr.mxu0 %v459
    %894 = vmatpush1.msra.mxu0 %v458
    %895 = vmatprep.subr.mxu0 %v467
    %896 = vmatpush1.msra.mxu0 %v466
    %897 = vmatprep.subr.mxu0 %v475
    %898 = vmatpush1.msra.mxu0 %v474
    %899 = vmatprep.subr.mxu0 %v483
    %900 = vmatpush1.msra.mxu0 %v482
    %901 = vmatprep.subr.mxu0 %v491
    %902 = vmatpush1.msra.mxu0 %v490
    %903 = vmatprep.subr.mxu0 %v499
    %904 = vmatpush1.msra.mxu0 %v498
    %905 = vmatprep.subr.mxu0 %v507
    %906 = vmatpush1.msra.mxu0 %v506
    %907 = vmatprep.subr.mxu0 %v515
    %908 = vmatpush1.msra.mxu0 %v514
    %909 = vmatprep.subr.mxu0 %v523
    %910 = vmatpush1.msra.mxu0 %v522
    %911 = vmatprep.subr.mxu0 %v531
    %912 = vmatpush1.msra.mxu0 %v530
    %913 = vmatprep.subr.mxu0 %v539
    %914 = vmatpush1.msra.mxu0 %v538
    %915 = vmatprep.subr.mxu0 %v547
    %916 = vmatpush1.msra.mxu0 %v546
    %917 = vmatprep.subr.mxu0 %v555
    %918 = vmatpush1.msra.mxu0 %v554
    %919 = vmatprep.subr.mxu0 %v563
    %920 = vmatpush1.msra.mxu0 %v562
    %921 = vmatprep.subr.mxu0 %v571
    %922 = vmatpush1.msra.mxu0 %v570
    %923 = vmatprep.subr.mxu0 %v579
    %924 = vmatpush1.msra.mxu0 %v578
    %925 = vmatprep.subr.mxu0 %v587
    %926 = vmatpush1.msra.mxu0 %v586
    %927 = vmatprep.subr.mxu0 %v595
    %928 = vmatpush1.msra.mxu0 %v594
    %929 = vmatprep.subr.mxu0 %v603
    %930 = vmatpush1.msra.mxu0 %v602
    %931 = vmatprep.subr.mxu0 %v611
    %932 = vmatpush1.msra.mxu0 %v610
    %933 = vmatprep.subr.mxu0 %v619
    %934 = vmatpush1.msra.mxu0 %v618
    %935 = vmatprep.subr.mxu0 %v627
    %936 = vmatpush1.msra.mxu0 %v626
    %937 = vmatprep.subr.mxu0 %v635
    %938 = vmatpush1.msra.mxu0 %v634
    %939 = vmatprep.subr.mxu0 %v643
    %940 = vmatpush1.msra.mxu0 %v642
    %941 = vmatprep.mubr.f32.mxu0 %v61
    %942 = vmatmul.mubr.f32.gmra.mrb[0].mxu0 %v60
    %v943 = vpop.f32.mrb[0].mxu0
    %v944 = vadd.f32 %v759, %v943
    %v945 = vpop.f32.mrb[0].mxu0
    %v946 = vadd.f32 %v761, %v945
    %947 = vmatprep.mubr.f32.mxu0 %v65
    %948 = vmatmul.mubr.f32.gmra.mrb[0].mxu0 %v64
    %v949 = vpop.f32.mrb[0].mxu0
    %v950 = vadd.f32 %v765, %v949
    %v951 = vpop.f32.mrb[0].mxu0
    %v952 = vadd.f32 %v767, %v951
    %953 = vmatprep.mubr.f32.mxu0 %v69
    %954 = vmatmul.mubr.f32.gmra.mrb[0].mxu0 %v68
    %v955 = vpop.f32.mrb[0].mxu0
    %v956 = vadd.f32 %v771, %v955
    %v957 = vpop.f32.mrb[0].mxu0
    %v958 = vadd.f32 %v773, %v957
    %959 = vmatprep.mubr.f32.mxu0 %v73
    %960 = vmatmul.mubr.f32.gmra.mrb[0].mxu0 %v72
    %v961 = vpop.f32.mrb[0].mxu0
    %v962 = vadd.f32 %v777, %v961
    %v963 = vpop.f32.mrb[0].mxu0
    %v964 = vadd.f32 %v779, %v963
    %965 = vmatprep.mubr.f32.mxu0 %v77
    %966 = vmatmul.mubr.f32.gmra.mrb[0].mxu0 %v76
    %v967 = vpop.f32.mrb[0].mxu0
    %v968 = vadd.f32 %v783, %v967
    %v969 = vpop.f32.mrb[0].mxu0
    %v970 = vadd.f32 %v785, %v969
    %971 = vmatprep.mubr.f32.mxu0 %v81
    %972 = vmatmul.mubr.f32.gmra.mrb[0].mxu0 %v80
    %v973 = vpop.f32.mrb[0].mxu0
    %v974 = vadd.f32 %v789, %v973
    %v975 = vpop.f32.mrb[0].mxu0
    %v976 = vadd.f32 %v791, %v975
    %977 = vmatprep.mubr.f32.mxu0 %v85
    %978 = vmatmul.mubr.f32.gmra.mrb[0].mxu0 %v84
    %v979 = vpop.f32.mrb[0].mxu0
    %v980 = vadd.f32 %v795, %v979
    %v981 = vpop.f32.mrb[0].mxu0
    %v982 = vadd.f32 %v797, %v981
    %983 = vmatprep.mubr.f32.mxu0 %v89
    %984 = vmatmul.mubr.f32.gmra.mrb[0].mxu0 %v88
    %v985 = vpop.f32.mrb[0].mxu0
    %v986 = vadd.f32 %v801, %v985
    %v987 = vpop.f32.mrb[0].mxu0
    %v988 = vadd.f32 %v803, %v987
    %989 = vmatprep.mubr.f32.mxu0 %v93
    %990 = vmatmul.mubr.f32.gmra.mrb[0].mxu0 %v92
    %v991 = vpop.f32.mrb[0].mxu0
    %v992 = vadd.f32 %v807, %v991
    %v993 = vpop.f32.mrb[0].mxu0
    %v994 = vadd.f32 %v809, %v993
    %995 = vmatprep.mubr.f32.mxu0 %v97
    %996 = vmatmul.mubr.f32.gmra.mrb[0].mxu0 %v96
    %v997 = vpop.f32.mrb[0].mxu0
    %v998 = vadd.f32 %v813, %v997
    %v999 = vpop.f32.mrb[0].mxu0
    %v1000 = vadd.f32 %v815, %v999
    %1001 = vmatprep.mubr.f32.mxu0 %v101
    %1002 = vmatmul.mubr.f32.gmra.mrb[0].mxu0 %v100
    %v1003 = vpop.f32.mrb[0].mxu0
    %v1004 = vadd.f32 %v819, %v1003
    %v1005 = vpop.f32.mrb[0].mxu0
    %v1006 = vadd.f32 %v821, %v1005
    %1007 = vmatprep.mubr.f32.mxu0 %v105
    %1008 = vmatmul.mubr.f32.gmra.mrb[0].mxu0 %v104
    %v1009 = vpop.f32.mrb[0].mxu0
    %v1010 = vadd.f32 %v825, %v1009
    %v1011 = vpop.f32.mrb[0].mxu0
    %v1012 = vadd.f32 %v827, %v1011
    %1013 = vmatprep.mubr.f32.mxu0 %v109
    %1014 = vmatmul.mubr.f32.gmra.mrb[0].mxu0 %v108
    %v1015 = vpop.f32.mrb[0].mxu0
    %v1016 = vadd.f32 %v831, %v1015
    %v1017 = vpop.f32.mrb[0].mxu0
    %v1018 = vadd.f32 %v833, %v1017
    %1019 = vmatprep.mubr.f32.mxu0 %v113
    %1020 = vmatmul.mubr.f32.gmra.mrb[0].mxu0 %v112
    %v1021 = vpop.f32.mrb[0].mxu0
    %v1022 = vadd.f32 %v837, %v1021
    %v1023 = vpop.f32.mrb[0].mxu0
    %v1024 = vadd.f32 %v839, %v1023
    %1025 = vmatprep.mubr.f32.mxu0 %v117
    %1026 = vmatmul.mubr.f32.gmra.mrb[0].mxu0 %v116
    %v1027 = vpop.f32.mrb[0].mxu0
    %v1028 = vadd.f32 %v843, %v1027
    %v1029 = vpop.f32.mrb[0].mxu0
    %v1030 = vadd.f32 %v845, %v1029
    %1031 = vmatprep.mubr.f32.mxu0 %v121
    %1032 = vmatmul.mubr.f32.gmra.mrb[0].mxu0 %v120
    %v1033 = vpop.f32.mrb[0].mxu0
    %v1034 = vadd.f32 %v849, %v1033
    %v1035 = vpop.f32.mrb[0].mxu0
    %v1036 = vadd.f32 %v851, %v1035
    %1037 = vmatprep.mubr.f32.mxu0 %v125
    %1038 = vmatmul.mubr.f32.gmra.mrb[0].mxu0 %v124
    %v1039 = vpop.f32.mrb[0].mxu0
    %v1040 = vadd.f32 %v855, %v1039
    %v1041 = vpop.f32.mrb[0].mxu0
    %v1042 = vadd.f32 %v857, %v1041
    %1043 = vmatprep.mubr.f32.mxu0 %v129
    %1044 = vmatmul.mubr.f32.gmra.mrb[0].mxu0 %v128
    %v1045 = vpop.f32.mrb[0].mxu0
    %v1046 = vadd.f32 %v861, %v1045
    %v1047 = vpop.f32.mrb[0].mxu0
    %v1048 = vadd.f32 %v863, %v1047
    %1049 = vmatprep.mubr.f32.mxu0 %v133
    %1050 = vmatmul.mubr.f32.gmra.mrb[0].mxu0 %v132
    %v1051 = vpop.f32.mrb[0].mxu0
    %v1052 = vadd.f32 %v867, %v1051
    %v1053 = vpop.f32.mrb[0].mxu0
    %v1054 = vadd.f32 %v869, %v1053
    %1055 = vmatprep.mubr.f32.mxu0 %v137
    %1056 = vmatmul.mubr.f32.gmra.mrb[0].mxu0 %v136
    %v1057 = vpop.f32.mrb[0].mxu0
    %v1058 = vadd.f32 %v873, %v1057
    %v1059 = vpop.f32.mrb[0].mxu0
    %v1060 = vadd.f32 %v875, %v1059
    %1061 = vdwg.mxu0
    %1062 = vmatprep.subr.mxu0 %v141
    %1063 = vmatpush1.msra.mxu0 %v140
    %1064 = vmatprep.subr.mxu0 %v149
    %1065 = vmatpush1.msra.mxu0 %v148
    %1066 = vmatprep.subr.mxu0 %v157
    %1067 = vmatpush1.msra.mxu0 %v156
    %1068 = vmatprep.subr.mxu0 %v165
    %1069 = vmatpush1.msra.mxu0 %v164
    %1070 = vmatprep.subr.mxu0 %v173
    %1071 = vmatpush1.msra.mxu0 %v172
    %1072 = vmatprep.subr.mxu0 %v181
    %1073 = vmatpush1.msra.mxu0 %v180
    %1074 = vmatprep.subr.mxu0 %v189
    %1075 = vmatpush1.msra.mxu0 %v188
    %1076 = vmatprep.subr.mxu0 %v197
    %1077 = vmatpush1.msra.mxu0 %v196
    %1078 = vmatprep.subr.mxu0 %v205
    %1079 = vmatpush1.msra.mxu0 %v204
    %1080 = vmatprep.subr.mxu0 %v213
    %1081 = vmatpush1.msra.mxu0 %v212
    %1082 = vmatprep.subr.mxu0 %v221
    %1083 = vmatpush1.msra.mxu0 %v220
    %1084 = vmatprep.subr.mxu0 %v229
    %1085 = vmatpush1.msra.mxu0 %v228
    %1086 = vmatprep.subr.mxu0 %v237
    %1087 = vmatpush1.msra.mxu0 %v236
    %1088 = vmatprep.subr.mxu0 %v245
    %1089 = vmatpush1.msra.mxu0 %v244
    %1090 = vmatprep.subr.mxu0 %v253
    %1091 = vmatpush1.msra.mxu0 %v252
    %1092 = vmatprep.subr.mxu0 %v261
    %1093 = vmatpush1.msra.mxu0 %v260
    %1094 = vmatprep.subr.mxu0 %v269
    %1095 = vmatpush1.msra.mxu0 %v268
    %1096 = vmatprep.subr.mxu0 %v277
    %1097 = vmatpush1.msra.mxu0 %v276
    %1098 = vmatprep.subr.mxu0 %v285
    %1099 = vmatpush1.msra.mxu0 %v284
    %1100 = vmatprep.subr.mxu0 %v293
    %1101 = vmatpush1.msra.mxu0 %v292
    %1102 = vmatprep.subr.mxu0 %v301
    %1103 = vmatpush1.msra.mxu0 %v300
    %1104 = vmatprep.subr.mxu0 %v309
    %1105 = vmatpush1.msra.mxu0 %v308
    %1106 = vmatprep.subr.mxu0 %v317
    %1107 = vmatpush1.msra.mxu0 %v316
    %1108 = vmatprep.subr.mxu0 %v325
    %1109 = vmatpush1.msra.mxu0 %v324
    %1110 = vmatprep.subr.mxu0 %v333
    %1111 = vmatpush1.msra.mxu0 %v332
    %1112 = vmatprep.subr.mxu0 %v341
    %1113 = vmatpush1.msra.mxu0 %v340
    %1114 = vmatprep.subr.mxu0 %v349
    %1115 = vmatpush1.msra.mxu0 %v348
    %1116 = vmatprep.subr.mxu0 %v357
    %1117 = vmatpush1.msra.mxu0 %v356
    %1118 = vmatprep.subr.mxu0 %v365
    %1119 = vmatpush1.msra.mxu0 %v364
    %1120 = vmatprep.subr.mxu0 %v373
    %1121 = vmatpush1.msra.mxu0 %v372
    %1122 = vmatprep.subr.mxu0 %v381
    %1123 = vmatpush1.msra.mxu0 %v380
    %1124 = vmatprep.subr.mxu0 %v389
    %1125 = vmatpush1.msra.mxu0 %v388
    %1126 = vmatprep.mubr.f32.mxu0 %v59
    %1127 = vmatmul.mubr.f32.gmra.mrb[0].mxu0 %v58
    %v1128 = vpop.f32.mrb[0].mxu0
    %v1129 = vadd.f32 %v663, %v1128
    %v1130 = vpop.f32.mrb[0].mxu0
    %v1131 = vadd.f32 %v667, %v1130
    %1132 = vmatprep.mubr.f32.mxu0 %v63
    %1133 = vmatmul.mubr.f32.gmra.mrb[0].mxu0 %v62
    %v1134 = vpop.f32.mrb[0].mxu0
    %v1135 = vadd.f32 %v663, %v1134
    %v1136 = vpop.f32.mrb[0].mxu0
    %v1137 = vadd.f32 %v667, %v1136
    %1138 = vmatprep.mubr.f32.mxu0 %v67
    %1139 = vmatmul.mubr.f32.gmra.mrb[0].mxu0 %v66
    %v1140 = vpop.f32.mrb[0].mxu0
    %v1141 = vadd.f32 %v663, %v1140
    %v1142 = vpop.f32.mrb[0].mxu0
    %v1143 = vadd.f32 %v667, %v1142
    %1144 = vmatprep.mubr.f32.mxu0 %v71
    %1145 = vmatmul.mubr.f32.gmra.mrb[0].mxu0 %v70
    %v1146 = vpop.f32.mrb[0].mxu0
    %v1147 = vadd.f32 %v663, %v1146
    %v1148 = vpop.f32.mrb[0].mxu0
    %v1149 = vadd.f32 %v667, %v1148
    %1150 = vmatprep.mubr.f32.mxu0 %v75
    %1151 = vmatmul.mubr.f32.gmra.mrb[0].mxu0 %v74
    %v1152 = vpop.f32.mrb[0].mxu0
    %v1153 = vadd.f32 %v663, %v1152
    %v1154 = vpop.f32.mrb[0].mxu0
    %v1155 = vadd.f32 %v667, %v1154
    %1156 = vmatprep.mubr.f32.mxu0 %v79
    %1157 = vmatmul.mubr.f32.gmra.mrb[0].mxu0 %v78
    %v1158 = vpop.f32.mrb[0].mxu0
    %v1159 = vadd.f32 %v663, %v1158
    %v1160 = vpop.f32.mrb[0].mxu0
    %v1161 = vadd.f32 %v667, %v1160
    %1162 = vmatprep.mubr.f32.mxu0 %v83
    %1163 = vmatmul.mubr.f32.gmra.mrb[0].mxu0 %v82
    %v1164 = vpop.f32.mrb[0].mxu0
    %v1165 = vadd.f32 %v663, %v1164
    %v1166 = vpop.f32.mrb[0].mxu0
    %v1167 = vadd.f32 %v667, %v1166
    %1168 = vmatprep.mubr.f32.mxu0 %v87
    %1169 = vmatmul.mubr.f32.gmra.mrb[0].mxu0 %v86
    %v1170 = vpop.f32.mrb[0].mxu0
    %v1171 = vadd.f32 %v663, %v1170
    %v1172 = vpop.f32.mrb[0].mxu0
    %v1173 = vadd.f32 %v667, %v1172
    %1174 = vmatprep.mubr.f32.mxu0 %v91
    %1175 = vmatmul.mubr.f32.gmra.mrb[0].mxu0 %v90
    %v1176 = vpop.f32.mrb[0].mxu0
    %v1177 = vadd.f32 %v663, %v1176
    %v1178 = vpop.f32.mrb[0].mxu0
    %v1179 = vadd.f32 %v667, %v1178
    %1180 = vmatprep.mubr.f32.mxu0 %v95
    %1181 = vmatmul.mubr.f32.gmra.mrb[0].mxu0 %v94
    %v1182 = vpop.f32.mrb[0].mxu0
    %v1183 = vadd.f32 %v663, %v1182
    %v1184 = vpop.f32.mrb[0].mxu0
    %v1185 = vadd.f32 %v667, %v1184
    %1186 = vmatprep.mubr.f32.mxu0 %v99
    %1187 = vmatmul.mubr.f32.gmra.mrb[0].mxu0 %v98
    %v1188 = vpop.f32.mrb[0].mxu0
    %v1189 = vadd.f32 %v663, %v1188
    %v1190 = vpop.f32.mrb[0].mxu0
    %v1191 = vadd.f32 %v667, %v1190
    %1192 = vmatprep.mubr.f32.mxu0 %v103
    %1193 = vmatmul.mubr.f32.gmra.mrb[0].mxu0 %v102
    %v1194 = vpop.f32.mrb[0].mxu0
    %v1195 = vadd.f32 %v663, %v1194
    %v1196 = vpop.f32.mrb[0].mxu0
    %v1197 = vadd.f32 %v667, %v1196
    %1198 = vmatprep.mubr.f32.mxu0 %v107
    %1199 = vmatmul.mubr.f32.gmra.mrb[0].mxu0 %v106
    %v1200 = vpop.f32.mrb[0].mxu0
    %v1201 = vadd.f32 %v663, %v1200
    %v1202 = vpop.f32.mrb[0].mxu0
    %v1203 = vadd.f32 %v667, %v1202
    %1204 = vmatprep.mubr.f32.mxu0 %v111
    %1205 = vmatmul.mubr.f32.gmra.mrb[0].mxu0 %v110
    %v1206 = vpop.f32.mrb[0].mxu0
    %v1207 = vadd.f32 %v663, %v1206
    %v1208 = vpop.f32.mrb[0].mxu0
    %v1209 = vadd.f32 %v667, %v1208
    %1210 = vmatprep.mubr.f32.mxu0 %v115
    %1211 = vmatmul.mubr.f32.gmra.mrb[0].mxu0 %v114
    %v1212 = vpop.f32.mrb[0].mxu0
    %v1213 = vadd.f32 %v663, %v1212
    %v1214 = vpop.f32.mrb[0].mxu0
    %v1215 = vadd.f32 %v667, %v1214
    %1216 = vmatprep.mubr.f32.mxu0 %v119
    %1217 = vmatmul.mubr.f32.gmra.mrb[0].mxu0 %v118
    %v1218 = vpop.f32.mrb[0].mxu0
    %v1219 = vadd.f32 %v663, %v1218
    %v1220 = vpop.f32.mrb[0].mxu0
    %v1221 = vadd.f32 %v667, %v1220
    %1222 = vmatprep.mubr.f32.mxu0 %v123
    %1223 = vmatmul.mubr.f32.gmra.mrb[0].mxu0 %v122
    %v1224 = vpop.f32.mrb[0].mxu0
    %v1225 = vadd.f32 %v663, %v1224
    %v1226 = vpop.f32.mrb[0].mxu0
    %v1227 = vadd.f32 %v667, %v1226
    %1228 = vmatprep.mubr.f32.mxu0 %v127
    %1229 = vmatmul.mubr.f32.gmra.mrb[0].mxu0 %v126
    %v1230 = vpop.f32.mrb[0].mxu0
    %v1231 = vadd.f32 %v663, %v1230
    %v1232 = vpop.f32.mrb[0].mxu0
    %v1233 = vadd.f32 %v667, %v1232
    %1234 = vmatprep.mubr.f32.mxu0 %v131
    %1235 = vmatmul.mubr.f32.gmra.mrb[0].mxu0 %v130
    %v1236 = vpop.f32.mrb[0].mxu0
    %v1237 = vadd.f32 %v663, %v1236
    %v1238 = vpop.f32.mrb[0].mxu0
    %v1239 = vadd.f32 %v667, %v1238
    %1240 = vmatprep.mubr.f32.mxu0 %v135
    %1241 = vmatmul.mubr.f32.gmra.mrb[0].mxu0 %v134
    %v1242 = vpop.f32.mrb[0].mxu0
    %v1243 = vadd.f32 %v663, %v1242
    %v1244 = vpop.f32.mrb[0].mxu0
    %v1245 = vadd.f32 %v667, %v1244
    %1246 = vdwg.mxu0
    %1247 = vmatprep.subr.mxu0 %v397
    %1248 = vmatpush1.msra.mxu0 %v396
    %1249 = vmatprep.subr.mxu0 %v405
    %1250 = vmatpush1.msra.mxu0 %v404
    %1251 = vmatprep.subr.mxu0 %v413
    %1252 = vmatpush1.msra.mxu0 %v412
    %1253 = vmatprep.subr.mxu0 %v421
    %1254 = vmatpush1.msra.mxu0 %v420
    %1255 = vmatprep.subr.mxu0 %v429
    %1256 = vmatpush1.msra.mxu0 %v428
    %1257 = vmatprep.subr.mxu0 %v437
    %1258 = vmatpush1.msra.mxu0 %v436
    %1259 = vmatprep.subr.mxu0 %v445
    %1260 = vmatpush1.msra.mxu0 %v444
    %1261 = vmatprep.subr.mxu0 %v453
    %1262 = vmatpush1.msra.mxu0 %v452
    %1263 = vmatprep.subr.mxu0 %v461
    %1264 = vmatpush1.msra.mxu0 %v460
    %1265 = vmatprep.subr.mxu0 %v469
    %1266 = vmatpush1.msra.mxu0 %v468
    %1267 = vmatprep.subr.mxu0 %v477
    %1268 = vmatpush1.msra.mxu0 %v476
    %1269 = vmatprep.subr.mxu0 %v485
    %1270 = vmatpush1.msra.mxu0 %v484
    %1271 = vmatprep.subr.mxu0 %v493
    %1272 = vmatpush1.msra.mxu0 %v492
    %1273 = vmatprep.subr.mxu0 %v501
    %1274 = vmatpush1.msra.mxu0 %v500
    %1275 = vmatprep.subr.mxu0 %v509
    %1276 = vmatpush1.msra.mxu0 %v508
    %1277 = vmatprep.subr.mxu0 %v517
    %1278 = vmatpush1.msra.mxu0 %v516
    %1279 = vmatprep.subr.mxu0 %v525
    %1280 = vmatpush1.msra.mxu0 %v524
    %1281 = vmatprep.subr.mxu0 %v533
    %1282 = vmatpush1.msra.mxu0 %v532
    %1283 = vmatprep.subr.mxu0 %v541
    %1284 = vmatpush1.msra.mxu0 %v540
    %1285 = vmatprep.subr.mxu0 %v549
    %1286 = vmatpush1.msra.mxu0 %v548
    %1287 = vmatprep.subr.mxu0 %v557
    %1288 = vmatpush1.msra.mxu0 %v556
    %1289 = vmatprep.subr.mxu0 %v565
    %1290 = vmatpush1.msra.mxu0 %v564
    %1291 = vmatprep.subr.mxu0 %v573
    %1292 = vmatpush1.msra.mxu0 %v572
    %1293 = vmatprep.subr.mxu0 %v581
    %1294 = vmatpush1.msra.mxu0 %v580
    %1295 = vmatprep.subr.mxu0 %v589
    %1296 = vmatpush1.msra.mxu0 %v588
    %1297 = vmatprep.subr.mxu0 %v597
    %1298 = vmatpush1.msra.mxu0 %v596
    %1299 = vmatprep.subr.mxu0 %v605
    %1300 = vmatpush1.msra.mxu0 %v604
    %1301 = vmatprep.subr.mxu0 %v613
    %1302 = vmatpush1.msra.mxu0 %v612
    %1303 = vmatprep.subr.mxu0 %v621
    %1304 = vmatpush1.msra.mxu0 %v620
    %1305 = vmatprep.subr.mxu0 %v629
    %1306 = vmatpush1.msra.mxu0 %v628
    %1307 = vmatprep.subr.mxu0 %v637
    %1308 = vmatpush1.msra.mxu0 %v636
    %1309 = vmatprep.subr.mxu0 %v645
    %1310 = vmatpush1.msra.mxu0 %v644
    %1311 = vmatprep.mubr.f32.mxu0 %v61
    %1312 = vmatmul.mubr.f32.gmra.mrb[0].mxu0 %v60
    %v1313 = vpop.f32.mrb[0].mxu0
    %v1314 = vadd.f32 %v1129, %v1313
    %v1315 = vpop.f32.mrb[0].mxu0
    %v1316 = vadd.f32 %v1131, %v1315
    %1317 = vmatprep.mubr.f32.mxu0 %v65
    %1318 = vmatmul.mubr.f32.gmra.mrb[0].mxu0 %v64
    %v1319 = vpop.f32.mrb[0].mxu0
    %v1320 = vadd.f32 %v1135, %v1319
    %v1321 = vpop.f32.mrb[0].mxu0
    %v1322 = vadd.f32 %v1137, %v1321
    %1323 = vmatprep.mubr.f32.mxu0 %v69
    %1324 = vmatmul.mubr.f32.gmra.mrb[0].mxu0 %v68
    %v1325 = vpop.f32.mrb[0].mxu0
    %v1326 = vadd.f32 %v1141, %v1325
    %v1327 = vpop.f32.mrb[0].mxu0
    %v1328 = vadd.f32 %v1143, %v1327
    %1329 = vmatprep.mubr.f32.mxu0 %v73
    %1330 = vmatmul.mubr.f32.gmra.mrb[0].mxu0 %v72
    %v1331 = vpop.f32.mrb[0].mxu0
    %v1332 = vadd.f32 %v1147, %v1331
    %v1333 = vpop.f32.mrb[0].mxu0
    %v1334 = vadd.f32 %v1149, %v1333
    %1335 = vmatprep.mubr.f32.mxu0 %v77
    %1336 = vmatmul.mubr.f32.gmra.mrb[0].mxu0 %v76
    %v1337 = vpop.f32.mrb[0].mxu0
    %v1338 = vadd.f32 %v1153, %v1337
    %v1339 = vpop.f32.mrb[0].mxu0
    %v1340 = vadd.f32 %v1155, %v1339
    %1341 = vmatprep.mubr.f32.mxu0 %v81
    %1342 = vmatmul.mubr.f32.gmra.mrb[0].mxu0 %v80
    %v1343 = vpop.f32.mrb[0].mxu0
    %v1344 = vadd.f32 %v1159, %v1343
    %v1345 = vpop.f32.mrb[0].mxu0
    %v1346 = vadd.f32 %v1161, %v1345
    %1347 = vmatprep.mubr.f32.mxu0 %v85
    %1348 = vmatmul.mubr.f32.gmra.mrb[0].mxu0 %v84
    %v1349 = vpop.f32.mrb[0].mxu0
    %v1350 = vadd.f32 %v1165, %v1349
    %v1351 = vpop.f32.mrb[0].mxu0
    %v1352 = vadd.f32 %v1167, %v1351
    %1353 = vmatprep.mubr.f32.mxu0 %v89
    %1354 = vmatmul.mubr.f32.gmra.mrb[0].mxu0 %v88
    %v1355 = vpop.f32.mrb[0].mxu0
    %v1356 = vadd.f32 %v1171, %v1355
    %v1357 = vpop.f32.mrb[0].mxu0
    %v1358 = vadd.f32 %v1173, %v1357
    %1359 = vmatprep.mubr.f32.mxu0 %v93
    %1360 = vmatmul.mubr.f32.gmra.mrb[0].mxu0 %v92
    %v1361 = vpop.f32.mrb[0].mxu0
    %v1362 = vadd.f32 %v1177, %v1361
    %v1363 = vpop.f32.mrb[0].mxu0
    %v1364 = vadd.f32 %v1179, %v1363
    %1365 = vmatprep.mubr.f32.mxu0 %v97
    %1366 = vmatmul.mubr.f32.gmra.mrb[0].mxu0 %v96
    %v1367 = vpop.f32.mrb[0].mxu0
    %v1368 = vadd.f32 %v1183, %v1367
    %v1369 = vpop.f32.mrb[0].mxu0
    %v1370 = vadd.f32 %v1185, %v1369
    %1371 = vmatprep.mubr.f32.mxu0 %v101
    %1372 = vmatmul.mubr.f32.gmra.mrb[0].mxu0 %v100
    %v1373 = vpop.f32.mrb[0].mxu0
    %v1374 = vadd.f32 %v1189, %v1373
    %v1375 = vpop.f32.mrb[0].mxu0
    %v1376 = vadd.f32 %v1191, %v1375
    %1377 = vmatprep.mubr.f32.mxu0 %v105
    %1378 = vmatmul.mubr.f32.gmra.mrb[0].mxu0 %v104
    %v1379 = vpop.f32.mrb[0].mxu0
    %v1380 = vadd.f32 %v1195, %v1379
    %v1381 = vpop.f32.mrb[0].mxu0
    %v1382 = vadd.f32 %v1197, %v1381
    %1383 = vmatprep.mubr.f32.mxu0 %v109
    %1384 = vmatmul.mubr.f32.gmra.mrb[0].mxu0 %v108
    %v1385 = vpop.f32.mrb[0].mxu0
    %v1386 = vadd.f32 %v1201, %v1385
    %v1387 = vpop.f32.mrb[0].mxu0
    %v1388 = vadd.f32 %v1203, %v1387
    %1389 = vmatprep.mubr.f32.mxu0 %v113
    %1390 = vmatmul.mubr.f32.gmra.mrb[0].mxu0 %v112
    %v1391 = vpop.f32.mrb[0].mxu0
    %v1392 = vadd.f32 %v1207, %v1391
    %v1393 = vpop.f32.mrb[0].mxu0
    %v1394 = vadd.f32 %v1209, %v1393
    %1395 = vmatprep.mubr.f32.mxu0 %v117
    %1396 = vmatmul.mubr.f32.gmra.mrb[0].mxu0 %v116
    %v1397 = vpop.f32.mrb[0].mxu0
    %v1398 = vadd.f32 %v1213, %v1397
    %v1399 = vpop.f32.mrb[0].mxu0
    %v1400 = vadd.f32 %v1215, %v1399
    %1401 = vmatprep.mubr.f32.mxu0 %v121
    %1402 = vmatmul.mubr.f32.gmra.mrb[0].mxu0 %v120
    %v1403 = vpop.f32.mrb[0].mxu0
    %v1404 = vadd.f32 %v1219, %v1403
    %v1405 = vpop.f32.mrb[0].mxu0
    %v1406 = vadd.f32 %v1221, %v1405
    %1407 = vmatprep.mubr.f32.mxu0 %v125
    %1408 = vmatmul.mubr.f32.gmra.mrb[0].mxu0 %v124
    %v1409 = vpop.f32.mrb[0].mxu0
    %v1410 = vadd.f32 %v1225, %v1409
    %v1411 = vpop.f32.mrb[0].mxu0
    %v1412 = vadd.f32 %v1227, %v1411
    %1413 = vmatprep.mubr.f32.mxu0 %v129
    %1414 = vmatmul.mubr.f32.gmra.mrb[0].mxu0 %v128
    %v1415 = vpop.f32.mrb[0].mxu0
    %v1416 = vadd.f32 %v1231, %v1415
    %v1417 = vpop.f32.mrb[0].mxu0
    %v1418 = vadd.f32 %v1233, %v1417
    %1419 = vmatprep.mubr.f32.mxu0 %v133
    %1420 = vmatmul.mubr.f32.gmra.mrb[0].mxu0 %v132
    %v1421 = vpop.f32.mrb[0].mxu0
    %v1422 = vadd.f32 %v1237, %v1421
    %v1423 = vpop.f32.mrb[0].mxu0
    %v1424 = vadd.f32 %v1239, %v1423
    %1425 = vmatprep.mubr.f32.mxu0 %v137
    %1426 = vmatmul.mubr.f32.gmra.mrb[0].mxu0 %v136
    %v1427 = vpop.f32.mrb[0].mxu0
    %v1428 = vadd.f32 %v1243, %v1427
    %v1429 = vpop.f32.mrb[0].mxu0
    %v1430 = vadd.f32 %v1245, %v1429
    %1431 = vdwg.mxu0
    %1432 = vmatprep.subr.mxu0 %v143
    %1433 = vmatpush1.msra.mxu0 %v142
    %1434 = vmatprep.subr.mxu0 %v151
    %1435 = vmatpush1.msra.mxu0 %v150
    %1436 = vmatprep.subr.mxu0 %v159
    %1437 = vmatpush1.msra.mxu0 %v158
    %1438 = vmatprep.subr.mxu0 %v167
    %1439 = vmatpush1.msra.mxu0 %v166
    %1440 = vmatprep.subr.mxu0 %v175
    %1441 = vmatpush1.msra.mxu0 %v174
    %1442 = vmatprep.subr.mxu0 %v183
    %1443 = vmatpush1.msra.mxu0 %v182
    %1444 = vmatprep.subr.mxu0 %v191
    %1445 = vmatpush1.msra.mxu0 %v190
    %1446 = vmatprep.subr.mxu0 %v199
    %1447 = vmatpush1.msra.mxu0 %v198
    %1448 = vmatprep.subr.mxu0 %v207
    %1449 = vmatpush1.msra.mxu0 %v206
    %1450 = vmatprep.subr.mxu0 %v215
    %1451 = vmatpush1.msra.mxu0 %v214
    %1452 = vmatprep.subr.mxu0 %v223
    %1453 = vmatpush1.msra.mxu0 %v222
    %1454 = vmatprep.subr.mxu0 %v231
    %1455 = vmatpush1.msra.mxu0 %v230
    %1456 = vmatprep.subr.mxu0 %v239
    %1457 = vmatpush1.msra.mxu0 %v238
    %1458 = vmatprep.subr.mxu0 %v247
    %1459 = vmatpush1.msra.mxu0 %v246
    %1460 = vmatprep.subr.mxu0 %v255
    %1461 = vmatpush1.msra.mxu0 %v254
    %1462 = vmatprep.subr.mxu0 %v263
    %1463 = vmatpush1.msra.mxu0 %v262
    %1464 = vmatprep.subr.mxu0 %v271
    %1465 = vmatpush1.msra.mxu0 %v270
    %1466 = vmatprep.subr.mxu0 %v279
    %1467 = vmatpush1.msra.mxu0 %v278
    %1468 = vmatprep.subr.mxu0 %v287
    %1469 = vmatpush1.msra.mxu0 %v286
    %1470 = vmatprep.subr.mxu0 %v295
    %1471 = vmatpush1.msra.mxu0 %v294
    %1472 = vmatprep.subr.mxu0 %v303
    %1473 = vmatpush1.msra.mxu0 %v302
    %1474 = vmatprep.subr.mxu0 %v311
    %1475 = vmatpush1.msra.mxu0 %v310
    %1476 = vmatprep.subr.mxu0 %v319
    %1477 = vmatpush1.msra.mxu0 %v318
    %1478 = vmatprep.subr.mxu0 %v327
    %1479 = vmatpush1.msra.mxu0 %v326
    %1480 = vmatprep.subr.mxu0 %v335
    %1481 = vmatpush1.msra.mxu0 %v334
    %1482 = vmatprep.subr.mxu0 %v343
    %1483 = vmatpush1.msra.mxu0 %v342
    %1484 = vmatprep.subr.mxu0 %v351
    %1485 = vmatpush1.msra.mxu0 %v350
    %1486 = vmatprep.subr.mxu0 %v359
    %1487 = vmatpush1.msra.mxu0 %v358
    %1488 = vmatprep.subr.mxu0 %v367
    %1489 = vmatpush1.msra.mxu0 %v366
    %1490 = vmatprep.subr.mxu0 %v375
    %1491 = vmatpush1.msra.mxu0 %v374
    %1492 = vmatprep.subr.mxu0 %v383
    %1493 = vmatpush1.msra.mxu0 %v382
    %1494 = vmatprep.subr.mxu0 %v391
    %1495 = vmatpush1.msra.mxu0 %v390
    %1496 = vmatprep.mubr.f32.mxu0 %v59
    %1497 = vmatmul.mubr.f32.gmra.mrb[0].mxu0 %v58
    %v1498 = vpop.f32.mrb[0].mxu0
    %v1499 = vadd.f32 %v671, %v1498
    %v1500 = vpop.f32.mrb[0].mxu0
    %v1501 = vadd.f32 %v675, %v1500
    %1502 = vmatprep.mubr.f32.mxu0 %v63
    %1503 = vmatmul.mubr.f32.gmra.mrb[0].mxu0 %v62
    %v1504 = vpop.f32.mrb[0].mxu0
    %v1505 = vadd.f32 %v671, %v1504
    %v1506 = vpop.f32.mrb[0].mxu0
    %v1507 = vadd.f32 %v675, %v1506
    %1508 = vmatprep.mubr.f32.mxu0 %v67
    %1509 = vmatmul.mubr.f32.gmra.mrb[0].mxu0 %v66
    %v1510 = vpop.f32.mrb[0].mxu0
    %v1511 = vadd.f32 %v671, %v1510
    %v1512 = vpop.f32.mrb[0].mxu0
    %v1513 = vadd.f32 %v675, %v1512
    %1514 = vmatprep.mubr.f32.mxu0 %v71
    %1515 = vmatmul.mubr.f32.gmra.mrb[0].mxu0 %v70
    %v1516 = vpop.f32.mrb[0].mxu0
    %v1517 = vadd.f32 %v671, %v1516
    %v1518 = vpop.f32.mrb[0].mxu0
    %v1519 = vadd.f32 %v675, %v1518
    %1520 = vmatprep.mubr.f32.mxu0 %v75
    %1521 = vmatmul.mubr.f32.gmra.mrb[0].mxu0 %v74
    %v1522 = vpop.f32.mrb[0].mxu0
    %v1523 = vadd.f32 %v671, %v1522
    %v1524 = vpop.f32.mrb[0].mxu0
    %v1525 = vadd.f32 %v675, %v1524
    %1526 = vmatprep.mubr.f32.mxu0 %v79
    %1527 = vmatmul.mubr.f32.gmra.mrb[0].mxu0 %v78
    %v1528 = vpop.f32.mrb[0].mxu0
    %v1529 = vadd.f32 %v671, %v1528
    %v1530 = vpop.f32.mrb[0].mxu0
    %v1531 = vadd.f32 %v675, %v1530
    %1532 = vmatprep.mubr.f32.mxu0 %v83
    %1533 = vmatmul.mubr.f32.gmra.mrb[0].mxu0 %v82
    %v1534 = vpop.f32.mrb[0].mxu0
    %v1535 = vadd.f32 %v671, %v1534
    %v1536 = vpop.f32.mrb[0].mxu0
    %v1537 = vadd.f32 %v675, %v1536
    %1538 = vmatprep.mubr.f32.mxu0 %v87
    %1539 = vmatmul.mubr.f32.gmra.mrb[0].mxu0 %v86
    %v1540 = vpop.f32.mrb[0].mxu0
    %v1541 = vadd.f32 %v671, %v1540
    %v1542 = vpop.f32.mrb[0].mxu0
    %v1543 = vadd.f32 %v675, %v1542
    %1544 = vmatprep.mubr.f32.mxu0 %v91
    %1545 = vmatmul.mubr.f32.gmra.mrb[0].mxu0 %v90
    %v1546 = vpop.f32.mrb[0].mxu0
    %v1547 = vadd.f32 %v671, %v1546
    %v1548 = vpop.f32.mrb[0].mxu0
    %v1549 = vadd.f32 %v675, %v1548
    %1550 = vmatprep.mubr.f32.mxu0 %v95
    %1551 = vmatmul.mubr.f32.gmra.mrb[0].mxu0 %v94
    %v1552 = vpop.f32.mrb[0].mxu0
    %v1553 = vadd.f32 %v671, %v1552
    %v1554 = vpop.f32.mrb[0].mxu0
    %v1555 = vadd.f32 %v675, %v1554
    %1556 = vmatprep.mubr.f32.mxu0 %v99
    %1557 = vmatmul.mubr.f32.gmra.mrb[0].mxu0 %v98
    %v1558 = vpop.f32.mrb[0].mxu0
    %v1559 = vadd.f32 %v671, %v1558
    %v1560 = vpop.f32.mrb[0].mxu0
    %v1561 = vadd.f32 %v675, %v1560
    %1562 = vmatprep.mubr.f32.mxu0 %v103
    %1563 = vmatmul.mubr.f32.gmra.mrb[0].mxu0 %v102
    %v1564 = vpop.f32.mrb[0].mxu0
    %v1565 = vadd.f32 %v671, %v1564
    %v1566 = vpop.f32.mrb[0].mxu0
    %v1567 = vadd.f32 %v675, %v1566
    %1568 = vmatprep.mubr.f32.mxu0 %v107
    %1569 = vmatmul.mubr.f32.gmra.mrb[0].mxu0 %v106
    %v1570 = vpop.f32.mrb[0].mxu0
    %v1571 = vadd.f32 %v671, %v1570
    %v1572 = vpop.f32.mrb[0].mxu0
    %v1573 = vadd.f32 %v675, %v1572
    %1574 = vmatprep.mubr.f32.mxu0 %v111
    %1575 = vmatmul.mubr.f32.gmra.mrb[0].mxu0 %v110
    %v1576 = vpop.f32.mrb[0].mxu0
    %v1577 = vadd.f32 %v671, %v1576
    %v1578 = vpop.f32.mrb[0].mxu0
    %v1579 = vadd.f32 %v675, %v1578
    %1580 = vmatprep.mubr.f32.mxu0 %v115
    %1581 = vmatmul.mubr.f32.gmra.mrb[0].mxu0 %v114
    %v1582 = vpop.f32.mrb[0].mxu0
    %v1583 = vadd.f32 %v671, %v1582
    %v1584 = vpop.f32.mrb[0].mxu0
    %v1585 = vadd.f32 %v675, %v1584
    %1586 = vmatprep.mubr.f32.mxu0 %v119
    %1587 = vmatmul.mubr.f32.gmra.mrb[0].mxu0 %v118
    %v1588 = vpop.f32.mrb[0].mxu0
    %v1589 = vadd.f32 %v671, %v1588
    %v1590 = vpop.f32.mrb[0].mxu0
    %v1591 = vadd.f32 %v675, %v1590
    %1592 = vmatprep.mubr.f32.mxu0 %v123
    %1593 = vmatmul.mubr.f32.gmra.mrb[0].mxu0 %v122
    %v1594 = vpop.f32.mrb[0].mxu0
    %v1595 = vadd.f32 %v671, %v1594
    %v1596 = vpop.f32.mrb[0].mxu0
    %v1597 = vadd.f32 %v675, %v1596
    %1598 = vmatprep.mubr.f32.mxu0 %v127
    %1599 = vmatmul.mubr.f32.gmra.mrb[0].mxu0 %v126
    %v1600 = vpop.f32.mrb[0].mxu0
    %v1601 = vadd.f32 %v671, %v1600
    %v1602 = vpop.f32.mrb[0].mxu0
    %v1603 = vadd.f32 %v675, %v1602
    %1604 = vmatprep.mubr.f32.mxu0 %v131
    %1605 = vmatmul.mubr.f32.gmra.mrb[0].mxu0 %v130
    %v1606 = vpop.f32.mrb[0].mxu0
    %v1607 = vadd.f32 %v671, %v1606
    %v1608 = vpop.f32.mrb[0].mxu0
    %v1609 = vadd.f32 %v675, %v1608
    %1610 = vmatprep.mubr.f32.mxu0 %v135
    %1611 = vmatmul.mubr.f32.gmra.mrb[0].mxu0 %v134
    %v1612 = vpop.f32.mrb[0].mxu0
    %v1613 = vadd.f32 %v671, %v1612
    %v1614 = vpop.f32.mrb[0].mxu0
    %v1615 = vadd.f32 %v675, %v1614
    %1616 = vdwg.mxu0
    %1617 = vmatprep.subr.mxu0 %v399
    %1618 = vmatpush1.msra.mxu0 %v398
    %1619 = vmatprep.subr.mxu0 %v407
    %1620 = vmatpush1.msra.mxu0 %v406
    %1621 = vmatprep.subr.mxu0 %v415
    %1622 = vmatpush1.msra.mxu0 %v414
    %1623 = vmatprep.subr.mxu0 %v423
    %1624 = vmatpush1.msra.mxu0 %v422
    %1625 = vmatprep.subr.mxu0 %v431
    %1626 = vmatpush1.msra.mxu0 %v430
    %1627 = vmatprep.subr.mxu0 %v439
    %1628 = vmatpush1.msra.mxu0 %v438
    %1629 = vmatprep.subr.mxu0 %v447
    %1630 = vmatpush1.msra.mxu0 %v446
    %1631 = vmatprep.subr.mxu0 %v455
    %1632 = vmatpush1.msra.mxu0 %v454
    %1633 = vmatprep.subr.mxu0 %v463
    %1634 = vmatpush1.msra.mxu0 %v462
    %1635 = vmatprep.subr.mxu0 %v471
    %1636 = vmatpush1.msra.mxu0 %v470
    %1637 = vmatprep.subr.mxu0 %v479
    %1638 = vmatpush1.msra.mxu0 %v478
    %1639 = vmatprep.subr.mxu0 %v487
    %1640 = vmatpush1.msra.mxu0 %v486
    %1641 = vmatprep.subr.mxu0 %v495
    %1642 = vmatpush1.msra.mxu0 %v494
    %1643 = vmatprep.subr.mxu0 %v503
    %1644 = vmatpush1.msra.mxu0 %v502
    %1645 = vmatprep.subr.mxu0 %v511
    %1646 = vmatpush1.msra.mxu0 %v510
    %1647 = vmatprep.subr.mxu0 %v519
    %1648 = vmatpush1.msra.mxu0 %v518
    %1649 = vmatprep.subr.mxu0 %v527
    %1650 = vmatpush1.msra.mxu0 %v526
    %1651 = vmatprep.subr.mxu0 %v535
    %1652 = vmatpush1.msra.mxu0 %v534
    %1653 = vmatprep.subr.mxu0 %v543
    %1654 = vmatpush1.msra.mxu0 %v542
    %1655 = vmatprep.subr.mxu0 %v551
    %1656 = vmatpush1.msra.mxu0 %v550
    %1657 = vmatprep.subr.mxu0 %v559
    %1658 = vmatpush1.msra.mxu0 %v558
    %1659 = vmatprep.subr.mxu0 %v567
    %1660 = vmatpush1.msra.mxu0 %v566
    %1661 = vmatprep.subr.mxu0 %v575
    %1662 = vmatpush1.msra.mxu0 %v574
    %1663 = vmatprep.subr.mxu0 %v583
    %1664 = vmatpush1.msra.mxu0 %v582
    %1665 = vmatprep.subr.mxu0 %v591
    %1666 = vmatpush1.msra.mxu0 %v590
    %1667 = vmatprep.subr.mxu0 %v599
    %1668 = vmatpush1.msra.mxu0 %v598
    %1669 = vmatprep.subr.mxu0 %v607
    %1670 = vmatpush1.msra.mxu0 %v606
    %1671 = vmatprep.subr.mxu0 %v615
    %1672 = vmatpush1.msra.mxu0 %v614
    %1673 = vmatprep.subr.mxu0 %v623
    %1674 = vmatpush1.msra.mxu0 %v622
    %1675 = vmatprep.subr.mxu0 %v631
    %1676 = vmatpush1.msra.mxu0 %v630
    %1677 = vmatprep.subr.mxu0 %v639
    %1678 = vmatpush1.msra.mxu0 %v638
    %1679 = vmatprep.subr.mxu0 %v647
    %1680 = vmatpush1.msra.mxu0 %v646
    %1681 = vmatprep.mubr.f32.mxu0 %v61
    %1682 = vmatmul.mubr.f32.gmra.mrb[0].mxu0 %v60
    %v1683 = vpop.f32.mrb[0].mxu0
    %v1684 = vadd.f32 %v1499, %v1683
    %v1685 = vpop.f32.mrb[0].mxu0
    %v1686 = vadd.f32 %v1501, %v1685
    %1687 = vmatprep.mubr.f32.mxu0 %v65
    %1688 = vmatmul.mubr.f32.gmra.mrb[0].mxu0 %v64
    %v1689 = vpop.f32.mrb[0].mxu0
    %v1690 = vadd.f32 %v1505, %v1689
    %v1691 = vpop.f32.mrb[0].mxu0
    %v1692 = vadd.f32 %v1507, %v1691
    %1693 = vmatprep.mubr.f32.mxu0 %v69
    %1694 = vmatmul.mubr.f32.gmra.mrb[0].mxu0 %v68
    %v1695 = vpop.f32.mrb[0].mxu0
    %v1696 = vadd.f32 %v1511, %v1695
    %v1697 = vpop.f32.mrb[0].mxu0
    %v1698 = vadd.f32 %v1513, %v1697
    %1699 = vmatprep.mubr.f32.mxu0 %v73
    %1700 = vmatmul.mubr.f32.gmra.mrb[0].mxu0 %v72
    %v1701 = vpop.f32.mrb[0].mxu0
    %v1702 = vadd.f32 %v1517, %v1701
    %v1703 = vpop.f32.mrb[0].mxu0
    %v1704 = vadd.f32 %v1519, %v1703
    %1705 = vmatprep.mubr.f32.mxu0 %v77
    %1706 = vmatmul.mubr.f32.gmra.mrb[0].mxu0 %v76
    %v1707 = vpop.f32.mrb[0].mxu0
    %v1708 = vadd.f32 %v1523, %v1707
    %v1709 = vpop.f32.mrb[0].mxu0
    %v1710 = vadd.f32 %v1525, %v1709
    %1711 = vmatprep.mubr.f32.mxu0 %v81
    %1712 = vmatmul.mubr.f32.gmra.mrb[0].mxu0 %v80
    %v1713 = vpop.f32.mrb[0].mxu0
    %v1714 = vadd.f32 %v1529, %v1713
    %v1715 = vpop.f32.mrb[0].mxu0
    %v1716 = vadd.f32 %v1531, %v1715
    %1717 = vmatprep.mubr.f32.mxu0 %v85
    %1718 = vmatmul.mubr.f32.gmra.mrb[0].mxu0 %v84
    %v1719 = vpop.f32.mrb[0].mxu0
    %v1720 = vadd.f32 %v1535, %v1719
    %v1721 = vpop.f32.mrb[0].mxu0
    %v1722 = vadd.f32 %v1537, %v1721
    %1723 = vmatprep.mubr.f32.mxu0 %v89
    %1724 = vmatmul.mubr.f32.gmra.mrb[0].mxu0 %v88
    %v1725 = vpop.f32.mrb[0].mxu0
    %v1726 = vadd.f32 %v1541, %v1725
    %v1727 = vpop.f32.mrb[0].mxu0
    %v1728 = vadd.f32 %v1543, %v1727
    %1729 = vmatprep.mubr.f32.mxu0 %v93
    %1730 = vmatmul.mubr.f32.gmra.mrb[0].mxu0 %v92
    %v1731 = vpop.f32.mrb[0].mxu0
    %v1732 = vadd.f32 %v1547, %v1731
    %v1733 = vpop.f32.mrb[0].mxu0
    %v1734 = vadd.f32 %v1549, %v1733
    %1735 = vmatprep.mubr.f32.mxu0 %v97
    %1736 = vmatmul.mubr.f32.gmra.mrb[0].mxu0 %v96
    %v1737 = vpop.f32.mrb[0].mxu0
    %v1738 = vadd.f32 %v1553, %v1737
    %v1739 = vpop.f32.mrb[0].mxu0
    %v1740 = vadd.f32 %v1555, %v1739
    %1741 = vmatprep.mubr.f32.mxu0 %v101
    %1742 = vmatmul.mubr.f32.gmra.mrb[0].mxu0 %v100
    %v1743 = vpop.f32.mrb[0].mxu0
    %v1744 = vadd.f32 %v1559, %v1743
    %v1745 = vpop.f32.mrb[0].mxu0
    %v1746 = vadd.f32 %v1561, %v1745
    %1747 = vmatprep.mubr.f32.mxu0 %v105
    %1748 = vmatmul.mubr.f32.gmra.mrb[0].mxu0 %v104
    %v1749 = vpop.f32.mrb[0].mxu0
    %v1750 = vadd.f32 %v1565, %v1749
    %v1751 = vpop.f32.mrb[0].mxu0
    %v1752 = vadd.f32 %v1567, %v1751
    %1753 = vmatprep.mubr.f32.mxu0 %v109
    %1754 = vmatmul.mubr.f32.gmra.mrb[0].mxu0 %v108
    %v1755 = vpop.f32.mrb[0].mxu0
    %v1756 = vadd.f32 %v1571, %v1755
    %v1757 = vpop.f32.mrb[0].mxu0
    %v1758 = vadd.f32 %v1573, %v1757
    %1759 = vmatprep.mubr.f32.mxu0 %v113
    %1760 = vmatmul.mubr.f32.gmra.mrb[0].mxu0 %v112
    %v1761 = vpop.f32.mrb[0].mxu0
    %v1762 = vadd.f32 %v1577, %v1761
    %v1763 = vpop.f32.mrb[0].mxu0
    %v1764 = vadd.f32 %v1579, %v1763
    %1765 = vmatprep.mubr.f32.mxu0 %v117
    %1766 = vmatmul.mubr.f32.gmra.mrb[0].mxu0 %v116
    %v1767 = vpop.f32.mrb[0].mxu0
    %v1768 = vadd.f32 %v1583, %v1767
    %v1769 = vpop.f32.mrb[0].mxu0
    %v1770 = vadd.f32 %v1585, %v1769
    %1771 = vmatprep.mubr.f32.mxu0 %v121
    %1772 = vmatmul.mubr.f32.gmra.mrb[0].mxu0 %v120
    %v1773 = vpop.f32.mrb[0].mxu0
    %v1774 = vadd.f32 %v1589, %v1773
    %v1775 = vpop.f32.mrb[0].mxu0
    %v1776 = vadd.f32 %v1591, %v1775
    %1777 = vmatprep.mubr.f32.mxu0 %v125
    %1778 = vmatmul.mubr.f32.gmra.mrb[0].mxu0 %v124
    %v1779 = vpop.f32.mrb[0].mxu0
    %v1780 = vadd.f32 %v1595, %v1779
    %v1781 = vpop.f32.mrb[0].mxu0
    %v1782 = vadd.f32 %v1597, %v1781
    %1783 = vmatprep.mubr.f32.mxu0 %v129
    %1784 = vmatmul.mubr.f32.gmra.mrb[0].mxu0 %v128
    %v1785 = vpop.f32.mrb[0].mxu0
    %v1786 = vadd.f32 %v1601, %v1785
    %v1787 = vpop.f32.mrb[0].mxu0
    %v1788 = vadd.f32 %v1603, %v1787
    %1789 = vmatprep.mubr.f32.mxu0 %v133
    %1790 = vmatmul.mubr.f32.gmra.mrb[0].mxu0 %v132
    %v1791 = vpop.f32.mrb[0].mxu0
    %v1792 = vadd.f32 %v1607, %v1791
    %v1793 = vpop.f32.mrb[0].mxu0
    %v1794 = vadd.f32 %v1609, %v1793
    %1795 = vmatprep.mubr.f32.mxu0 %v137
    %1796 = vmatmul.mubr.f32.gmra.mrb[0].mxu0 %v136
    %v1797 = vpop.f32.mrb[0].mxu0
    %v1798 = vadd.f32 %v1613, %v1797
    %v1799 = vpop.f32.mrb[0].mxu0
    %v1800 = vadd.f32 %v1615, %v1799
    %1801 = vdwg.mxu0
    %1802 = vmatprep.subr.mxu0 %v145
    %1803 = vmatpush1.msra.mxu0 %v144
    %1804 = vmatprep.subr.mxu0 %v153
    %1805 = vmatpush1.msra.mxu0 %v152
    %1806 = vmatprep.subr.mxu0 %v161
    %1807 = vmatpush1.msra.mxu0 %v160
    %1808 = vmatprep.subr.mxu0 %v169
    %1809 = vmatpush1.msra.mxu0 %v168
    %1810 = vmatprep.subr.mxu0 %v177
    %1811 = vmatpush1.msra.mxu0 %v176
    %1812 = vmatprep.subr.mxu0 %v185
    %1813 = vmatpush1.msra.mxu0 %v184
    %1814 = vmatprep.subr.mxu0 %v193
    %1815 = vmatpush1.msra.mxu0 %v192
    %1816 = vmatprep.subr.mxu0 %v201
    %1817 = vmatpush1.msra.mxu0 %v200
    %1818 = vmatprep.subr.mxu0 %v209
    %1819 = vmatpush1.msra.mxu0 %v208
    %1820 = vmatprep.subr.mxu0 %v217
    %1821 = vmatpush1.msra.mxu0 %v216
    %1822 = vmatprep.subr.mxu0 %v225
    %1823 = vmatpush1.msra.mxu0 %v224
    %1824 = vmatprep.subr.mxu0 %v233
    %1825 = vmatpush1.msra.mxu0 %v232
    %1826 = vmatprep.subr.mxu0 %v241
    %1827 = vmatpush1.msra.mxu0 %v240
    %1828 = vmatprep.subr.mxu0 %v249
    %1829 = vmatpush1.msra.mxu0 %v248
    %1830 = vmatprep.subr.mxu0 %v257
    %1831 = vmatpush1.msra.mxu0 %v256
    %1832 = vmatprep.subr.mxu0 %v265
    %1833 = vmatpush1.msra.mxu0 %v264
    %1834 = vmatprep.subr.mxu0 %v273
    %1835 = vmatpush1.msra.mxu0 %v272
    %1836 = vmatprep.subr.mxu0 %v281
    %1837 = vmatpush1.msra.mxu0 %v280
    %1838 = vmatprep.subr.mxu0 %v289
    %1839 = vmatpush1.msra.mxu0 %v288
    %1840 = vmatprep.subr.mxu0 %v297
    %1841 = vmatpush1.msra.mxu0 %v296
    %1842 = vmatprep.subr.mxu0 %v305
    %1843 = vmatpush1.msra.mxu0 %v304
    %1844 = vmatprep.subr.mxu0 %v313
    %1845 = vmatpush1.msra.mxu0 %v312
    %1846 = vmatprep.subr.mxu0 %v321
    %1847 = vmatpush1.msra.mxu0 %v320
    %1848 = vmatprep.subr.mxu0 %v329
    %1849 = vmatpush1.msra.mxu0 %v328
    %1850 = vmatprep.subr.mxu0 %v337
    %1851 = vmatpush1.msra.mxu0 %v336
    %1852 = vmatprep.subr.mxu0 %v345
    %1853 = vmatpush1.msra.mxu0 %v344
    %1854 = vmatprep.subr.mxu0 %v353
    %1855 = vmatpush1.msra.mxu0 %v352
    %1856 = vmatprep.subr.mxu0 %v361
    %1857 = vmatpush1.msra.mxu0 %v360
    %1858 = vmatprep.subr.mxu0 %v369
    %1859 = vmatpush1.msra.mxu0 %v368
    %1860 = vmatprep.subr.mxu0 %v377
    %1861 = vmatpush1.msra.mxu0 %v376
    %1862 = vmatprep.subr.mxu0 %v385
    %1863 = vmatpush1.msra.mxu0 %v384
    %1864 = vmatprep.subr.mxu0 %v393
    %1865 = vmatpush1.msra.mxu0 %v392
    %1866 = vmatprep.mubr.f32.mxu0 %v59
    %1867 = vmatmul.mubr.f32.gmra.mrb[0].mxu0 %v58
    %v1868 = vpop.f32.mrb[0].mxu0
    %v1869 = vadd.f32 %v679, %v1868
    %v1870 = vpop.f32.mrb[0].mxu0
    %v1871 = vadd.f32 %v683, %v1870
    %1872 = vmatprep.mubr.f32.mxu0 %v63
    %1873 = vmatmul.mubr.f32.gmra.mrb[0].mxu0 %v62
    %v1874 = vpop.f32.mrb[0].mxu0
    %v1875 = vadd.f32 %v679, %v1874
    %v1876 = vpop.f32.mrb[0].mxu0
    %v1877 = vadd.f32 %v683, %v1876
    %1878 = vmatprep.mubr.f32.mxu0 %v67
    %1879 = vmatmul.mubr.f32.gmra.mrb[0].mxu0 %v66
    %v1880 = vpop.f32.mrb[0].mxu0
    %v1881 = vadd.f32 %v679, %v1880
    %v1882 = vpop.f32.mrb[0].mxu0
    %v1883 = vadd.f32 %v683, %v1882
    %1884 = vmatprep.mubr.f32.mxu0 %v71
    %1885 = vmatmul.mubr.f32.gmra.mrb[0].mxu0 %v70
    %v1886 = vpop.f32.mrb[0].mxu0
    %v1887 = vadd.f32 %v679, %v1886
    %v1888 = vpop.f32.mrb[0].mxu0
    %v1889 = vadd.f32 %v683, %v1888
    %1890 = vmatprep.mubr.f32.mxu0 %v75
    %1891 = vmatmul.mubr.f32.gmra.mrb[0].mxu0 %v74
    %v1892 = vpop.f32.mrb[0].mxu0
    %v1893 = vadd.f32 %v679, %v1892
    %v1894 = vpop.f32.mrb[0].mxu0
    %v1895 = vadd.f32 %v683, %v1894
    %1896 = vmatprep.mubr.f32.mxu0 %v79
    %1897 = vmatmul.mubr.f32.gmra.mrb[0].mxu0 %v78
    %v1898 = vpop.f32.mrb[0].mxu0
    %v1899 = vadd.f32 %v679, %v1898
    %v1900 = vpop.f32.mrb[0].mxu0
    %v1901 = vadd.f32 %v683, %v1900
    %1902 = vmatprep.mubr.f32.mxu0 %v83
    %1903 = vmatmul.mubr.f32.gmra.mrb[0].mxu0 %v82
    %v1904 = vpop.f32.mrb[0].mxu0
    %v1905 = vadd.f32 %v679, %v1904
    %v1906 = vpop.f32.mrb[0].mxu0
    %v1907 = vadd.f32 %v683, %v1906
    %1908 = vmatprep.mubr.f32.mxu0 %v87
    %1909 = vmatmul.mubr.f32.gmra.mrb[0].mxu0 %v86
    %v1910 = vpop.f32.mrb[0].mxu0
    %v1911 = vadd.f32 %v679, %v1910
    %v1912 = vpop.f32.mrb[0].mxu0
    %v1913 = vadd.f32 %v683, %v1912
    %1914 = vmatprep.mubr.f32.mxu0 %v91
    %1915 = vmatmul.mubr.f32.gmra.mrb[0].mxu0 %v90
    %v1916 = vpop.f32.mrb[0].mxu0
    %v1917 = vadd.f32 %v679, %v1916
    %v1918 = vpop.f32.mrb[0].mxu0
    %v1919 = vadd.f32 %v683, %v1918
    %1920 = vmatprep.mubr.f32.mxu0 %v95
    %1921 = vmatmul.mubr.f32.gmra.mrb[0].mxu0 %v94
    %v1922 = vpop.f32.mrb[0].mxu0
    %v1923 = vadd.f32 %v679, %v1922
    %v1924 = vpop.f32.mrb[0].mxu0
    %v1925 = vadd.f32 %v683, %v1924
    %1926 = vmatprep.mubr.f32.mxu0 %v99
    %1927 = vmatmul.mubr.f32.gmra.mrb[0].mxu0 %v98
    %v1928 = vpop.f32.mrb[0].mxu0
    %v1929 = vadd.f32 %v679, %v1928
    %v1930 = vpop.f32.mrb[0].mxu0
    %v1931 = vadd.f32 %v683, %v1930
    %1932 = vmatprep.mubr.f32.mxu0 %v103
    %1933 = vmatmul.mubr.f32.gmra.mrb[0].mxu0 %v102
    %v1934 = vpop.f32.mrb[0].mxu0
    %v1935 = vadd.f32 %v679, %v1934
    %v1936 = vpop.f32.mrb[0].mxu0
    %v1937 = vadd.f32 %v683, %v1936
    %1938 = vmatprep.mubr.f32.mxu0 %v107
    %1939 = vmatmul.mubr.f32.gmra.mrb[0].mxu0 %v106
    %v1940 = vpop.f32.mrb[0].mxu0
    %v1941 = vadd.f32 %v679, %v1940
    %v1942 = vpop.f32.mrb[0].mxu0
    %v1943 = vadd.f32 %v683, %v1942
    %1944 = vmatprep.mubr.f32.mxu0 %v111
    %1945 = vmatmul.mubr.f32.gmra.mrb[0].mxu0 %v110
    %v1946 = vpop.f32.mrb[0].mxu0
    %v1947 = vadd.f32 %v679, %v1946
    %v1948 = vpop.f32.mrb[0].mxu0
    %v1949 = vadd.f32 %v683, %v1948
    %1950 = vmatprep.mubr.f32.mxu0 %v115
    %1951 = vmatmul.mubr.f32.gmra.mrb[0].mxu0 %v114
    %v1952 = vpop.f32.mrb[0].mxu0
    %v1953 = vadd.f32 %v679, %v1952
    %v1954 = vpop.f32.mrb[0].mxu0
    %v1955 = vadd.f32 %v683, %v1954
    %1956 = vmatprep.mubr.f32.mxu0 %v119
    %1957 = vmatmul.mubr.f32.gmra.mrb[0].mxu0 %v118
    %v1958 = vpop.f32.mrb[0].mxu0
    %v1959 = vadd.f32 %v679, %v1958
    %v1960 = vpop.f32.mrb[0].mxu0
    %v1961 = vadd.f32 %v683, %v1960
    %1962 = vmatprep.mubr.f32.mxu0 %v123
    %1963 = vmatmul.mubr.f32.gmra.mrb[0].mxu0 %v122
    %v1964 = vpop.f32.mrb[0].mxu0
    %v1965 = vadd.f32 %v679, %v1964
    %v1966 = vpop.f32.mrb[0].mxu0
    %v1967 = vadd.f32 %v683, %v1966
    %1968 = vmatprep.mubr.f32.mxu0 %v127
    %1969 = vmatmul.mubr.f32.gmra.mrb[0].mxu0 %v126
    %v1970 = vpop.f32.mrb[0].mxu0
    %v1971 = vadd.f32 %v679, %v1970
    %v1972 = vpop.f32.mrb[0].mxu0
    %v1973 = vadd.f32 %v683, %v1972
    %1974 = vmatprep.mubr.f32.mxu0 %v131
    %1975 = vmatmul.mubr.f32.gmra.mrb[0].mxu0 %v130
    %v1976 = vpop.f32.mrb[0].mxu0
    %v1977 = vadd.f32 %v679, %v1976
    %v1978 = vpop.f32.mrb[0].mxu0
    %v1979 = vadd.f32 %v683, %v1978
    %1980 = vmatprep.mubr.f32.mxu0 %v135
    %1981 = vmatmul.mubr.f32.gmra.mrb[0].mxu0 %v134
    %v1982 = vpop.f32.mrb[0].mxu0
    %v1983 = vadd.f32 %v679, %v1982
    %v1984 = vpop.f32.mrb[0].mxu0
    %v1985 = vadd.f32 %v683, %v1984
    %1986 = vdwg.mxu0
    %1987 = vmatprep.subr.mxu0 %v401
    %1988 = vmatpush1.msra.mxu0 %v400
    %1989 = vmatprep.subr.mxu0 %v409
    %1990 = vmatpush1.msra.mxu0 %v408
    %1991 = vmatprep.subr.mxu0 %v417
    %1992 = vmatpush1.msra.mxu0 %v416
    %1993 = vmatprep.subr.mxu0 %v425
    %1994 = vmatpush1.msra.mxu0 %v424
    %1995 = vmatprep.subr.mxu0 %v433
    %1996 = vmatpush1.msra.mxu0 %v432
    %1997 = vmatprep.subr.mxu0 %v441
    %1998 = vmatpush1.msra.mxu0 %v440
    %1999 = vmatprep.subr.mxu0 %v449
    %2000 = vmatpush1.msra.mxu0 %v448
    %2001 = vmatprep.subr.mxu0 %v457
    %2002 = vmatpush1.msra.mxu0 %v456
    %2003 = vmatprep.subr.mxu0 %v465
    %2004 = vmatpush1.msra.mxu0 %v464
    %2005 = vmatprep.subr.mxu0 %v473
    %2006 = vmatpush1.msra.mxu0 %v472
    %2007 = vmatprep.subr.mxu0 %v481
    %2008 = vmatpush1.msra.mxu0 %v480
    %2009 = vmatprep.subr.mxu0 %v489
    %2010 = vmatpush1.msra.mxu0 %v488
    %2011 = vmatprep.subr.mxu0 %v497
    %2012 = vmatpush1.msra.mxu0 %v496
    %2013 = vmatprep.subr.mxu0 %v505
    %2014 = vmatpush1.msra.mxu0 %v504
    %2015 = vmatprep.subr.mxu0 %v513
    %2016 = vmatpush1.msra.mxu0 %v512
    %2017 = vmatprep.subr.mxu0 %v521
    %2018 = vmatpush1.msra.mxu0 %v520
    %2019 = vmatprep.subr.mxu0 %v529
    %2020 = vmatpush1.msra.mxu0 %v528
    %2021 = vmatprep.subr.mxu0 %v537
    %2022 = vmatpush1.msra.mxu0 %v536
    %2023 = vmatprep.subr.mxu0 %v545
    %2024 = vmatpush1.msra.mxu0 %v544
    %2025 = vmatprep.subr.mxu0 %v553
    %2026 = vmatpush1.msra.mxu0 %v552
    %2027 = vmatprep.subr.mxu0 %v561
    %2028 = vmatpush1.msra.mxu0 %v560
    %2029 = vmatprep.subr.mxu0 %v569
    %2030 = vmatpush1.msra.mxu0 %v568
    %2031 = vmatprep.subr.mxu0 %v577
    %2032 = vmatpush1.msra.mxu0 %v576
    %2033 = vmatprep.subr.mxu0 %v585
    %2034 = vmatpush1.msra.mxu0 %v584
    %2035 = vmatprep.subr.mxu0 %v593
    %2036 = vmatpush1.msra.mxu0 %v592
    %2037 = vmatprep.subr.mxu0 %v601
    %2038 = vmatpush1.msra.mxu0 %v600
    %2039 = vmatprep.subr.mxu0 %v609
    %2040 = vmatpush1.msra.mxu0 %v608
    %2041 = vmatprep.subr.mxu0 %v617
    %2042 = vmatpush1.msra.mxu0 %v616
    %2043 = vmatprep.subr.mxu0 %v625
    %2044 = vmatpush1.msra.mxu0 %v624
    %2045 = vmatprep.subr.mxu0 %v633
    %2046 = vmatpush1.msra.mxu0 %v632
    %2047 = vmatprep.subr.mxu0 %v641
    %2048 = vmatpush1.msra.mxu0 %v640
    %2049 = vmatprep.subr.mxu0 %v649
    %2050 = vmatpush1.msra.mxu0 %v648
    %2051 = vmatprep.mubr.f32.mxu0 %v61
    %2052 = vmatmul.mubr.f32.gmra.mrb[0].mxu0 %v60
    %v2053 = vpop.f32.mrb[0].mxu0
    %v2054 = vadd.f32 %v1869, %v2053
    %v2055 = vpop.f32.mrb[0].mxu0
    %v2056 = vadd.f32 %v1871, %v2055
    %2057 = vmatprep.mubr.f32.mxu0 %v65
    %2058 = vmatmul.mubr.f32.gmra.mrb[0].mxu0 %v64
    %v2059 = vpop.f32.mrb[0].mxu0
    %v2060 = vadd.f32 %v1875, %v2059
    %v2061 = vpop.f32.mrb[0].mxu0
    %v2062 = vadd.f32 %v1877, %v2061
    %2063 = vmatprep.mubr.f32.mxu0 %v69
    %2064 = vmatmul.mubr.f32.gmra.mrb[0].mxu0 %v68
    %v2065 = vpop.f32.mrb[0].mxu0
    %v2066 = vadd.f32 %v1881, %v2065
    %v2067 = vpop.f32.mrb[0].mxu0
    %v2068 = vadd.f32 %v1883, %v2067
    %2069 = vmatprep.mubr.f32.mxu0 %v73
    %2070 = vmatmul.mubr.f32.gmra.mrb[0].mxu0 %v72
    %v2071 = vpop.f32.mrb[0].mxu0
    %v2072 = vadd.f32 %v1887, %v2071
    %v2073 = vpop.f32.mrb[0].mxu0
    %v2074 = vadd.f32 %v1889, %v2073
    %2075 = vmatprep.mubr.f32.mxu0 %v77
    %2076 = vmatmul.mubr.f32.gmra.mrb[0].mxu0 %v76
    %v2077 = vpop.f32.mrb[0].mxu0
    %v2078 = vadd.f32 %v1893, %v2077
    %v2079 = vpop.f32.mrb[0].mxu0
    %v2080 = vadd.f32 %v1895, %v2079
    %2081 = vmatprep.mubr.f32.mxu0 %v81
    %2082 = vmatmul.mubr.f32.gmra.mrb[0].mxu0 %v80
    %v2083 = vpop.f32.mrb[0].mxu0
    %v2084 = vadd.f32 %v1899, %v2083
    %v2085 = vpop.f32.mrb[0].mxu0
    %v2086 = vadd.f32 %v1901, %v2085
    %2087 = vmatprep.mubr.f32.mxu0 %v85
    %2088 = vmatmul.mubr.f32.gmra.mrb[0].mxu0 %v84
    %v2089 = vpop.f32.mrb[0].mxu0
    %v2090 = vadd.f32 %v1905, %v2089
    %v2091 = vpop.f32.mrb[0].mxu0
    %v2092 = vadd.f32 %v1907, %v2091
    %2093 = vmatprep.mubr.f32.mxu0 %v89
    %2094 = vmatmul.mubr.f32.gmra.mrb[0].mxu0 %v88
    %v2095 = vpop.f32.mrb[0].mxu0
    %v2096 = vadd.f32 %v1911, %v2095
    %v2097 = vpop.f32.mrb[0].mxu0
    %v2098 = vadd.f32 %v1913, %v2097
    %2099 = vmatprep.mubr.f32.mxu0 %v93
    %2100 = vmatmul.mubr.f32.gmra.mrb[0].mxu0 %v92
    %v2101 = vpop.f32.mrb[0].mxu0
    %v2102 = vadd.f32 %v1917, %v2101
    %v2103 = vpop.f32.mrb[0].mxu0
    %v2104 = vadd.f32 %v1919, %v2103
    %2105 = vmatprep.mubr.f32.mxu0 %v97
    %2106 = vmatmul.mubr.f32.gmra.mrb[0].mxu0 %v96
    %v2107 = vpop.f32.mrb[0].mxu0
    %v2108 = vadd.f32 %v1923, %v2107
    %v2109 = vpop.f32.mrb[0].mxu0
    %v2110 = vadd.f32 %v1925, %v2109
    %2111 = vmatprep.mubr.f32.mxu0 %v101
    %2112 = vmatmul.mubr.f32.gmra.mrb[0].mxu0 %v100
    %v2113 = vpop.f32.mrb[0].mxu0
    %v2114 = vadd.f32 %v1929, %v2113
    %v2115 = vpop.f32.mrb[0].mxu0
    %v2116 = vadd.f32 %v1931, %v2115
    %2117 = vmatprep.mubr.f32.mxu0 %v105
    %2118 = vmatmul.mubr.f32.gmra.mrb[0].mxu0 %v104
    %v2119 = vpop.f32.mrb[0].mxu0
    %v2120 = vadd.f32 %v1935, %v2119
    %v2121 = vpop.f32.mrb[0].mxu0
    %v2122 = vadd.f32 %v1937, %v2121
    %2123 = vmatprep.mubr.f32.mxu0 %v109
    %2124 = vmatmul.mubr.f32.gmra.mrb[0].mxu0 %v108
    %v2125 = vpop.f32.mrb[0].mxu0
    %v2126 = vadd.f32 %v1941, %v2125
    %v2127 = vpop.f32.mrb[0].mxu0
    %v2128 = vadd.f32 %v1943, %v2127
    %2129 = vmatprep.mubr.f32.mxu0 %v113
    %2130 = vmatmul.mubr.f32.gmra.mrb[0].mxu0 %v112
    %v2131 = vpop.f32.mrb[0].mxu0
    %v2132 = vadd.f32 %v1947, %v2131
    %v2133 = vpop.f32.mrb[0].mxu0
    %v2134 = vadd.f32 %v1949, %v2133
    %2135 = vmatprep.mubr.f32.mxu0 %v117
    %2136 = vmatmul.mubr.f32.gmra.mrb[0].mxu0 %v116
    %v2137 = vpop.f32.mrb[0].mxu0
    %v2138 = vadd.f32 %v1953, %v2137
    %v2139 = vpop.f32.mrb[0].mxu0
    %v2140 = vadd.f32 %v1955, %v2139
    %2141 = vmatprep.mubr.f32.mxu0 %v121
    %2142 = vmatmul.mubr.f32.gmra.mrb[0].mxu0 %v120
    %v2143 = vpop.f32.mrb[0].mxu0
    %v2144 = vadd.f32 %v1959, %v2143
    %v2145 = vpop.f32.mrb[0].mxu0
    %v2146 = vadd.f32 %v1961, %v2145
    %2147 = vmatprep.mubr.f32.mxu0 %v125
    %2148 = vmatmul.mubr.f32.gmra.mrb[0].mxu0 %v124
    %v2149 = vpop.f32.mrb[0].mxu0
    %v2150 = vadd.f32 %v1965, %v2149
    %v2151 = vpop.f32.mrb[0].mxu0
    %v2152 = vadd.f32 %v1967, %v2151
    %2153 = vmatprep.mubr.f32.mxu0 %v129
    %2154 = vmatmul.mubr.f32.gmra.mrb[0].mxu0 %v128
    %v2155 = vpop.f32.mrb[0].mxu0
    %v2156 = vadd.f32 %v1971, %v2155
    %v2157 = vpop.f32.mrb[0].mxu0
    %v2158 = vadd.f32 %v1973, %v2157
    %2159 = vmatprep.mubr.f32.mxu0 %v133
    %2160 = vmatmul.mubr.f32.gmra.mrb[0].mxu0 %v132
    %v2161 = vpop.f32.mrb[0].mxu0
    %v2162 = vadd.f32 %v1977, %v2161
    %v2163 = vpop.f32.mrb[0].mxu0
    %v2164 = vadd.f32 %v1979, %v2163
    %2165 = vmatprep.mubr.f32.mxu0 %v137
    %2166 = vmatmul.mubr.f32.gmra.mrb[0].mxu0 %v136
    %v2167 = vpop.f32.mrb[0].mxu0
    %v2168 = vadd.f32 %v1983, %v2167
    %v2169 = vpop.f32.mrb[0].mxu0
    %v2170 = vadd.f32 %v1985, %v2169
    %2171 = vdwg.mxu0
    %s2172 = sld [smem:[#allocation2]]
    %v2173 = vstv %s2172
    %v2174 = vmul.f32 %v2173, %v944
    %v2175 = vmul.f32 %v2173, %v946
    %v2176 = vmul.f32 %v2173, %v1314
    %v2177 = vmul.f32 %v2173, %v1316
    %v2178 = vmul.f32 %v2173, %v950
    %v2179 = vmul.f32 %v2173, %v952
    %v2180 = vmul.f32 %v2173, %v1320
    %v2181 = vmul.f32 %v2173, %v1322
    %v2182 = vmul.f32 %v2173, %v956
    %v2183 = vmul.f32 %v2173, %v958
    %v2184 = vmul.f32 %v2173, %v1326
    %v2185 = vmul.f32 %v2173, %v1328
    %v2186 = vmul.f32 %v2173, %v962
    %v2187 = vmul.f32 %v2173, %v964
    %v2188 = vmul.f32 %v2173, %v1332
    %v2189 = vmul.f32 %v2173, %v1334
    %v2190 = vmul.f32 %v2173, %v968
    %v2191 = vmul.f32 %v2173, %v970
    %v2192 = vmul.f32 %v2173, %v1338
    %v2193 = vmul.f32 %v2173, %v1340
    %v2194 = vmul.f32 %v2173, %v974
    %v2195 = vmul.f32 %v2173, %v976
    %v2196 = vmul.f32 %v2173, %v1344
    %v2197 = vmul.f32 %v2173, %v1346
    %v2198 = vmul.f32 %v2173, %v980
    %v2199 = vmul.f32 %v2173, %v982
    %v2200 = vmul.f32 %v2173, %v1350
    %v2201 = vmul.f32 %v2173, %v1352
    %v2202 = vmul.f32 %v2173, %v986
    %v2203 = vmul.f32 %v2173, %v988
    %v2204 = vmul.f32 %v2173, %v1356
    %v2205 = vmul.f32 %v2173, %v1358
    %v2206 = vmul.f32 %v2173, %v992
    %v2207 = vmul.f32 %v2173, %v994
    %v2208 = vmul.f32 %v2173, %v1362
    %v2209 = vmul.f32 %v2173, %v1364
    %v2210 = vmul.f32 %v2173, %v998
    %v2211 = vmul.f32 %v2173, %v1000
    %v2212 = vmul.f32 %v2173, %v1368
    %v2213 = vmul.f32 %v2173, %v1370
    %v2214 = vmul.f32 %v2173, %v1004
    %v2215 = vmul.f32 %v2173, %v1006
    %v2216 = vmul.f32 %v2173, %v1374
    %v2217 = vmul.f32 %v2173, %v1376
    %v2218 = vmul.f32 %v2173, %v1010
    %v2219 = vmul.f32 %v2173, %v1012
    %v2220 = vmul.f32 %v2173, %v1380
    %v2221 = vmul.f32 %v2173, %v1382
    %v2222 = vmul.f32 %v2173, %v1016
    %v2223 = vmul.f32 %v2173, %v1018
    %v2224 = vmul.f32 %v2173, %v1386
    %v2225 = vmul.f32 %v2173, %v1388
    %v2226 = vmul.f32 %v2173, %v1022
    %v2227 = vmul.f32 %v2173, %v1024
    %v2228 = vmul.f32 %v2173, %v1392
    %v2229 = vmul.f32 %v2173, %v1394
    %v2230 = vmul.f32 %v2173, %v1028
    %v2231 = vmul.f32 %v2173, %v1030
    %v2232 = vmul.f32 %v2173, %v1398
    %v2233 = vmul.f32 %v2173, %v1400
    %v2234 = vmul.f32 %v2173, %v1034
    %v2235 = vmul.f32 %v2173, %v1036
    %v2236 = vmul.f32 %v2173, %v1404
    %v2237 = vmul.f32 %v2173, %v1406
    %v2238 = vmul.f32 %v2173, %v1040
    %v2239 = vmul.f32 %v2173, %v1042
    %v2240 = vmul.f32 %v2173, %v1410
    %v2241 = vmul.f32 %v2173, %v1412
    %v2242 = vmul.f32 %v2173, %v1046
    %v2243 = vmul.f32 %v2173, %v1048
    %v2244 = vmul.f32 %v2173, %v1416
    %v2245 = vmul.f32 %v2173, %v1418
    %v2246 = vmul.f32 %v2173, %v1052
    %v2247 = vmul.f32 %v2173, %v1054
    %v2248 = vmul.f32 %v2173, %v1422
    %v2249 = vmul.f32 %v2173, %v1424
    %v2250 = vmul.f32 %v2173, %v1058
    %v2251 = vmul.f32 %v2173, %v1060
    %v2252 = vmul.f32 %v2173, %v1428
    %v2253 = vmul.f32 %v2173, %v1430
    %v2254 = vxor.u32 %v2174, 2147483648
    %v2255 = vxor.u32 %v2175, 2147483648
    %v2256 = vxor.u32 %v2176, 2147483648
    %v2257 = vxor.u32 %v2177, 2147483648
    %v2258 = vxor.u32 %v2178, 2147483648
    %v2259 = vxor.u32 %v2179, 2147483648
    %v2260 = vxor.u32 %v2180, 2147483648
    %v2261 = vxor.u32 %v2181, 2147483648
    %v2262 = vxor.u32 %v2182, 2147483648
    %v2263 = vxor.u32 %v2183, 2147483648
    %v2264 = vxor.u32 %v2184, 2147483648
    %v2265 = vxor.u32 %v2185, 2147483648
    %v2266 = vxor.u32 %v2186, 2147483648
    %v2267 = vxor.u32 %v2187, 2147483648
    %v2268 = vxor.u32 %v2188, 2147483648
    %v2269 = vxor.u32 %v2189, 2147483648
    %v2270 = vxor.u32 %v2190, 2147483648
    %v2271 = vxor.u32 %v2191, 2147483648
    %v2272 = vxor.u32 %v2192, 2147483648
    %v2273 = vxor.u32 %v2193, 2147483648
    %v2274 = vxor.u32 %v2194, 2147483648
    %v2275 = vxor.u32 %v2195, 2147483648
    %v2276 = vxor.u32 %v2196, 2147483648
    %v2277 = vxor.u32 %v2197, 2147483648
    %v2278 = vxor.u32 %v2198, 2147483648
    %v2279 = vxor.u32 %v2199, 2147483648
    %v2280 = vxor.u32 %v2200, 2147483648
    %v2281 = vxor.u32 %v2201, 2147483648
    %v2282 = vxor.u32 %v2202, 2147483648
    %v2283 = vxor.u32 %v2203, 2147483648
    %v2284 = vxor.u32 %v2204, 2147483648
    %v2285 = vxor.u32 %v2205, 2147483648
    %v2286 = vxor.u32 %v2206, 2147483648
    %v2287 = vxor.u32 %v2207, 2147483648
    %v2288 = vxor.u32 %v2208, 2147483648
    %v2289 = vxor.u32 %v2209, 2147483648
    %v2290 = vxor.u32 %v2210, 2147483648
    %v2291 = vxor.u32 %v2211, 2147483648
    %v2292 = vxor.u32 %v2212, 2147483648
    %v2293 = vxor.u32 %v2213, 2147483648
    %v2294 = vxor.u32 %v2214, 2147483648
    %v2295 = vxor.u32 %v2215, 2147483648
    %v2296 = vxor.u32 %v2216, 2147483648
    %v2297 = vxor.u32 %v2217, 2147483648
    %v2298 = vxor.u32 %v2218, 2147483648
    %v2299 = vxor.u32 %v2219, 2147483648
    %v2300 = vxor.u32 %v2220, 2147483648
    %v2301 = vxor.u32 %v2221, 2147483648
    %v2302 = vxor.u32 %v2222, 2147483648
    %v2303 = vxor.u32 %v2223, 2147483648
    %v2304 = vxor.u32 %v2224, 2147483648
    %v2305 = vxor.u32 %v2225, 2147483648
    %v2306 = vxor.u32 %v2226, 2147483648
    %v2307 = vxor.u32 %v2227, 2147483648
    %v2308 = vxor.u32 %v2228, 2147483648
    %v2309 = vxor.u32 %v2229, 2147483648
    %v2310 = vxor.u32 %v2230, 2147483648
    %v2311 = vxor.u32 %v2231, 2147483648
    %v2312 = vxor.u32 %v2232, 2147483648
    %v2313 = vxor.u32 %v2233, 2147483648
    %v2314 = vxor.u32 %v2234, 2147483648
    %v2315 = vxor.u32 %v2235, 2147483648
    %v2316 = vxor.u32 %v2236, 2147483648
    %v2317 = vxor.u32 %v2237, 2147483648
    %v2318 = vxor.u32 %v2238, 2147483648
    %v2319 = vxor.u32 %v2239, 2147483648
    %v2320 = vxor.u32 %v2240, 2147483648
    %v2321 = vxor.u32 %v2241, 2147483648
    %v2322 = vxor.u32 %v2242, 2147483648
    %v2323 = vxor.u32 %v2243, 2147483648
    %v2324 = vxor.u32 %v2244, 2147483648
    %v2325 = vxor.u32 %v2245, 2147483648
    %v2326 = vxor.u32 %v2246, 2147483648
    %v2327 = vxor.u32 %v2247, 2147483648
    %v2328 = vxor.u32 %v2248, 2147483648
    %v2329 = vxor.u32 %v2249, 2147483648
    %v2330 = vxor.u32 %v2250, 2147483648
    %v2331 = vxor.u32 %v2251, 2147483648
    %v2332 = vxor.u32 %v2252, 2147483648
    %v2333 = vxor.u32 %v2253, 2147483648
    %v2334 = vmul.f32 %v2254, 1.442695
    %v2335 = vpow.pop %v2334
    %v2336 = vmul.f32 %v2255, 1.442695
    %v2337 = vpow.pop %v2336
    %v2338 = vmul.f32 %v2256, 1.442695
    %v2339 = vpow.pop %v2338
    %v2340 = vmul.f32 %v2257, 1.442695
    %v2341 = vpow.pop %v2340
    %v2342 = vmul.f32 %v2258, 1.442695
    %v2343 = vpow.pop %v2342
    %v2344 = vmul.f32 %v2259, 1.442695
    %v2345 = vpow.pop %v2344
    %v2346 = vmul.f32 %v2260, 1.442695
    %v2347 = vpow.pop %v2346
    %v2348 = vmul.f32 %v2261, 1.442695
    %v2349 = vpow.pop %v2348
    %v2350 = vmul.f32 %v2262, 1.442695
    %v2351 = vpow.pop %v2350
    %v2352 = vmul.f32 %v2263, 1.442695
    %v2353 = vpow.pop %v2352
    %v2354 = vmul.f32 %v2264, 1.442695
    %v2355 = vpow.pop %v2354
    %v2356 = vmul.f32 %v2265, 1.442695
    %v2357 = vpow.pop %v2356
    %v2358 = vmul.f32 %v2266, 1.442695
    %v2359 = vpow.pop %v2358
    %v2360 = vmul.f32 %v2267, 1.442695
    %v2361 = vpow.pop %v2360
    %v2362 = vmul.f32 %v2268, 1.442695
    %v2363 = vpow.pop %v2362
    %v2364 = vmul.f32 %v2269, 1.442695
    %v2365 = vpow.pop %v2364
    %v2366 = vmul.f32 %v2270, 1.442695
    %v2367 = vpow.pop %v2366
    %v2368 = vmul.f32 %v2271, 1.442695
    %v2369 = vpow.pop %v2368
    %v2370 = vmul.f32 %v2272, 1.442695
    %v2371 = vpow.pop %v2370
    %v2372 = vmul.f32 %v2273, 1.442695
    %v2373 = vpow.pop %v2372
    %v2374 = vmul.f32 %v2274, 1.442695
    %v2375 = vpow.pop %v2374
    %v2376 = vmul.f32 %v2275, 1.442695
    %v2377 = vpow.pop %v2376
    %v2378 = vmul.f32 %v2276, 1.442695
    %v2379 = vpow.pop %v2378
    %v2380 = vmul.f32 %v2277, 1.442695
    %v2381 = vpow.pop %v2380
    %v2382 = vmul.f32 %v2278, 1.442695
    %v2383 = vpow.pop %v2382
    %v2384 = vmul.f32 %v2279, 1.442695
    %v2385 = vpow.pop %v2384
    %v2386 = vmul.f32 %v2280, 1.442695
    %v2387 = vpow.pop %v2386
    %v2388 = vmul.f32 %v2281, 1.442695
    %v2389 = vpow.pop %v2388
    %v2390 = vmul.f32 %v2282, 1.442695
    %v2391 = vpow.pop %v2390
    %v2392 = vmul.f32 %v2283, 1.442695
    %v2393 = vpow.pop %v2392
    %v2394 = vmul.f32 %v2284, 1.442695
    %v2395 = vpow.pop %v2394
    %v2396 = vmul.f32 %v2285, 1.442695
    %v2397 = vpow.pop %v2396
    %v2398 = vmul.f32 %v2286, 1.442695
    %v2399 = vpow.pop %v2398
    %v2400 = vmul.f32 %v2287, 1.442695
    %v2401 = vpow.pop %v2400
    %v2402 = vmul.f32 %v2288, 1.442695
    %v2403 = vpow.pop %v2402
    %v2404 = vmul.f32 %v2289, 1.442695
    %v2405 = vpow.pop %v2404
    %v2406 = vmul.f32 %v2290, 1.442695
    %v2407 = vpow.pop %v2406
    %v2408 = vmul.f32 %v2291, 1.442695
    %v2409 = vpow.pop %v2408
    %v2410 = vmul.f32 %v2292, 1.442695
    %v2411 = vpow.pop %v2410
    %v2412 = vmul.f32 %v2293, 1.442695
    %v2413 = vpow.pop %v2412
    %v2414 = vmul.f32 %v2294, 1.442695
    %v2415 = vpow.pop %v2414
    %v2416 = vmul.f32 %v2295, 1.442695
    %v2417 = vpow.pop %v2416
    %v2418 = vmul.f32 %v2296, 1.442695
    %v2419 = vpow.pop %v2418
    %v2420 = vmul.f32 %v2297, 1.442695
    %v2421 = vpow.pop %v2420
    %v2422 = vmul.f32 %v2298, 1.442695
    %v2423 = vpow.pop %v2422
    %v2424 = vmul.f32 %v2299, 1.442695
    %v2425 = vpow.pop %v2424
    %v2426 = vmul.f32 %v2300, 1.442695
    %v2427 = vpow.pop %v2426
    %v2428 = vmul.f32 %v2301, 1.442695
    %v2429 = vpow.pop %v2428
    %v2430 = vmul.f32 %v2302, 1.442695
    %v2431 = vpow.pop %v2430
    %v2432 = vmul.f32 %v2303, 1.442695
    %v2433 = vpow.pop %v2432
    %v2434 = vmul.f32 %v2304, 1.442695
    %v2435 = vpow.pop %v2434
    %v2436 = vmul.f32 %v2305, 1.442695
    %v2437 = vpow.pop %v2436
    %v2438 = vmul.f32 %v2306, 1.442695
    %v2439 = vpow.pop %v2438
    %v2440 = vmul.f32 %v2307, 1.442695
    %v2441 = vpow.pop %v2440
    %v2442 = vmul.f32 %v2308, 1.442695
    %v2443 = vpow.pop %v2442
    %v2444 = vmul.f32 %v2309, 1.442695
    %v2445 = vpow.pop %v2444
    %v2446 = vmul.f32 %v2310, 1.442695
    %v2447 = vpow.pop %v2446
    %v2448 = vmul.f32 %v2311, 1.442695
    %v2449 = vpow.pop %v2448
    %v2450 = vmul.f32 %v2312, 1.442695
    %v2451 = vpow.pop %v2450
    %v2452 = vmul.f32 %v2313, 1.442695
    %v2453 = vpow.pop %v2452
    %v2454 = vmul.f32 %v2314, 1.442695
    %v2455 = vpow.pop %v2454
    %v2456 = vmul.f32 %v2315, 1.442695
    %v2457 = vpow.pop %v2456
    %v2458 = vmul.f32 %v2316, 1.442695
    %v2459 = vpow.pop %v2458
    %v2460 = vmul.f32 %v2317, 1.442695
    %v2461 = vpow.pop %v2460
    %v2462 = vmul.f32 %v2318, 1.442695
    %v2463 = vpow.pop %v2462
    %v2464 = vmul.f32 %v2319, 1.442695
    %v2465 = vpow.pop %v2464
    %v2466 = vmul.f32 %v2320, 1.442695
    %v2467 = vpow.pop %v2466
    %v2468 = vmul.f32 %v2321, 1.442695
    %v2469 = vpow.pop %v2468
    %v2470 = vmul.f32 %v2322, 1.442695
    %v2471 = vpow.pop %v2470
    %v2472 = vmul.f32 %v2323, 1.442695
    %v2473 = vpow.pop %v2472
    %v2474 = vmul.f32 %v2324, 1.442695
    %v2475 = vpow.pop %v2474
    %v2476 = vmul.f32 %v2325, 1.442695
    %v2477 = vpow.pop %v2476
    %v2478 = vmul.f32 %v2326, 1.442695
    %v2479 = vpow.pop %v2478
    %v2480 = vmul.f32 %v2327, 1.442695
    %v2481 = vpow.pop %v2480
    %v2482 = vmul.f32 %v2328, 1.442695
    %v2483 = vpow.pop %v2482
    %v2484 = vmul.f32 %v2329, 1.442695
    %v2485 = vpow.pop %v2484
    %v2486 = vmul.f32 %v2330, 1.442695
    %v2487 = vpow.pop %v2486
    %v2488 = vmul.f32 %v2331, 1.442695
    %v2489 = vpow.pop %v2488
    %v2490 = vmul.f32 %v2332, 1.442695
    %v2491 = vpow.pop %v2490
    %v2492 = vmul.f32 %v2333, 1.442695
    %v2493 = vpow.pop %v2492
    %v2494 = vadd.f32 %v2335, 1.0
    %v2495 = vadd.f32 %v2337, 1.0
    %v2496 = vadd.f32 %v2339, 1.0
    %v2497 = vadd.f32 %v2341, 1.0
    %v2498 = vadd.f32 %v2343, 1.0
    %v2499 = vadd.f32 %v2345, 1.0
    %v2500 = vadd.f32 %v2347, 1.0
    %v2501 = vadd.f32 %v2349, 1.0
    %v2502 = vadd.f32 %v2351, 1.0
    %v2503 = vadd.f32 %v2353, 1.0
    %v2504 = vadd.f32 %v2355, 1.0
    %v2505 = vadd.f32 %v2357, 1.0
    %v2506 = vadd.f32 %v2359, 1.0
    %v2507 = vadd.f32 %v2361, 1.0
    %v2508 = vadd.f32 %v2363, 1.0
    %v2509 = vadd.f32 %v2365, 1.0
    %v2510 = vadd.f32 %v2367, 1.0
    %v2511 = vadd.f32 %v2369, 1.0
    %v2512 = vadd.f32 %v2371, 1.0
    %v2513 = vadd.f32 %v2373, 1.0
    %v2514 = vadd.f32 %v2375, 1.0
    %v2515 = vadd.f32 %v2377, 1.0
    %v2516 = vadd.f32 %v2379, 1.0
    %v2517 = vadd.f32 %v2381, 1.0
    %v2518 = vadd.f32 %v2383, 1.0
    %v2519 = vadd.f32 %v2385, 1.0
    %v2520 = vadd.f32 %v2387, 1.0
    %v2521 = vadd.f32 %v2389, 1.0
    %v2522 = vadd.f32 %v2391, 1.0
    %v2523 = vadd.f32 %v2393, 1.0
    %v2524 = vadd.f32 %v2395, 1.0
    %v2525 = vadd.f32 %v2397, 1.0
    %v2526 = vadd.f32 %v2399, 1.0
    %v2527 = vadd.f32 %v2401, 1.0
    %v2528 = vadd.f32 %v2403, 1.0
    %v2529 = vadd.f32 %v2405, 1.0
    %v2530 = vadd.f32 %v2407, 1.0
    %v2531 = vadd.f32 %v2409, 1.0
    %v2532 = vadd.f32 %v2411, 1.0
    %v2533 = vadd.f32 %v2413, 1.0
    %v2534 = vadd.f32 %v2415, 1.0
    %v2535 = vadd.f32 %v2417, 1.0
    %v2536 = vadd.f32 %v2419, 1.0
    %v2537 = vadd.f32 %v2421, 1.0
    %v2538 = vadd.f32 %v2423, 1.0
    %v2539 = vadd.f32 %v2425, 1.0
    %v2540 = vadd.f32 %v2427, 1.0
    %v2541 = vadd.f32 %v2429, 1.0
    %v2542 = vadd.f32 %v2431, 1.0
    %v2543 = vadd.f32 %v2433, 1.0
    %v2544 = vadd.f32 %v2435, 1.0
    %v2545 = vadd.f32 %v2437, 1.0
    %v2546 = vadd.f32 %v2439, 1.0
    %v2547 = vadd.f32 %v2441, 1.0
    %v2548 = vadd.f32 %v2443, 1.0
    %v2549 = vadd.f32 %v2445, 1.0
    %v2550 = vadd.f32 %v2447, 1.0
    %v2551 = vadd.f32 %v2449, 1.0
    %v2552 = vadd.f32 %v2451, 1.0
    %v2553 = vadd.f32 %v2453, 1.0
    %v2554 = vadd.f32 %v2455, 1.0
    %v2555 = vadd.f32 %v2457, 1.0
    %v2556 = vadd.f32 %v2459, 1.0
    %v2557 = vadd.f32 %v2461, 1.0
    %v2558 = vadd.f32 %v2463, 1.0
    %v2559 = vadd.f32 %v2465, 1.0
    %v2560 = vadd.f32 %v2467, 1.0
    %v2561 = vadd.f32 %v2469, 1.0
    %v2562 = vadd.f32 %v2471, 1.0
    %v2563 = vadd.f32 %v2473, 1.0
    %v2564 = vadd.f32 %v2475, 1.0
    %v2565 = vadd.f32 %v2477, 1.0
    %v2566 = vadd.f32 %v2479, 1.0
    %v2567 = vadd.f32 %v2481, 1.0
    %v2568 = vadd.f32 %v2483, 1.0
    %v2569 = vadd.f32 %v2485, 1.0
    %v2570 = vadd.f32 %v2487, 1.0
    %v2571 = vadd.f32 %v2489, 1.0
    %v2572 = vadd.f32 %v2491, 1.0
    %v2573 = vadd.f32 %v2493, 1.0
    %v2574 = vrcp.pop %v2494
    %v2575 = vmul.f32 1.0, %v2574
    %v2576 = vrcp.pop %v2495
    %v2577 = vmul.f32 1.0, %v2576
    %v2578 = vrcp.pop %v2496
    %v2579 = vmul.f32 1.0, %v2578
    %v2580 = vrcp.pop %v2497
    %v2581 = vmul.f32 1.0, %v2580
    %v2582 = vrcp.pop %v2498
    %v2583 = vmul.f32 1.0, %v2582
    %v2584 = vrcp.pop %v2499
    %v2585 = vmul.f32 1.0, %v2584
    %v2586 = vrcp.pop %v2500
    %v2587 = vmul.f32 1.0, %v2586
    %v2588 = vrcp.pop %v2501
    %v2589 = vmul.f32 1.0, %v2588
    %v2590 = vrcp.pop %v2502
    %v2591 = vmul.f32 1.0, %v2590
    %v2592 = vrcp.pop %v2503
    %v2593 = vmul.f32 1.0, %v2592
    %v2594 = vrcp.pop %v2504
    %v2595 = vmul.f32 1.0, %v2594
    %v2596 = vrcp.pop %v2505
    %v2597 = vmul.f32 1.0, %v2596
    %v2598 = vrcp.pop %v2506
    %v2599 = vmul.f32 1.0, %v2598
    %v2600 = vrcp.pop %v2507
    %v2601 = vmul.f32 1.0, %v2600
    %v2602 = vrcp.pop %v2508
    %v2603 = vmul.f32 1.0, %v2602
    %v2604 = vrcp.pop %v2509
    %v2605 = vmul.f32 1.0, %v2604
    %v2606 = vrcp.pop %v2510
    %v2607 = vmul.f32 1.0, %v2606
    %v2608 = vrcp.pop %v2511
    %v2609 = vmul.f32 1.0, %v2608
    %v2610 = vrcp.pop %v2512
    %v2611 = vmul.f32 1.0, %v2610
    %v2612 = vrcp.pop %v2513
    %v2613 = vmul.f32 1.0, %v2612
    %v2614 = vrcp.pop %v2514
    %v2615 = vmul.f32 1.0, %v2614
    %v2616 = vrcp.pop %v2515
    %v2617 = vmul.f32 1.0, %v2616
    %v2618 = vrcp.pop %v2516
    %v2619 = vmul.f32 1.0, %v2618
    %v2620 = vrcp.pop %v2517
    %v2621 = vmul.f32 1.0, %v2620
    %v2622 = vrcp.pop %v2518
    %v2623 = vmul.f32 1.0, %v2622
    %v2624 = vrcp.pop %v2519
    %v2625 = vmul.f32 1.0, %v2624
    %v2626 = vrcp.pop %v2520
    %v2627 = vmul.f32 1.0, %v2626
    %v2628 = vrcp.pop %v2521
    %v2629 = vmul.f32 1.0, %v2628
    %v2630 = vrcp.pop %v2522
    %v2631 = vmul.f32 1.0, %v2630
    %v2632 = vrcp.pop %v2523
    %v2633 = vmul.f32 1.0, %v2632
    %v2634 = vrcp.pop %v2524
    %v2635 = vmul.f32 1.0, %v2634
    %v2636 = vrcp.pop %v2525
    %v2637 = vmul.f32 1.0, %v2636
    %v2638 = vrcp.pop %v2526
    %v2639 = vmul.f32 1.0, %v2638
    %v2640 = vrcp.pop %v2527
    %v2641 = vmul.f32 1.0, %v2640
    %v2642 = vrcp.pop %v2528
    %v2643 = vmul.f32 1.0, %v2642
    %v2644 = vrcp.pop %v2529
    %v2645 = vmul.f32 1.0, %v2644
    %v2646 = vrcp.pop %v2530
    %v2647 = vmul.f32 1.0, %v2646
    %v2648 = vrcp.pop %v2531
    %v2649 = vmul.f32 1.0, %v2648
    %v2650 = vrcp.pop %v2532
    %v2651 = vmul.f32 1.0, %v2650
    %v2652 = vrcp.pop %v2533
    %v2653 = vmul.f32 1.0, %v2652
    %v2654 = vrcp.pop %v2534
    %v2655 = vmul.f32 1.0, %v2654
    %v2656 = vrcp.pop %v2535
    %v2657 = vmul.f32 1.0, %v2656
    %v2658 = vrcp.pop %v2536
    %v2659 = vmul.f32 1.0, %v2658
    %v2660 = vrcp.pop %v2537
    %v2661 = vmul.f32 1.0, %v2660
    %v2662 = vrcp.pop %v2538
    %v2663 = vmul.f32 1.0, %v2662
    %v2664 = vrcp.pop %v2539
    %v2665 = vmul.f32 1.0, %v2664
    %v2666 = vrcp.pop %v2540
    %v2667 = vmul.f32 1.0, %v2666
    %v2668 = vrcp.pop %v2541
    %v2669 = vmul.f32 1.0, %v2668
    %v2670 = vrcp.pop %v2542
    %v2671 = vmul.f32 1.0, %v2670
    %v2672 = vrcp.pop %v2543
    %v2673 = vmul.f32 1.0, %v2672
    %v2674 = vrcp.pop %v2544
    %v2675 = vmul.f32 1.0, %v2674
    %v2676 = vrcp.pop %v2545
    %v2677 = vmul.f32 1.0, %v2676
    %v2678 = vrcp.pop %v2546
    %v2679 = vmul.f32 1.0, %v2678
    %v2680 = vrcp.pop %v2547
    %v2681 = vmul.f32 1.0, %v2680
    %v2682 = vrcp.pop %v2548
    %v2683 = vmul.f32 1.0, %v2682
    %v2684 = vrcp.pop %v2549
    %v2685 = vmul.f32 1.0, %v2684
    %v2686 = vrcp.pop %v2550
    %v2687 = vmul.f32 1.0, %v2686
    %v2688 = vrcp.pop %v2551
    %v2689 = vmul.f32 1.0, %v2688
    %v2690 = vrcp.pop %v2552
    %v2691 = vmul.f32 1.0, %v2690
    %v2692 = vrcp.pop %v2553
    %v2693 = vmul.f32 1.0, %v2692
    %v2694 = vrcp.pop %v2554
    %v2695 = vmul.f32 1.0, %v2694
    %v2696 = vrcp.pop %v2555
    %v2697 = vmul.f32 1.0, %v2696
    %v2698 = vrcp.pop %v2556
    %v2699 = vmul.f32 1.0, %v2698
    %v2700 = vrcp.pop %v2557
    %v2701 = vmul.f32 1.0, %v2700
    %v2702 = vrcp.pop %v2558
    %v2703 = vmul.f32 1.0, %v2702
    %v2704 = vrcp.pop %v2559
    %v2705 = vmul.f32 1.0, %v2704
    %v2706 = vrcp.pop %v2560
    %v2707 = vmul.f32 1.0, %v2706
    %v2708 = vrcp.pop %v2561
    %v2709 = vmul.f32 1.0, %v2708
    %v2710 = vrcp.pop %v2562
    %v2711 = vmul.f32 1.0, %v2710
    %v2712 = vrcp.pop %v2563
    %v2713 = vmul.f32 1.0, %v2712
    %v2714 = vrcp.pop %v2564
    %v2715 = vmul.f32 1.0, %v2714
    %v2716 = vrcp.pop %v2565
    %v2717 = vmul.f32 1.0, %v2716
    %v2718 = vrcp.pop %v2566
    %v2719 = vmul.f32 1.0, %v2718
    %v2720 = vrcp.pop %v2567
    %v2721 = vmul.f32 1.0, %v2720
    %v2722 = vrcp.pop %v2568
    %v2723 = vmul.f32 1.0, %v2722
    %v2724 = vrcp.pop %v2569
    %v2725 = vmul.f32 1.0, %v2724
    %v2726 = vrcp.pop %v2570
    %v2727 = vmul.f32 1.0, %v2726
    %v2728 = vrcp.pop %v2571
    %v2729 = vmul.f32 1.0, %v2728
    %v2730 = vrcp.pop %v2572
    %v2731 = vmul.f32 1.0, %v2730
    %v2732 = vrcp.pop %v2573
    %v2733 = vmul.f32 1.0, %v2732
    %v2734 = vmul.f32 %v944, %v2575
    %v2735 = vmul.f32 %v946, %v2577
    %v2736 = vmul.f32 %v1314, %v2579
    %v2737 = vmul.f32 %v1316, %v2581
    %v2738 = vmul.f32 %v950, %v2583
    %v2739 = vmul.f32 %v952, %v2585
    %v2740 = vmul.f32 %v1320, %v2587
    %v2741 = vmul.f32 %v1322, %v2589
    %v2742 = vmul.f32 %v956, %v2591
    %v2743 = vmul.f32 %v958, %v2593
    %v2744 = vmul.f32 %v1326, %v2595
    %v2745 = vmul.f32 %v1328, %v2597
    %v2746 = vmul.f32 %v962, %v2599
    %v2747 = vmul.f32 %v964, %v2601
    %v2748 = vmul.f32 %v1332, %v2603
    %v2749 = vmul.f32 %v1334, %v2605
    %v2750 = vmul.f32 %v968, %v2607
    %v2751 = vmul.f32 %v970, %v2609
    %v2752 = vmul.f32 %v1338, %v2611
    %v2753 = vmul.f32 %v1340, %v2613
    %v2754 = vmul.f32 %v974, %v2615
    %v2755 = vmul.f32 %v976, %v2617
    %v2756 = vmul.f32 %v1344, %v2619
    %v2757 = vmul.f32 %v1346, %v2621
    %v2758 = vmul.f32 %v980, %v2623
    %v2759 = vmul.f32 %v982, %v2625
    %v2760 = vmul.f32 %v1350, %v2627
    %v2761 = vmul.f32 %v1352, %v2629
    %v2762 = vmul.f32 %v986, %v2631
    %v2763 = vmul.f32 %v988, %v2633
    %v2764 = vmul.f32 %v1356, %v2635
    %v2765 = vmul.f32 %v1358, %v2637
    %v2766 = vmul.f32 %v992, %v2639
    %v2767 = vmul.f32 %v994, %v2641
    %v2768 = vmul.f32 %v1362, %v2643
    %v2769 = vmul.f32 %v1364, %v2645
    %v2770 = vmul.f32 %v998, %v2647
    %v2771 = vmul.f32 %v1000, %v2649
    %v2772 = vmul.f32 %v1368, %v2651
    %v2773 = vmul.f32 %v1370, %v2653
    %v2774 = vmul.f32 %v1004, %v2655
    %v2775 = vmul.f32 %v1006, %v2657
    %v2776 = vmul.f32 %v1374, %v2659
    %v2777 = vmul.f32 %v1376, %v2661
    %v2778 = vmul.f32 %v1010, %v2663
    %v2779 = vmul.f32 %v1012, %v2665
    %v2780 = vmul.f32 %v1380, %v2667
    %v2781 = vmul.f32 %v1382, %v2669
    %v2782 = vmul.f32 %v1016, %v2671
    %v2783 = vmul.f32 %v1018, %v2673
    %v2784 = vmul.f32 %v1386, %v2675
    %v2785 = vmul.f32 %v1388, %v2677
    %v2786 = vmul.f32 %v1022, %v2679
    %v2787 = vmul.f32 %v1024, %v2681
    %v2788 = vmul.f32 %v1392, %v2683
    %v2789 = vmul.f32 %v1394, %v2685
    %v2790 = vmul.f32 %v1028, %v2687
    %v2791 = vmul.f32 %v1030, %v2689
    %v2792 = vmul.f32 %v1398, %v2691
    %v2793 = vmul.f32 %v1400, %v2693
    %v2794 = vmul.f32 %v1034, %v2695
    %v2795 = vmul.f32 %v1036, %v2697
    %v2796 = vmul.f32 %v1404, %v2699
    %v2797 = vmul.f32 %v1406, %v2701
    %v2798 = vmul.f32 %v1040, %v2703
    %v2799 = vmul.f32 %v1042, %v2705
    %v2800 = vmul.f32 %v1410, %v2707
    %v2801 = vmul.f32 %v1412, %v2709
    %v2802 = vmul.f32 %v1046, %v2711
    %v2803 = vmul.f32 %v1048, %v2713
    %v2804 = vmul.f32 %v1416, %v2715
    %v2805 = vmul.f32 %v1418, %v2717
    %v2806 = vmul.f32 %v1052, %v2719
    %v2807 = vmul.f32 %v1054, %v2721
    %v2808 = vmul.f32 %v1422, %v2723
    %v2809 = vmul.f32 %v1424, %v2725
    %v2810 = vmul.f32 %v1058, %v2727
    %v2811 = vmul.f32 %v1060, %v2729
    %v2812 = vmul.f32 %v1428, %v2731
    %v2813 = vmul.f32 %v1430, %v2733
    %v2814 = vmul.f32 %v2734, %v1684
    %v2815 = vmul.f32 %v2735, %v1686
    %v2816 = vmul.f32 %v2736, %v2054
    %v2817 = vmul.f32 %v2737, %v2056
    %v2818 = vmul.f32 %v2738, %v1690
    %v2819 = vmul.f32 %v2739, %v1692
    %v2820 = vmul.f32 %v2740, %v2060
    %v2821 = vmul.f32 %v2741, %v2062
    %v2822 = vmul.f32 %v2742, %v1696
    %v2823 = vmul.f32 %v2743, %v1698
    %v2824 = vmul.f32 %v2744, %v2066
    %v2825 = vmul.f32 %v2745, %v2068
    %v2826 = vmul.f32 %v2746, %v1702
    %v2827 = vmul.f32 %v2747, %v1704
    %v2828 = vmul.f32 %v2748, %v2072
    %v2829 = vmul.f32 %v2749, %v2074
    %v2830 = vmul.f32 %v2750, %v1708
    %v2831 = vmul.f32 %v2751, %v1710
    %v2832 = vmul.f32 %v2752, %v2078
    %v2833 = vmul.f32 %v2753, %v2080
    %v2834 = vmul.f32 %v2754, %v1714
    %v2835 = vmul.f32 %v2755, %v1716
    %v2836 = vmul.f32 %v2756, %v2084
    %v2837 = vmul.f32 %v2757, %v2086
    %v2838 = vmul.f32 %v2758, %v1720
    %v2839 = vmul.f32 %v2759, %v1722
    %v2840 = vmul.f32 %v2760, %v2090
    %v2841 = vmul.f32 %v2761, %v2092
    %v2842 = vmul.f32 %v2762, %v1726
    %v2843 = vmul.f32 %v2763, %v1728
    %v2844 = vmul.f32 %v2764, %v2096
    %v2845 = vmul.f32 %v2765, %v2098
    %v2846 = vmul.f32 %v2766, %v1732
    %v2847 = vmul.f32 %v2767, %v1734
    %v2848 = vmul.f32 %v2768, %v2102
    %v2849 = vmul.f32 %v2769, %v2104
    %v2850 = vmul.f32 %v2770, %v1738
    %v2851 = vmul.f32 %v2771, %v1740
    %v2852 = vmul.f32 %v2772, %v2108
    %v2853 = vmul.f32 %v2773, %v2110
    %v2854 = vmul.f32 %v2774, %v1744
    %v2855 = vmul.f32 %v2775, %v1746
    %v2856 = vmul.f32 %v2776, %v2114
    %v2857 = vmul.f32 %v2777, %v2116
    %v2858 = vmul.f32 %v2778, %v1750
    %v2859 = vmul.f32 %v2779, %v1752
    %v2860 = vmul.f32 %v2780, %v2120
    %v2861 = vmul.f32 %v2781, %v2122
    %v2862 = vmul.f32 %v2782, %v1756
    %v2863 = vmul.f32 %v2783, %v1758
    %v2864 = vmul.f32 %v2784, %v2126
    %v2865 = vmul.f32 %v2785, %v2128
    %v2866 = vmul.f32 %v2786, %v1762
    %v2867 = vmul.f32 %v2787, %v1764
    %v2868 = vmul.f32 %v2788, %v2132
    %v2869 = vmul.f32 %v2789, %v2134
    %v2870 = vmul.f32 %v2790, %v1768
    %v2871 = vmul.f32 %v2791, %v1770
    %v2872 = vmul.f32 %v2792, %v2138
    %v2873 = vmul.f32 %v2793, %v2140
    %v2874 = vmul.f32 %v2794, %v1774
    %v2875 = vmul.f32 %v2795, %v1776
    %v2876 = vmul.f32 %v2796, %v2144
    %v2877 = vmul.f32 %v2797, %v2146
    %v2878 = vmul.f32 %v2798, %v1780
    %v2879 = vmul.f32 %v2799, %v1782
    %v2880 = vmul.f32 %v2800, %v2150
    %v2881 = vmul.f32 %v2801, %v2152
    %v2882 = vmul.f32 %v2802, %v1786
    %v2883 = vmul.f32 %v2803, %v1788
    %v2884 = vmul.f32 %v2804, %v2156
    %v2885 = vmul.f32 %v2805, %v2158
    %v2886 = vmul.f32 %v2806, %v1792
    %v2887 = vmul.f32 %v2807, %v1794
    %v2888 = vmul.f32 %v2808, %v2162
    %v2889 = vmul.f32 %v2809, %v2164
    %v2890 = vmul.f32 %v2810, %v1798
    %v2891 = vmul.f32 %v2811, %v1800
    %v2892 = vmul.f32 %v2812, %v2168
    %v2893 = vmul.f32 %v2813, %v2170
    %2894 = vst [vmem:[#allocation9] sm:$0xff] %v2814
    %2895 = vst [vmem:[#allocation9 + $0x8] sm:$0xff] %v2815
    %2896 = vst [vmem:[#allocation9 + $0x10] sm:$0xff] %v2816
    %2897 = vst [vmem:[#allocation9 + $0x18] sm:$0xff] %v2817
    %2898 = vst [vmem:[#allocation9 + $0x20] sm:$0xff] %v2818
    %2899 = vst [vmem:[#allocation9 + $0x28] sm:$0xff] %v2819
    %2900 = vst [vmem:[#allocation9 + $0x30] sm:$0xff] %v2820
    %2901 = vst [vmem:[#allocation9 + $0x38] sm:$0xff] %v2821
    %2902 = vst [vmem:[#allocation9 + $0x40] sm:$0xff] %v2822
    %2903 = vst [vmem:[#allocation9 + $0x48] sm:$0xff] %v2823
    %2904 = vst [vmem:[#allocation9 + $0x50] sm:$0xff] %v2824
    %2905 = vst [vmem:[#allocation9 + $0x58] sm:$0xff] %v2825
    %2906 = vst [vmem:[#allocation9 + $0x60] sm:$0xff] %v2826
    %2907 = vst [vmem:[#allocation9 + $0x68] sm:$0xff] %v2827
    %2908 = vst [vmem:[#allocation9 + $0x70] sm:$0xff] %v2828
    %2909 = vst [vmem:[#allocation9 + $0x78] sm:$0xff] %v2829
    %2910 = vst [vmem:[#allocation9 + $0x80] sm:$0xff] %v2830
    %2911 = vst [vmem:[#allocation9 + $0x88] sm:$0xff] %v2831
    %2912 = vst [vmem:[#allocation9 + $0x90] sm:$0xff] %v2832
    %2913 = vst [vmem:[#allocation9 + $0x98] sm:$0xff] %v2833
    %2914 = vst [vmem:[#allocation9 + $0xa0] sm:$0xff] %v2834
    %2915 = vst [vmem:[#allocation9 + $0xa8] sm:$0xff] %v2835
    %2916 = vst [vmem:[#allocation9 + $0xb0] sm:$0xff] %v2836
    %2917 = vst [vmem:[#allocation9 + $0xb8] sm:$0xff] %v2837
    %2918 = vst [vmem:[#allocation9 + $0xc0] sm:$0xff] %v2838
    %2919 = vst [vmem:[#allocation9 + $0xc8] sm:$0xff] %v2839
    %2920 = vst [vmem:[#allocation9 + $0xd0] sm:$0xff] %v2840
    %2921 = vst [vmem:[#allocation9 + $0xd8] sm:$0xff] %v2841
    %2922 = vst [vmem:[#allocation9 + $0xe0] sm:$0xff] %v2842
    %2923 = vst [vmem:[#allocation9 + $0xe8] sm:$0xff] %v2843
    %2924 = vst [vmem:[#allocation9 + $0xf0] sm:$0xff] %v2844
    %2925 = vst [vmem:[#allocation9 + $0xf8] sm:$0xff] %v2845
    %2926 = vst [vmem:[#allocation9 + $0x100] sm:$0xff] %v2846
    %2927 = vst [vmem:[#allocation9 + $0x108] sm:$0xff] %v2847
    %2928 = vst [vmem:[#allocation9 + $0x110] sm:$0xff] %v2848
    %2929 = vst [vmem:[#allocation9 + $0x118] sm:$0xff] %v2849
    %2930 = vst [vmem:[#allocation9 + $0x120] sm:$0xff] %v2850
    %2931 = vst [vmem:[#allocation9 + $0x128] sm:$0xff] %v2851
    %2932 = vst [vmem:[#allocation9 + $0x130] sm:$0xff] %v2852
    %2933 = vst [vmem:[#allocation9 + $0x138] sm:$0xff] %v2853
    %2934 = vst [vmem:[#allocation9 + $0x140] sm:$0xff] %v2854
    %2935 = vst [vmem:[#allocation9 + $0x148] sm:$0xff] %v2855
    %2936 = vst [vmem:[#allocation9 + $0x150] sm:$0xff] %v2856
    %2937 = vst [vmem:[#allocation9 + $0x158] sm:$0xff] %v2857
    %2938 = vst [vmem:[#allocation9 + $0x160] sm:$0xff] %v2858
    %2939 = vst [vmem:[#allocation9 + $0x168] sm:$0xff] %v2859
    %2940 = vst [vmem:[#allocation9 + $0x170] sm:$0xff] %v2860
    %2941 = vst [vmem:[#allocation9 + $0x178] sm:$0xff] %v2861
    %2942 = vst [vmem:[#allocation9 + $0x180] sm:$0xff] %v2862
    %2943 = vst [vmem:[#allocation9 + $0x188] sm:$0xff] %v2863
    %2944 = vst [vmem:[#allocation9 + $0x190] sm:$0xff] %v2864
    %2945 = vst [vmem:[#allocation9 + $0x198] sm:$0xff] %v2865
    %2946 = vst [vmem:[#allocation9 + $0x1a0] sm:$0xff] %v2866
    %2947 = vst [vmem:[#allocation9 + $0x1a8] sm:$0xff] %v2867
    %2948 = vst [vmem:[#allocation9 + $0x1b0] sm:$0xff] %v2868
    %2949 = vst [vmem:[#allocation9 + $0x1b8] sm:$0xff] %v2869
    %2950 = vst [vmem:[#allocation9 + $0x1c0] sm:$0xff] %v2870
    %2951 = vst [vmem:[#allocation9 + $0x1c8] sm:$0xff] %v2871
    %2952 = vst [vmem:[#allocation9 + $0x1d0] sm:$0xff] %v2872
    %2953 = vst [vmem:[#allocation9 + $0x1d8] sm:$0xff] %v2873
    %2954 = vst [vmem:[#allocation9 + $0x1e0] sm:$0xff] %v2874
    %2955 = vst [vmem:[#allocation9 + $0x1e8] sm:$0xff] %v2875
    %2956 = vst [vmem:[#allocation9 + $0x1f0] sm:$0xff] %v2876
    %2957 = vst [vmem:[#allocation9 + $0x1f8] sm:$0xff] %v2877
    %2958 = vst [vmem:[#allocation9 + $0x200] sm:$0xff] %v2878
    %2959 = vst [vmem:[#allocation9 + $0x208] sm:$0xff] %v2879
    %2960 = vst [vmem:[#allocation9 + $0x210] sm:$0xff] %v2880
    %2961 = vst [vmem:[#allocation9 + $0x218] sm:$0xff] %v2881
    %2962 = vst [vmem:[#allocation9 + $0x220] sm:$0xff] %v2882
    %2963 = vst [vmem:[#allocation9 + $0x228] sm:$0xff] %v2883
    %2964 = vst [vmem:[#allocation9 + $0x230] sm:$0xff] %v2884
    %2965 = vst [vmem:[#allocation9 + $0x238] sm:$0xff] %v2885
    %2966 = vst [vmem:[#allocation9 + $0x240] sm:$0xff] %v2886
    %2967 = vst [vmem:[#allocation9 + $0x248] sm:$0xff] %v2887
    %2968 = vst [vmem:[#allocation9 + $0x250] sm:$0xff] %v2888
    %2969 = vst [vmem:[#allocation9 + $0x258] sm:$0xff] %v2889
    %2970 = vst [vmem:[#allocation9 + $0x260] sm:$0xff] %v2890
    %2971 = vst [vmem:[#allocation9 + $0x268] sm:$0xff] %v2891
    %2972 = vst [vmem:[#allocation9 + $0x270] sm:$0xff] %v2892
    %2973 = vst [vmem:[#allocation9 + $0x278] sm:$0xff] %v2893
    // Predicated region
    $region30: #{swiglu_fused.1} parent=1 // pred_check
      _
    $region31: #{swiglu_fused.1} parent=1 // pred_check_branch
      %2975 = sbr.rel (0) target = $region33
    $region32: #{swiglu_fused.1} parent=1 // pred_region
      %s2977 = ssub.s32 10240, 10240
      %2978 = vsyncadd [#allocation5], %s2977
      %s2979 = sshll.u32 [#allocation9], 4
      %s2980 = int_to_ptr.vmem [resolvable:$true] %s2979
      %2985 = dma.vmem_to_hbm [thread:$0]  %s2980, 10240, %s4, [#allocation5], 512, 512, 32
    $region33: #{swiglu_fused.1} parent=1 // pred_fallthru
      _
    // Predicated region
    $region34: #{swiglu_fused.1} parent=1 // pred_check
      _
    $region35: #{swiglu_fused.1} parent=1 // pred_check_branch
      %2987 = sbr.rel (0) target = $region37
    $region36: #{swiglu_fused.1} parent=1 // pred_region
      %2988 = dma.done [#allocation5], 10240
    $region37: #{swiglu_fused.1} parent=1 // pred_fallthru
      _
    %2989 = vsyncpa [#allocation4], 1
    %2990 = vsyncpa [#allocation7], 1
    %2991 = vsyncpa [#allocation5], 1

</llo_original>
